<compile_context>
chip_gen: v7x
topology: tpu7x:2x2x1
jax: 0.10.0
libtpu: 0.0.40
codegen_flags: <defaults>
</compile_context>

<pallas_src>
import jax
import jax.numpy as jnp
from jax.experimental import pallas as pl
from jax.experimental.pallas import tpu as pltpu

ALPHA = -0.5
BETA = -0.5
INPUT_CHANNELS = 3
NUM_OBJECTS = 16
OUTPUT_CHANNELS = 50
POLY_DEGREE = 2
BN_EPS = 1e-5

MXU_DTYPE = jnp.bfloat16      # matmul operand dtype (f32 accumulation)
ACT_DTYPE = jnp.bfloat16      # inter-layer activation storage dtype
N_TILE_TARGET = 512           # point-tile target (multiple of 128)


def _round_up(x, m):
    return ((x + m - 1) // m) * m


# ----------------------------------------------------------------------------
# Generation-aware knobs (trace-time queries; safe fallbacks if they fail).
# ----------------------------------------------------------------------------
_DEVICE_KIND = None


def _device_kind():
    global _DEVICE_KIND
    if _DEVICE_KIND is None:
        try:
            _DEVICE_KIND = jax.devices()[0].device_kind.lower()
        except Exception:
            _DEVICE_KIND = ""
    return _DEVICE_KIND


def _has_bf16_vpu():
    # v6e / v7x have bf16 VALU + EUP paths; v5e (and older / unknown) stay f32.
    k = _device_kind()
    return ("v6" in k) or ("v7" in k)


_VMEM_CAP = None


def _vmem_cap_bytes():
    global _VMEM_CAP
    if _VMEM_CAP is None:
        try:
            cap = int(pltpu.get_tpu_info().vmem_capacity_bytes)
        except Exception:
            cap = 64 * 2**20          # conservative fallback (v7x physical VMEM)
        _VMEM_CAP = max(32 * 2**20, int(cap * 0.75))   # leave ~25% headroom
    return _VMEM_CAP


# ----------------------------------------------------------------------------
# Jacobi basis (shared by the Pallas kernel, the per-batch dense path and the
# pure-JAX reference) -- identical recurrence to the PyTorch module.
# ----------------------------------------------------------------------------
def _jacobi_recurrence_coeffs(i, a, b):
    A = (2 * i + a + b - 1) * (2 * i + a + b) / (2 * i * (i + a + b))
    Bc = ((2 * i + a + b - 1) * (a * a - b * b)
          / (2 * i * (i + a + b) * (2 * i + a + b - 2)))
    Cc = (-2 * (i + a - 1) * (i + b - 1) * (2 * i + a + b)
          / (2 * i * (i + a + b) * (2 * i + a + b - 2)))
    return A, Bc, Cc


def _jacobi_basis(t, degree, a, b):
    """Return [P_1, ..., P_degree] evaluated at t (P_0 == 1 handled separately)."""
    ps = []
    p_prev = jnp.ones_like(t)
    p_cur = (a - b + (a + b + 2.0) * t) * 0.5
    ps.append(p_cur)
    for i in range(2, degree + 1):
        A, Bc, Cc = _jacobi_recurrence_coeffs(i, a, b)
        p_next = (A * t + Bc) * p_cur + Cc * p_prev
        ps.append(p_next)
        p_prev, p_cur = p_cur, p_next
    return ps


# ----------------------------------------------------------------------------
# Fused JacobiKAN kernel:  BN -> tanh -> Jacobi basis -> MXU matmul
#                          (+ bias, + optional per-batch extra)
#                          optional per-tile sum / sumsq / max side outputs,
#                          optional transposed + channel-sliced output store.
# ----------------------------------------------------------------------------
def make_kan_kernel(*, a, b, degree, fuse, has_extra, want_y, want_stats,
                    transpose_out, out_channels, compute_dtype,
                    need_mask, n_valid, n_tile):
    def kernel(*refs):
        x_ref, mean_ref, istd_ref, w_ref, bias_ref = refs[:5]
        pos = 5
        extra_ref = None
        if has_extra:
            extra_ref = refs[pos]
            pos += 1
        outs = refs[pos:]
        oi = 0
        y_ref = None
        if want_y:
            y_ref = outs[oi]
            oi += 1
        if want_stats:
            s1_ref, s2_ref, smax_ref = outs[oi], outs[oi + 1], outs[oi + 2]

        cdt = compute_dtype
        # Fused training-mode BatchNorm (identity when mean=0, istd=1) + tanh.
        x = x_ref[0].astype(cdt)                                  # (nt, Cin)
        mu = mean_ref[...].astype(cdt)
        si = istd_ref[...].astype(cdt)
        t = jnp.tanh((x - mu) * si)                               # (nt, Cin)

        ps = _jacobi_basis(t, degree, a, b)                       # P_1 .. P_D

        if fuse:
            # Single MXU call against degree-stacked weights (K = degree*Cin),
            # built directly in bf16 to halve the concat copy.
            if len(ps) > 1:
                pf = jnp.concatenate([p.astype(MXU_DTYPE) for p in ps], axis=-1)
            else:
                pf = ps[0].astype(MXU_DTYPE)
            y = jnp.dot(pf, w_ref[...], preferred_element_type=jnp.float32)
        else:
            # Tiny / unaligned Cin, or v5e: accumulating per-degree dots.
            y = jnp.dot(ps[0].astype(MXU_DTYPE), w_ref[0],
                        preferred_element_type=jnp.float32)
            for d in range(1, degree):
                y = y + jnp.dot(ps[d].astype(MXU_DTYPE), w_ref[d],
                                preferred_element_type=jnp.float32)

        y = y + bias_ref[...]                                     # degree-0 term
        if has_extra:
            y = y + extra_ref[0]                                  # per-batch add

        if want_y:
            if transpose_out:
                # Points on the lane axis (XLU transpose) + channel slice, so the
                # final output needs no XLA slice / transpose re-pass.
                yt = y.T                                          # (Cpad, nt)
                y_ref[0] = yt[:out_channels].astype(y_ref.dtype)
            else:
                y_ref[0] = y.astype(y_ref.dtype)

        if want_stats:
            if need_mask:
                row = (jax.lax.broadcasted_iota(jnp.int32, (n_tile, 1), 0)
                       + pl.program_id(1) * n_tile)
                valid = row < n_valid
                ys = jnp.where(valid, y, 0.0)
                ym = jnp.where(valid, y, -jnp.inf)
            else:
                ys = y
                ym = y
            s1_ref[0, 0] = jnp.sum(ys, axis=0, keepdims=True)
            s2_ref[0, 0] = jnp.sum(ys * ys, axis=0, keepdims=True)
            smax_ref[0, 0] = jnp.max(ym, axis=0, keepdims=True)

    return kernel


def _plan_point_tiling(n, target=N_TILE_TARGET):
    """(n_pad, n_tile, n_tiles): pad the point axis instead of requiring nt | N."""
    assert target % 128 == 0
    n8 = _round_up(n, 8)
    if n8 <= target:
        return n8, n8, 1
    n_pad = _round_up(n, target)
    return n_pad, target, n_pad // target


def _fit_stats(mean, istd, cin_x):
    if mean is None:
        return (jnp.zeros((1, cin_x), jnp.float32),
                jnp.ones((1, cin_x), jnp.float32))
    pad = cin_x - mean.shape[-1]
    if pad:
        mean = jnp.pad(mean, ((0, 0), (0, pad)))
        istd = jnp.pad(istd, ((0, 0), (0, pad)), constant_values=1.0)
    return mean.astype(jnp.float32), istd.astype(jnp.float32)


def jacobi_kan_layer(x, coeffs, mean=None, istd=None, extra=None, *,
                     n_valid, want_y=True, want_stats=False, transpose_out=False,
                     out_dtype=jnp.float32, a=ALPHA, b=BETA, degree=POLY_DEGREE,
                     n_tile_target=N_TILE_TARGET):
    """x: (B, N_pad, Cin_x) point-major (N already padded by caller);
    coeffs: (Cin, Cout, degree+1) with Cin <= Cin_x.

    Returns (y, stats); y is (B, N_pad, Cout_pad) (or (B, Cout, N_pad) when
    transpose_out) or None; stats is (sum, sumsq, max) per (batch, tile) or None.
    """
    B, n_pts, cin_x = x.shape
    cin, cout, dp1 = coeffs.shape
    assert dp1 == degree + 1 and cin <= cin_x
    assert degree >= 1, "degree-0 JacobiKAN is a constant map; not supported here"
    assert not (transpose_out and want_stats)

    n_pad, nt, n_tiles = _plan_point_tiling(n_pts, n_tile_target)
    assert n_pad == n_pts, "point axis must be pre-padded by the caller"

    # Output lane layout:
    #  * cout < 128 or a 128-multiple -> keep as-is (block == full dim; masked
    #    stores for sub-128 widths beat 4x padded HBM traffic at scaling < 1);
    #  * otherwise pad up to a 128 multiple (lane-dense stores);
    #  * transpose_out pads to 128 so the in-kernel transpose is tile-aligned
    #    (pad columns dropped by the in-kernel sublane slice).
    if transpose_out:
        cout_pad = _round_up(cout, 128)
    elif cout < 128 or cout % 128 == 0:
        cout_pad = cout
    else:
        cout_pad = _round_up(cout, 128)

    cf = coeffs.astype(jnp.float32)
    # degree-0 contribution: P0 == 1 for every channel -> column sum of w[:, :, 0].
    bias = jnp.sum(cf[:, :, 0], axis=0, keepdims=True)            # (1, Cout)
    bias = jnp.pad(bias, ((0, 0), (0, cout_pad - cout)))

    def w_slice(d):   # pad rows to x's width, cols to the chosen output width
        return jnp.pad(cf[:, :, d], ((0, cin_x - cin), (0, cout_pad - cout)))

    # Fused K = degree*Cin matmul suits the 256-wide MXU (v6e/v7x); v5e's 128x128
    # MXU splits it anyway, so skip the basis-concat copy there.
    fuse = (cin_x % 128 == 0) and _has_bf16_vpu()
    if fuse:
        w = jnp.concatenate([w_slice(d) for d in range(1, degree + 1)], axis=0)
    else:
        w = jnp.stack([w_slice(d) for d in range(1, degree + 1)], axis=0)
    w = w.astype(MXU_DTYPE)

    mean, istd = _fit_stats(mean, istd, cin_x)

    has_extra = extra is not None
    if has_extra:
        pad = cout_pad - extra.shape[-1]
        if pad:
            extra = jnp.pad(extra, ((0, 0), (0, 0), (0, pad)))
        extra = extra.astype(jnp.float32)

    compute_dtype = jnp.bfloat16 if _has_bf16_vpu() else jnp.float32
    need_mask = bool(want_stats and (n_valid < n_pad))

    kernel = make_kan_kernel(
        a=a, b=b, degree=degree, fuse=fuse, has_extra=has_extra,
        want_y=want_y, want_stats=want_stats, transpose_out=transpose_out,
        out_channels=cout, compute_dtype=compute_dtype,
        need_mask=need_mask, n_valid=n_valid, n_tile=nt)

    in_specs = [
        pl.BlockSpec((1, nt, cin_x), lambda bi, ni: (bi, ni, 0)),
        pl.BlockSpec((1, cin_x), lambda bi, ni: (0, 0)),
        pl.BlockSpec((1, cin_x), lambda bi, ni: (0, 0)),
        pl.BlockSpec(w.shape, lambda bi, ni: (0,) * w.ndim),
        pl.BlockSpec((1, cout_pad), lambda bi, ni: (0, 0)),
    ]
    inputs = [x, mean, istd, w, bias]
    if has_extra:
        in_specs.append(pl.BlockSpec((1, 1, cout_pad), lambda bi, ni: (bi, 0, 0)))
        inputs.append(extra)

    out_shapes, out_specs = [], []
    if want_y:
        if transpose_out:
            out_shapes.append(jax.ShapeDtypeStruct((B, cout, n_pad), out_dtype))
            out_specs.append(pl.BlockSpec((1, cout, nt), lambda bi, ni: (bi, 0, ni)))
        else:
            out_shapes.append(jax.ShapeDtypeStruct((B, n_pad, cout_pad), out_dtype))
            out_specs.append(pl.BlockSpec((1, nt, cout_pad), lambda bi, ni: (bi, ni, 0)))
    if want_stats:
        for _ in range(3):
            out_shapes.append(
                jax.ShapeDtypeStruct((B, n_tiles, 1, cout_pad), jnp.float32))
            out_specs.append(
                pl.BlockSpec((1, 1, 1, cout_pad), lambda bi, ni: (bi, ni, 0, 0)))

    # Scoped-VMEM budget from actual block sizes, capped by physical VMEM - 25%.
    cdt_sz = jnp.dtype(compute_dtype).itemsize
    est = (nt * cin_x * x.dtype.itemsize                # input tile
           + w.size * w.dtype.itemsize                  # resident weights
           + nt * cout_pad * 4                          # f32 accumulator tile
           + (degree + 1) * nt * cin_x * cdt_sz         # tanh + Jacobi basis
           + degree * nt * cin_x * 2                    # fused bf16 basis concat
           + (nt * cout_pad * jnp.dtype(out_dtype).itemsize if want_y else 0)
           + (3 * cout_pad * 4 if want_stats else 0))
    vmem_limit = int(min(_vmem_cap_bytes(), max(32 * 2**20, 3 * est + 8 * 2**20)))

    outs = pl.pallas_call(
        kernel,
        out_shape=tuple(out_shapes),
        grid=(B, n_tiles),
        in_specs=in_specs,
        out_specs=tuple(out_specs),
        compiler_params=pltpu.CompilerParams(
            dimension_semantics=("parallel", "parallel"),
            vmem_limit_bytes=vmem_limit),
    )(*inputs)

    outs = list(outs) if isinstance(outs, (tuple, list)) else [outs]
    y = outs.pop(0) if want_y else None
    stats = tuple(outs) if want_stats else None
    return y, stats


def _finalize_bn(s1, s2, count):
    """Per-channel training-mode BN stats from per-tile sum / sumsq."""
    tot = jnp.sum(s1, axis=(0, 1, 2))                   # (C,)
    tot2 = jnp.sum(s2, axis=(0, 1, 2))
    mean = tot / count
    var = jnp.maximum(tot2 / count - mean * mean, 0.0)  # biased variance
    return mean[None, :], jax.lax.rsqrt(var + BN_EPS)[None, :]


def jacobi_kan_dense(x, coeffs, a=ALPHA, b=BETA, degree=POLY_DEGREE):
    """Plain-JAX JacobiKAN on per-batch vectors: x (B, Cin) -> (B, Cout).
    Used for the point-invariant (global-feature / class-label) jacobikan9
    contributions: M=1 matmuls are pure launch overhead as a pallas_call."""
    t = jnp.tanh(x.astype(jnp.float32))
    ps = [jnp.ones_like(t)] + _jacobi_basis(t, degree, a, b)
    basis = jnp.stack(ps, axis=-1)                      # (B, Cin, degree+1)
    return jnp.einsum('bid,iod->bo', basis, coeffs.astype(jnp.float32))


# ----------------------------------------------------------------------------
# Full PointNetKAN forward
# ----------------------------------------------------------------------------
def init_params(key, scaling):
    c128 = int(128 * scaling)
    c1024 = int(1024 * scaling)
    dims = {
        "j4": (INPUT_CHANNELS, c128),
        "j5": (c128, c1024),
        "j9": (c1024 + c128 + NUM_OBJECTS, c128),
        "j10": (c128, OUTPUT_CHANNELS),
    }
    params = {}
    for name, (din, dout) in dims.items():
        key, sub = jax.random.split(key)
        std = 1.0 / (din * (POLY_DEGREE + 1))
        params[name] = std * jax.random.normal(
            sub, (din, dout, POLY_DEGREE + 1), jnp.float32)
    # BatchNorm affine params stay at defaults (weight=1, bias=0) -> identity.
    return params


@jax.jit
def pointnet_kan_forward(params, x_bcn, class_label):
    # x_bcn: (B, 3, N) torch layout; class_label: (B, NUM_OBJECTS)
    B, _, N = x_bcn.shape
    c4 = params["j5"].shape[0]                          # int(128 * scaling)
    c5 = params["j9"].shape[0] - c4 - NUM_OBJECTS       # int(1024 * scaling)
    count = float(B * N)

    x0 = jnp.transpose(x_bcn, (0, 2, 1)).astype(jnp.float32)     # (B, N, 3)
    n_pad, _, _ = _plan_point_tiling(N)
    if n_pad != N:
        x0 = jnp.pad(x0, ((0, 0), (0, n_pad - N), (0, 0)))       # pad rows masked in stats

    # jacobikan4 (+ bn4 statistics as fused side outputs)
    h4, st4 = jacobi_kan_layer(x0, params["j4"], n_valid=N,
                               want_stats=True, out_dtype=ACT_DTYPE)
    mean4, istd4 = _finalize_bn(st4[0], st4[1], count)

    # jacobikan5 + bn5 + global max-pool, fully fused: the (B, N, 1024*s)
    # activation never reaches HBM -- only its per-tile stats do.
    _, st5 = jacobi_kan_layer(h4, params["j5"], mean=mean4, istd=istd4,
                              n_valid=N, want_y=False, want_stats=True)
    mean5, istd5 = _finalize_bn(st5[0], st5[1], count)
    gmax_raw = jnp.max(st5[2], axis=(1, 2))                      # (B, C5_pad) raw max

    # jacobikan9 decomposition: global-feature / class-label channels are constant
    # across points -> per-batch contributions in plain JAX (fuses with the stats
    # finalization).  bn5 applied to the pooled max (max commutes with the
    # positive identity-affine BN scale).
    g_feat = (gmax_raw[:, :c5] - mean5[:, :c5]) * istd5[:, :c5]
    extra_g = jacobi_kan_dense(g_feat, params["j9"][c4:c4 + c5])
    extra_l = jacobi_kan_dense(class_label.reshape(B, NUM_OBJECTS),
                               params["j9"][c4 + c5:])
    extra = (extra_g + extra_l)[:, None, :]                      # (B, 1, c4)

    # jacobikan9 per-point part (local feature, bn4 fused) + per-batch extra.
    h9, st9 = jacobi_kan_layer(h4, params["j9"][:c4], mean=mean4, istd=istd4,
                               extra=extra, n_valid=N,
                               want_stats=True, out_dtype=ACT_DTYPE)
    mean9, istd9 = _finalize_bn(st9[0], st9[1], count)

    # jacobikan10 (+ fused bn9); the kernel writes the output already transposed
    # and channel-sliced to (B, 50, N_pad) -- no XLA slice/transpose re-pass.
    y, _ = jacobi_kan_layer(h9, params["j10"], mean=mean9, istd=istd9,
                            n_valid=N, transpose_out=True, out_dtype=jnp.float32)
    return y[:, :, :N]                                            # (B, 50, N)


# ----------------------------------------------------------------------------
# Pure-JAX reference (mirrors the PyTorch module exactly, all f32)
# ----------------------------------------------------------------------------
def _ref_jacobi_layer(x_bcn, coeffs, a=ALPHA, b=BETA, degree=POLY_DEGREE):
    t = jnp.tanh(jnp.transpose(x_bcn, (0, 2, 1)))                 # (B, N, Cin)
    ps = [jnp.ones_like(t)] + _jacobi_basis(t, degree, a, b)
    basis = jnp.stack(ps, axis=-1)                                # (B, N, Cin, D+1)
    return jnp.einsum('bnid,iod->bon', basis, coeffs)


def _ref_bn(x_bcn):
    mean = jnp.mean(x_bcn, axis=(0, 2), keepdims=True)
    var = jnp.mean(jnp.square(x_bcn - mean), axis=(0, 2), keepdims=True)
    return (x_bcn - mean) * jax.lax.rsqrt(var + BN_EPS)


def pointnet_kan_reference(params, x, class_label):
    B, _, N = x.shape
    h = _ref_bn(_ref_jacobi_layer(x, params["j4"]))
    local4 = h
    h = _ref_bn(_ref_jacobi_layer(h, params["j5"]))
    g = jnp.max(h, axis=2, keepdims=True)
    g = jnp.broadcast_to(g, (B, g.shape[1], N))
    lbl = jnp.broadcast_to(class_label[:, :, None], (B, NUM_OBJECTS, N))
    h = jnp.concatenate([local4, g, lbl], axis=1)
    h = _ref_bn(_ref_jacobi_layer(h, params["j9"]))
    return _ref_jacobi_layer(h, params["j10"])


if __name__ == "__main__":
    # Small shapes consistent with the module: 3 input channels, 16 classes,
    # 50 output channels, degree-2 Jacobi basis; scaling=1.0 -> hidden 128/1024.
    B, N = 2, 64
    scaling = 1.0

    key = jax.random.PRNGKey(0)
    k_par, k_x, k_lbl = jax.random.split(key, 3)

    params = init_params(k_par, scaling)
    x = jax.random.normal(k_x, (B, INPUT_CHANNELS, N), jnp.float32)
    lbl_idx = jax.random.randint(k_lbl, (B,), 0, NUM_OBJECTS)
    class_label = jax.nn.one_hot(lbl_idx, NUM_OBJECTS, dtype=jnp.float32)

    out = pointnet_kan_forward(params, x, class_label)
    out = jax.block_until_ready(out)
    assert out.shape == (B, OUTPUT_CHANNELS, N), out.shape
    assert bool(jnp.isfinite(out).all())

    ref = jax.block_until_ready(pointnet_kan_reference(params, x, class_label))
    err = float(jnp.max(jnp.abs(out - ref)))
    assert err < 3e-2, f"max abs error vs reference: {err}"
    print("KERNEL_OK")
</pallas_src>

<mosaic_0001>
module attributes {stable_mosaic.version = 11 : i64} {
  func.func @kernel(%arg0: i32, %arg1: i32, %arg2: memref<1x64x3xf32, #tpu.memory_space<vmem>>, %arg3: memref<1x3xf32, #tpu.memory_space<vmem>>, %arg4: memref<1x3xf32, #tpu.memory_space<vmem>>, %arg5: memref<2x3x128xbf16, #tpu.memory_space<vmem>>, %arg6: memref<1x128xf32, #tpu.memory_space<vmem>>, %arg7: memref<1x64x128xbf16, #tpu.memory_space<vmem>>, %arg8: memref<1x1x1x128xf32, #tpu.memory_space<vmem>>, %arg9: memref<1x1x1x128xf32, #tpu.memory_space<vmem>>, %arg10: memref<1x1x1x128xf32, #tpu.memory_space<vmem>>) attributes {dimension_semantics = [#tpu.dimension_semantics<parallel>, #tpu.dimension_semantics<parallel>], iteration_bounds = array<i64: 2, 1>, scalar_prefetch = 0 : i64, scratch_operands = 0 : i64, tpu.core_type = #tpu.core_type<tc>, window_params = [{transform_indices = @transform_0, window_bounds = array<i64: 1, 64, 3>}, {pipeline_mode = #tpu.pipeline_mode<synchronous>, transform_indices = @transform_1, window_bounds = array<i64: 1, 3>}, {pipeline_mode = #tpu.pipeline_mode<synchronous>, transform_indices = @transform_2, window_bounds = array<i64: 1, 3>}, {pipeline_mode = #tpu.pipeline_mode<synchronous>, transform_indices = @transform_3, window_bounds = array<i64: 2, 3, 128>}, {pipeline_mode = #tpu.pipeline_mode<synchronous>, transform_indices = @transform_4, window_bounds = array<i64: 1, 128>}, {transform_indices = @transform_5, window_bounds = array<i64: 1, 64, 128>}, {transform_indices = @transform_6, window_bounds = array<i64: 1, 1, 1, 128>}, {transform_indices = @transform_7, window_bounds = array<i64: 1, 1, 1, 128>}, {transform_indices = @transform_8, window_bounds = array<i64: 1, 1, 1, 128>}]} {
    %c0 = arith.constant 0 : index
    %c0_0 = arith.constant 0 : index
    %c0_1 = arith.constant 0 : index
    %0 = vector.load %arg2[%c0, %c0_0, %c0_1] : memref<1x64x3xf32, #tpu.memory_space<vmem>>, vector<1x64x3xf32>
    %1 = vector.shape_cast %0 : vector<1x64x3xf32> to vector<64x3xf32>
    %c0_2 = arith.constant 0 : index
    %c0_3 = arith.constant 0 : index
    %2 = vector.load %arg3[%c0_2, %c0_3] : memref<1x3xf32, #tpu.memory_space<vmem>>, vector<1x3xf32>
    %c0_4 = arith.constant 0 : index
    %c0_5 = arith.constant 0 : index
    %3 = vector.load %arg4[%c0_4, %c0_5] : memref<1x3xf32, #tpu.memory_space<vmem>>, vector<1x3xf32>
    %4 = vector.broadcast %2 : vector<1x3xf32> to vector<64x3xf32>
    %5 = arith.subf %1, %4 : vector<64x3xf32>
    %6 = vector.broadcast %3 : vector<1x3xf32> to vector<64x3xf32>
    %7 = arith.mulf %5, %6 : vector<64x3xf32>
    %8 = math.tanh %7 : vector<64x3xf32>
    %cst = arith.constant 1.000000e+00 : f32
    %9 = vector.broadcast %cst : f32 to vector<64x3xf32>
    %cst_6 = arith.constant 1.000000e+00 : f32
    %10 = vector.broadcast %cst_6 : f32 to vector<64x3xf32>
    %11 = arith.mulf %10, %8 : vector<64x3xf32>
    %cst_7 = arith.constant 0.000000e+00 : f32
    %12 = vector.broadcast %cst_7 : f32 to vector<64x3xf32>
    %13 = arith.addf %12, %11 : vector<64x3xf32>
    %cst_8 = arith.constant 5.000000e-01 : f32
    %14 = vector.broadcast %cst_8 : f32 to vector<64x3xf32>
    %15 = arith.mulf %13, %14 : vector<64x3xf32>
    %cst_9 = arith.constant 1.500000e+00 : f32
    %16 = vector.broadcast %cst_9 : f32 to vector<64x3xf32>
    %17 = arith.mulf %16, %8 : vector<64x3xf32>
    %cst_10 = arith.constant 0.000000e+00 : f32
    %18 = vector.broadcast %cst_10 : f32 to vector<64x3xf32>
    %19 = arith.addf %17, %18 : vector<64x3xf32>
    %20 = arith.mulf %19, %15 : vector<64x3xf32>
    %cst_11 = arith.constant -3.750000e-01 : f32
    %21 = vector.broadcast %cst_11 : f32 to vector<64x3xf32>
    %22 = arith.mulf %21, %9 : vector<64x3xf32>
    %23 = arith.addf %20, %22 : vector<64x3xf32>
    %24 = arith.truncf %15 : vector<64x3xf32> to vector<64x3xbf16>
    %c0_12 = arith.constant 0 : index
    %c0_13 = arith.constant 0 : index
    %c0_14 = arith.constant 0 : index
    %25 = vector.load %arg5[%c0_12, %c0_13, %c0_14] : memref<2x3x128xbf16, #tpu.memory_space<vmem>>, vector<1x3x128xbf16>
    %26 = vector.shape_cast %25 : vector<1x3x128xbf16> to vector<3x128xbf16>
    %cst_15 = arith.constant dense<0.000000e+00> : vector<64x128xf32>
    %27 = tpu.matmul %24, %26, %cst_15 {dimension_numbers = #tpu.dot_dimension_numbers<[1], [0], [0], [1], [0, 0, 1, 1], [], []>} : vector<64x3xbf16>, vector<3x128xbf16>, vector<64x128xf32> -> vector<64x128xf32>
    %28 = arith.truncf %23 : vector<64x3xf32> to vector<64x3xbf16>
    %c1 = arith.constant 1 : index
    %c0_16 = arith.constant 0 : index
    %c0_17 = arith.constant 0 : index
    %29 = vector.load %arg5[%c1, %c0_16, %c0_17] : memref<2x3x128xbf16, #tpu.memory_space<vmem>>, vector<1x3x128xbf16>
    %30 = vector.shape_cast %29 : vector<1x3x128xbf16> to vector<3x128xbf16>
    %cst_18 = arith.constant dense<0.000000e+00> : vector<64x128xf32>
    %31 = tpu.matmul %28, %30, %cst_18 {dimension_numbers = #tpu.dot_dimension_numbers<[1], [0], [0], [1], [0, 0, 1, 1], [], []>} : vector<64x3xbf16>, vector<3x128xbf16>, vector<64x128xf32> -> vector<64x128xf32>
    %32 = arith.addf %27, %31 : vector<64x128xf32>
    %c0_19 = arith.constant 0 : index
    %c0_20 = arith.constant 0 : index
    %33 = vector.load %arg6[%c0_19, %c0_20] : memref<1x128xf32, #tpu.memory_space<vmem>>, vector<1x128xf32>
    %34 = vector.broadcast %33 : vector<1x128xf32> to vector<64x128xf32>
    %35 = arith.addf %32, %34 : vector<64x128xf32>
    %36 = arith.truncf %35 : vector<64x128xf32> to vector<64x128xbf16>
    %c0_21 = arith.constant 0 : index
    %c0_22 = arith.constant 0 : index
    %c0_23 = arith.constant 0 : index
    %37 = vector.load %arg7[%c0_21, %c0_22, %c0_23] : memref<1x64x128xbf16, #tpu.memory_space<vmem>>, vector<1x64x128xbf16>
    %38 = vector.shape_cast %37 : vector<1x64x128xbf16> to vector<64x128xbf16>
    %39 = vector.shape_cast %36 : vector<64x128xbf16> to vector<1x64x128xbf16>
    tpu.vector_store %arg7[%c0_21, %c0_22, %c0_23], %39 {strides = array<i32>} : memref<1x64x128xbf16, #tpu.memory_space<vmem>>, vector<1x64x128xbf16>,
    %cst_24 = arith.constant dense<0.000000e+00> : vector<128xf32>
    %40 = vector.multi_reduction <add>, %35, %cst_24 [0] : vector<64x128xf32> to vector<128xf32>
    %41 = vector.shape_cast %40 : vector<128xf32> to vector<1x128xf32>
    %c0_25 = arith.constant 0 : index
    %c0_26 = arith.constant 0 : index
    %c0_27 = arith.constant 0 : index
    %c0_28 = arith.constant 0 : index
    %42 = vector.load %arg8[%c0_25, %c0_26, %c0_27, %c0_28] : memref<1x1x1x128xf32, #tpu.memory_space<vmem>>, vector<1x1x1x128xf32>
    %43 = vector.shape_cast %42 : vector<1x1x1x128xf32> to vector<1x128xf32>
    %44 = vector.shape_cast %41 : vector<1x128xf32> to vector<1x1x1x128xf32>
    tpu.vector_store %arg8[%c0_25, %c0_26, %c0_27, %c0_28], %44 {strides = array<i32>} : memref<1x1x1x128xf32, #tpu.memory_space<vmem>>, vector<1x1x1x128xf32>,
    %45 = arith.mulf %35, %35 : vector<64x128xf32>
    %cst_29 = arith.constant dense<0.000000e+00> : vector<128xf32>
    %46 = vector.multi_reduction <add>, %45, %cst_29 [0] : vector<64x128xf32> to vector<128xf32>
    %47 = vector.shape_cast %46 : vector<128xf32> to vector<1x128xf32>
    %c0_30 = arith.constant 0 : index
    %c0_31 = arith.constant 0 : index
    %c0_32 = arith.constant 0 : index
    %c0_33 = arith.constant 0 : index
    %48 = vector.load %arg9[%c0_30, %c0_31, %c0_32, %c0_33] : memref<1x1x1x128xf32, #tpu.memory_space<vmem>>, vector<1x1x1x128xf32>
    %49 = vector.shape_cast %48 : vector<1x1x1x128xf32> to vector<1x128xf32>
    %50 = vector.shape_cast %47 : vector<1x128xf32> to vector<1x1x1x128xf32>
    tpu.vector_store %arg9[%c0_30, %c0_31, %c0_32, %c0_33], %50 {strides = array<i32>} : memref<1x1x1x128xf32, #tpu.memory_space<vmem>>, vector<1x1x1x128xf32>,
    %cst_34 = arith.constant dense<0xFF800000> : vector<128xf32>
    %51 = vector.multi_reduction <maximumf>, %35, %cst_34 [0] : vector<64x128xf32> to vector<128xf32>
    %52 = vector.shape_cast %51 : vector<128xf32> to vector<1x128xf32>
    %c0_35 = arith.constant 0 : index
    %c0_36 = arith.constant 0 : index
    %c0_37 = arith.constant 0 : index
    %c0_38 = arith.constant 0 : index
    %53 = vector.load %arg10[%c0_35, %c0_36, %c0_37, %c0_38] : memref<1x1x1x128xf32, #tpu.memory_space<vmem>>, vector<1x1x1x128xf32>
    %54 = vector.shape_cast %53 : vector<1x1x1x128xf32> to vector<1x128xf32>
    %55 = vector.shape_cast %52 : vector<1x128xf32> to vector<1x1x1x128xf32>
    tpu.vector_store %arg10[%c0_35, %c0_36, %c0_37, %c0_38], %55 {strides = array<i32>} : memref<1x1x1x128xf32, #tpu.memory_space<vmem>>, vector<1x1x1x128xf32>,
    return
  }
  func.func @transform_0(%arg0: i32, %arg1: i32) -> (i32, i32, i32) {
    %c0_i32 = arith.constant 0 : i32
    %c0_i32_0 = arith.constant 0 : i32
    return %arg0, %arg1, %c0_i32 : i32, i32, i32
  }
  func.func @transform_1(%arg0: i32, %arg1: i32) -> (i32, i32) {
    %c0_i32 = arith.constant 0 : i32
    %c0_i32_0 = arith.constant 0 : i32
    %c0_i32_1 = arith.constant 0 : i32
    return %c0_i32, %c0_i32_0 : i32, i32
  }
  func.func @transform_2(%arg0: i32, %arg1: i32) -> (i32, i32) {
    %c0_i32 = arith.constant 0 : i32
    %c0_i32_0 = arith.constant 0 : i32
    %c0_i32_1 = arith.constant 0 : i32
    return %c0_i32, %c0_i32_0 : i32, i32
  }
  func.func @transform_3(%arg0: i32, %arg1: i32) -> (i32, i32, i32) {
    %c0_i32 = arith.constant 0 : i32
    %c0_i32_0 = arith.constant 0 : i32
    %c0_i32_1 = arith.constant 0 : i32
    %c0_i32_2 = arith.constant 0 : i32
    return %c0_i32, %c0_i32_0, %c0_i32_1 : i32, i32, i32
  }
  func.func @transform_4(%arg0: i32, %arg1: i32) -> (i32, i32) {
    %c0_i32 = arith.constant 0 : i32
    %c0_i32_0 = arith.constant 0 : i32
    %c0_i32_1 = arith.constant 0 : i32
    return %c0_i32, %c0_i32_0 : i32, i32
  }
  func.func @transform_5(%arg0: i32, %arg1: i32) -> (i32, i32, i32) {
    %c0_i32 = arith.constant 0 : i32
    %c0_i32_0 = arith.constant 0 : i32
    return %arg0, %arg1, %c0_i32 : i32, i32, i32
  }
  func.func @transform_6(%arg0: i32, %arg1: i32) -> (i32, i32, i32, i32) {
    %c0_i32 = arith.constant 0 : i32
    %c0_i32_0 = arith.constant 0 : i32
    %c0_i32_1 = arith.constant 0 : i32
    return %arg0, %arg1, %c0_i32, %c0_i32_0 : i32, i32, i32, i32
  }
  func.func @transform_7(%arg0: i32, %arg1: i32) -> (i32, i32, i32, i32) {
    %c0_i32 = arith.constant 0 : i32
    %c0_i32_0 = arith.constant 0 : i32
    %c0_i32_1 = arith.constant 0 : i32
    return %arg0, %arg1, %c0_i32, %c0_i32_0 : i32, i32, i32, i32
  }
  func.func @transform_8(%arg0: i32, %arg1: i32) -> (i32, i32, i32, i32) {
    %c0_i32 = arith.constant 0 : i32
    %c0_i32_0 = arith.constant 0 : i32
    %c0_i32_1 = arith.constant 0 : i32
    return %arg0, %arg1, %c0_i32, %c0_i32_0 : i32, i32, i32, i32
  }
}

module attributes {stable_mosaic.version = 11 : i64} {
  func.func @kernel(%arg0: i32, %arg1: i32, %arg2: memref<1x64x128xbf16, #tpu.memory_space<vmem>>, %arg3: memref<1x128xf32, #tpu.memory_space<vmem>>, %arg4: memref<1x128xf32, #tpu.memory_space<vmem>>, %arg5: memref<2x128x1024xbf16, #tpu.memory_space<vmem>>, %arg6: memref<1x1024xf32, #tpu.memory_space<vmem>>, %arg7: memref<1x1x1x1024xf32, #tpu.memory_space<vmem>>, %arg8: memref<1x1x1x1024xf32, #tpu.memory_space<vmem>>, %arg9: memref<1x1x1x1024xf32, #tpu.memory_space<vmem>>) attributes {dimension_semantics = [#tpu.dimension_semantics<parallel>, #tpu.dimension_semantics<parallel>], iteration_bounds = array<i64: 2, 1>, scalar_prefetch = 0 : i64, scratch_operands = 0 : i64, tpu.core_type = #tpu.core_type<tc>, window_params = [{transform_indices = @transform_0, window_bounds = array<i64: 1, 64, 128>}, {pipeline_mode = #tpu.pipeline_mode<synchronous>, transform_indices = @transform_1, window_bounds = array<i64: 1, 128>}, {pipeline_mode = #tpu.pipeline_mode<synchronous>, transform_indices = @transform_2, window_bounds = array<i64: 1, 128>}, {pipeline_mode = #tpu.pipeline_mode<synchronous>, transform_indices = @transform_3, window_bounds = array<i64: 2, 128, 1024>}, {pipeline_mode = #tpu.pipeline_mode<synchronous>, transform_indices = @transform_4, window_bounds = array<i64: 1, 1024>}, {transform_indices = @transform_5, window_bounds = array<i64: 1, 1, 1, 1024>}, {transform_indices = @transform_6, window_bounds = array<i64: 1, 1, 1, 1024>}, {transform_indices = @transform_7, window_bounds = array<i64: 1, 1, 1, 1024>}]} {
    %c0 = arith.constant 0 : index
    %c0_0 = arith.constant 0 : index
    %c0_1 = arith.constant 0 : index
    %0 = vector.load %arg2[%c0, %c0_0, %c0_1] : memref<1x64x128xbf16, #tpu.memory_space<vmem>>, vector<1x64x128xbf16>
    %1 = vector.shape_cast %0 : vector<1x64x128xbf16> to vector<64x128xbf16>
    %2 = arith.extf %1 : vector<64x128xbf16> to vector<64x128xf32>
    %c0_2 = arith.constant 0 : index
    %c0_3 = arith.constant 0 : index
    %3 = vector.load %arg3[%c0_2, %c0_3] : memref<1x128xf32, #tpu.memory_space<vmem>>, vector<1x128xf32>
    %c0_4 = arith.constant 0 : index
    %c0_5 = arith.constant 0 : index
    %4 = vector.load %arg4[%c0_4, %c0_5] : memref<1x128xf32, #tpu.memory_space<vmem>>, vector<1x128xf32>
    %5 = vector.broadcast %3 : vector<1x128xf32> to vector<64x128xf32>
    %6 = arith.subf %2, %5 : vector<64x128xf32>
    %7 = vector.broadcast %4 : vector<1x128xf32> to vector<64x128xf32>
    %8 = arith.mulf %6, %7 : vector<64x128xf32>
    %9 = math.tanh %8 : vector<64x128xf32>
    %cst = arith.constant 1.000000e+00 : f32
    %10 = vector.broadcast %cst : f32 to vector<64x128xf32>
    %cst_6 = arith.constant 1.000000e+00 : f32
    %11 = vector.broadcast %cst_6 : f32 to vector<64x128xf32>
    %12 = arith.mulf %11, %9 : vector<64x128xf32>
    %cst_7 = arith.constant 0.000000e+00 : f32
    %13 = vector.broadcast %cst_7 : f32 to vector<64x128xf32>
    %14 = arith.addf %13, %12 : vector<64x128xf32>
    %cst_8 = arith.constant 5.000000e-01 : f32
    %15 = vector.broadcast %cst_8 : f32 to vector<64x128xf32>
    %16 = arith.mulf %14, %15 : vector<64x128xf32>
    %cst_9 = arith.constant 1.500000e+00 : f32
    %17 = vector.broadcast %cst_9 : f32 to vector<64x128xf32>
    %18 = arith.mulf %17, %9 : vector<64x128xf32>
    %cst_10 = arith.constant 0.000000e+00 : f32
    %19 = vector.broadcast %cst_10 : f32 to vector<64x128xf32>
    %20 = arith.addf %18, %19 : vector<64x128xf32>
    %21 = arith.mulf %20, %16 : vector<64x128xf32>
    %cst_11 = arith.constant -3.750000e-01 : f32
    %22 = vector.broadcast %cst_11 : f32 to vector<64x128xf32>
    %23 = arith.mulf %22, %10 : vector<64x128xf32>
    %24 = arith.addf %21, %23 : vector<64x128xf32>
    %25 = arith.truncf %16 : vector<64x128xf32> to vector<64x128xbf16>
    %c0_12 = arith.constant 0 : index
    %c0_13 = arith.constant 0 : index
    %c0_14 = arith.constant 0 : index
    %26 = vector.load %arg5[%c0_12, %c0_13, %c0_14] : memref<2x128x1024xbf16, #tpu.memory_space<vmem>>, vector<1x128x1024xbf16>
    %27 = vector.shape_cast %26 : vector<1x128x1024xbf16> to vector<128x1024xbf16>
    %cst_15 = arith.constant dense<0.000000e+00> : vector<64x1024xf32>
    %28 = tpu.matmul %25, %27, %cst_15 {dimension_numbers = #tpu.dot_dimension_numbers<[1], [0], [0], [1], [0, 0, 1, 1], [], []>} : vector<64x128xbf16>, vector<128x1024xbf16>, vector<64x1024xf32> -> vector<64x1024xf32>
    %29 = arith.truncf %24 : vector<64x128xf32> to vector<64x128xbf16>
    %c1 = arith.constant 1 : index
    %c0_16 = arith.constant 0 : index
    %c0_17 = arith.constant 0 : index
    %30 = vector.load %arg5[%c1, %c0_16, %c0_17] : memref<2x128x1024xbf16, #tpu.memory_space<vmem>>, vector<1x128x1024xbf16>
    %31 = vector.shape_cast %30 : vector<1x128x1024xbf16> to vector<128x1024xbf16>
    %cst_18 = arith.constant dense<0.000000e+00> : vector<64x1024xf32>
    %32 = tpu.matmul %29, %31, %cst_18 {dimension_numbers = #tpu.dot_dimension_numbers<[1], [0], [0], [1], [0, 0, 1, 1], [], []>} : vector<64x128xbf16>, vector<128x1024xbf16>, vector<64x1024xf32> -> vector<64x1024xf32>
    %33 = arith.addf %28, %32 : vector<64x1024xf32>
    %c0_19 = arith.constant 0 : index
    %c0_20 = arith.constant 0 : index
    %34 = vector.load %arg6[%c0_19, %c0_20] : memref<1x1024xf32, #tpu.memory_space<vmem>>, vector<1x1024xf32>
    %35 = vector.broadcast %34 : vector<1x1024xf32> to vector<64x1024xf32>
    %36 = arith.addf %33, %35 : vector<64x1024xf32>
    %cst_21 = arith.constant dense<0.000000e+00> : vector<1024xf32>
    %37 = vector.multi_reduction <add>, %36, %cst_21 [0] : vector<64x1024xf32> to vector<1024xf32>
    %38 = vector.shape_cast %37 : vector<1024xf32> to vector<1x1024xf32>
    %c0_22 = arith.constant 0 : index
    %c0_23 = arith.constant 0 : index
    %c0_24 = arith.constant 0 : index
    %c0_25 = arith.constant 0 : index
    %39 = vector.load %arg7[%c0_22, %c0_23, %c0_24, %c0_25] : memref<1x1x1x1024xf32, #tpu.memory_space<vmem>>, vector<1x1x1x1024xf32>
    %40 = vector.shape_cast %39 : vector<1x1x1x1024xf32> to vector<1x1024xf32>
    %41 = vector.shape_cast %38 : vector<1x1024xf32> to vector<1x1x1x1024xf32>
    tpu.vector_store %arg7[%c0_22, %c0_23, %c0_24, %c0_25], %41 {strides = array<i32>} : memref<1x1x1x1024xf32, #tpu.memory_space<vmem>>, vector<1x1x1x1024xf32>,
    %42 = arith.mulf %36, %36 : vector<64x1024xf32>
    %cst_26 = arith.constant dense<0.000000e+00> : vector<1024xf32>
    %43 = vector.multi_reduction <add>, %42, %cst_26 [0] : vector<64x1024xf32> to vector<1024xf32>
    %44 = vector.shape_cast %43 : vector<1024xf32> to vector<1x1024xf32>
    %c0_27 = arith.constant 0 : index
    %c0_28 = arith.constant 0 : index
    %c0_29 = arith.constant 0 : index
    %c0_30 = arith.constant 0 : index
    %45 = vector.load %arg8[%c0_27, %c0_28, %c0_29, %c0_30] : memref<1x1x1x1024xf32, #tpu.memory_space<vmem>>, vector<1x1x1x1024xf32>
    %46 = vector.shape_cast %45 : vector<1x1x1x1024xf32> to vector<1x1024xf32>
    %47 = vector.shape_cast %44 : vector<1x1024xf32> to vector<1x1x1x1024xf32>
    tpu.vector_store %arg8[%c0_27, %c0_28, %c0_29, %c0_30], %47 {strides = array<i32>} : memref<1x1x1x1024xf32, #tpu.memory_space<vmem>>, vector<1x1x1x1024xf32>,
    %cst_31 = arith.constant dense<0xFF800000> : vector<1024xf32>
    %48 = vector.multi_reduction <maximumf>, %36, %cst_31 [0] : vector<64x1024xf32> to vector<1024xf32>
    %49 = vector.shape_cast %48 : vector<1024xf32> to vector<1x1024xf32>
    %c0_32 = arith.constant 0 : index
    %c0_33 = arith.constant 0 : index
    %c0_34 = arith.constant 0 : index
    %c0_35 = arith.constant 0 : index
    %50 = vector.load %arg9[%c0_32, %c0_33, %c0_34, %c0_35] : memref<1x1x1x1024xf32, #tpu.memory_space<vmem>>, vector<1x1x1x1024xf32>
    %51 = vector.shape_cast %50 : vector<1x1x1x1024xf32> to vector<1x1024xf32>
    %52 = vector.shape_cast %49 : vector<1x1024xf32> to vector<1x1x1x1024xf32>
    tpu.vector_store %arg9[%c0_32, %c0_33, %c0_34, %c0_35], %52 {strides = array<i32>} : memref<1x1x1x1024xf32, #tpu.memory_space<vmem>>, vector<1x1x1x1024xf32>,
    return
  }
  func.func @transform_0(%arg0: i32, %arg1: i32) -> (i32, i32, i32) {
    %c0_i32 = arith.constant 0 : i32
    %c0_i32_0 = arith.constant 0 : i32
    return %arg0, %arg1, %c0_i32 : i32, i32, i32
  }
  func.func @transform_1(%arg0: i32, %arg1: i32) -> (i32, i32) {
    %c0_i32 = arith.constant 0 : i32
    %c0_i32_0 = arith.constant 0 : i32
    %c0_i32_1 = arith.constant 0 : i32
    return %c0_i32, %c0_i32_0 : i32, i32
  }
  func.func @transform_2(%arg0: i32, %arg1: i32) -> (i32, i32) {
    %c0_i32 = arith.constant 0 : i32
    %c0_i32_0 = arith.constant 0 : i32
    %c0_i32_1 = arith.constant 0 : i32
    return %c0_i32, %c0_i32_0 : i32, i32
  }
  func.func @transform_3(%arg0: i32, %arg1: i32) -> (i32, i32, i32) {
    %c0_i32 = arith.constant 0 : i32
    %c0_i32_0 = arith.constant 0 : i32
    %c0_i32_1 = arith.constant 0 : i32
    %c0_i32_2 = arith.constant 0 : i32
    return %c0_i32, %c0_i32_0, %c0_i32_1 : i32, i32, i32
  }
  func.func @transform_4(%arg0: i32, %arg1: i32) -> (i32, i32) {
    %c0_i32 = arith.constant 0 : i32
    %c0_i32_0 = arith.constant 0 : i32
    %c0_i32_1 = arith.constant 0 : i32
    return %c0_i32, %c0_i32_0 : i32, i32
  }
  func.func @transform_5(%arg0: i32, %arg1: i32) -> (i32, i32, i32, i32) {
    %c0_i32 = arith.constant 0 : i32
    %c0_i32_0 = arith.constant 0 : i32
    %c0_i32_1 = arith.constant 0 : i32
    return %arg0, %arg1, %c0_i32, %c0_i32_0 : i32, i32, i32, i32
  }
  func.func @transform_6(%arg0: i32, %arg1: i32) -> (i32, i32, i32, i32) {
    %c0_i32 = arith.constant 0 : i32
    %c0_i32_0 = arith.constant 0 : i32
    %c0_i32_1 = arith.constant 0 : i32
    return %arg0, %arg1, %c0_i32, %c0_i32_0 : i32, i32, i32, i32
  }
  func.func @transform_7(%arg0: i32, %arg1: i32) -> (i32, i32, i32, i32) {
    %c0_i32 = arith.constant 0 : i32
    %c0_i32_0 = arith.constant 0 : i32
    %c0_i32_1 = arith.constant 0 : i32
    return %arg0, %arg1, %c0_i32, %c0_i32_0 : i32, i32, i32, i32
  }
}

module attributes {stable_mosaic.version = 11 : i64} {
  func.func @kernel(%arg0: i32, %arg1: i32, %arg2: memref<1x64x128xbf16, #tpu.memory_space<vmem>>, %arg3: memref<1x128xf32, #tpu.memory_space<vmem>>, %arg4: memref<1x128xf32, #tpu.memory_space<vmem>>, %arg5: memref<2x128x128xbf16, #tpu.memory_space<vmem>>, %arg6: memref<1x128xf32, #tpu.memory_space<vmem>>, %arg7: memref<1x1x128xf32, #tpu.memory_space<vmem>>, %arg8: memref<1x64x128xbf16, #tpu.memory_space<vmem>>, %arg9: memref<1x1x1x128xf32, #tpu.memory_space<vmem>>, %arg10: memref<1x1x1x128xf32, #tpu.memory_space<vmem>>, %arg11: memref<1x1x1x128xf32, #tpu.memory_space<vmem>>) attributes {dimension_semantics = [#tpu.dimension_semantics<parallel>, #tpu.dimension_semantics<parallel>], iteration_bounds = array<i64: 2, 1>, scalar_prefetch = 0 : i64, scratch_operands = 0 : i64, tpu.core_type = #tpu.core_type<tc>, window_params = [{transform_indices = @transform_0, window_bounds = array<i64: 1, 64, 128>}, {pipeline_mode = #tpu.pipeline_mode<synchronous>, transform_indices = @transform_1, window_bounds = array<i64: 1, 128>}, {pipeline_mode = #tpu.pipeline_mode<synchronous>, transform_indices = @transform_2, window_bounds = array<i64: 1, 128>}, {pipeline_mode = #tpu.pipeline_mode<synchronous>, transform_indices = @transform_3, window_bounds = array<i64: 2, 128, 128>}, {pipeline_mode = #tpu.pipeline_mode<synchronous>, transform_indices = @transform_4, window_bounds = array<i64: 1, 128>}, {transform_indices = @transform_5, window_bounds = array<i64: 1, 1, 128>}, {transform_indices = @transform_6, window_bounds = array<i64: 1, 64, 128>}, {transform_indices = @transform_7, window_bounds = array<i64: 1, 1, 1, 128>}, {transform_indices = @transform_8, window_bounds = array<i64: 1, 1, 1, 128>}, {transform_indices = @transform_9, window_bounds = array<i64: 1, 1, 1, 128>}]} {
    %c0 = arith.constant 0 : index
    %c0_0 = arith.constant 0 : index
    %c0_1 = arith.constant 0 : index
    %0 = vector.load %arg2[%c0, %c0_0, %c0_1] : memref<1x64x128xbf16, #tpu.memory_space<vmem>>, vector<1x64x128xbf16>
    %1 = vector.shape_cast %0 : vector<1x64x128xbf16> to vector<64x128xbf16>
    %2 = arith.extf %1 : vector<64x128xbf16> to vector<64x128xf32>
    %c0_2 = arith.constant 0 : index
    %c0_3 = arith.constant 0 : index
    %3 = vector.load %arg3[%c0_2, %c0_3] : memref<1x128xf32, #tpu.memory_space<vmem>>, vector<1x128xf32>
    %c0_4 = arith.constant 0 : index
    %c0_5 = arith.constant 0 : index
    %4 = vector.load %arg4[%c0_4, %c0_5] : memref<1x128xf32, #tpu.memory_space<vmem>>, vector<1x128xf32>
    %5 = vector.broadcast %3 : vector<1x128xf32> to vector<64x128xf32>
    %6 = arith.subf %2, %5 : vector<64x128xf32>
    %7 = vector.broadcast %4 : vector<1x128xf32> to vector<64x128xf32>
    %8 = arith.mulf %6, %7 : vector<64x128xf32>
    %9 = math.tanh %8 : vector<64x128xf32>
    %cst = arith.constant 1.000000e+00 : f32
    %10 = vector.broadcast %cst : f32 to vector<64x128xf32>
    %cst_6 = arith.constant 1.000000e+00 : f32
    %11 = vector.broadcast %cst_6 : f32 to vector<64x128xf32>
    %12 = arith.mulf %11, %9 : vector<64x128xf32>
    %cst_7 = arith.constant 0.000000e+00 : f32
    %13 = vector.broadcast %cst_7 : f32 to vector<64x128xf32>
    %14 = arith.addf %13, %12 : vector<64x128xf32>
    %cst_8 = arith.constant 5.000000e-01 : f32
    %15 = vector.broadcast %cst_8 : f32 to vector<64x128xf32>
    %16 = arith.mulf %14, %15 : vector<64x128xf32>
    %cst_9 = arith.constant 1.500000e+00 : f32
    %17 = vector.broadcast %cst_9 : f32 to vector<64x128xf32>
    %18 = arith.mulf %17, %9 : vector<64x128xf32>
    %cst_10 = arith.constant 0.000000e+00 : f32
    %19 = vector.broadcast %cst_10 : f32 to vector<64x128xf32>
    %20 = arith.addf %18, %19 : vector<64x128xf32>
    %21 = arith.mulf %20, %16 : vector<64x128xf32>
    %cst_11 = arith.constant -3.750000e-01 : f32
    %22 = vector.broadcast %cst_11 : f32 to vector<64x128xf32>
    %23 = arith.mulf %22, %10 : vector<64x128xf32>
    %24 = arith.addf %21, %23 : vector<64x128xf32>
    %25 = arith.truncf %16 : vector<64x128xf32> to vector<64x128xbf16>
    %c0_12 = arith.constant 0 : index
    %c0_13 = arith.constant 0 : index
    %c0_14 = arith.constant 0 : index
    %26 = vector.load %arg5[%c0_12, %c0_13, %c0_14] : memref<2x128x128xbf16, #tpu.memory_space<vmem>>, vector<1x128x128xbf16>
    %27 = vector.shape_cast %26 : vector<1x128x128xbf16> to vector<128x128xbf16>
    %cst_15 = arith.constant dense<0.000000e+00> : vector<64x128xf32>
    %28 = tpu.matmul %25, %27, %cst_15 {dimension_numbers = #tpu.dot_dimension_numbers<[1], [0], [0], [1], [0, 0, 1, 1], [], []>} : vector<64x128xbf16>, vector<128x128xbf16>, vector<64x128xf32> -> vector<64x128xf32>
    %29 = arith.truncf %24 : vector<64x128xf32> to vector<64x128xbf16>
    %c1 = arith.constant 1 : index
    %c0_16 = arith.constant 0 : index
    %c0_17 = arith.constant 0 : index
    %30 = vector.load %arg5[%c1, %c0_16, %c0_17] : memref<2x128x128xbf16, #tpu.memory_space<vmem>>, vector<1x128x128xbf16>
    %31 = vector.shape_cast %30 : vector<1x128x128xbf16> to vector<128x128xbf16>
    %cst_18 = arith.constant dense<0.000000e+00> : vector<64x128xf32>
    %32 = tpu.matmul %29, %31, %cst_18 {dimension_numbers = #tpu.dot_dimension_numbers<[1], [0], [0], [1], [0, 0, 1, 1], [], []>} : vector<64x128xbf16>, vector<128x128xbf16>, vector<64x128xf32> -> vector<64x128xf32>
    %33 = arith.addf %28, %32 : vector<64x128xf32>
    %c0_19 = arith.constant 0 : index
    %c0_20 = arith.constant 0 : index
    %34 = vector.load %arg6[%c0_19, %c0_20] : memref<1x128xf32, #tpu.memory_space<vmem>>, vector<1x128xf32>
    %35 = vector.broadcast %34 : vector<1x128xf32> to vector<64x128xf32>
    %36 = arith.addf %33, %35 : vector<64x128xf32>
    %c0_21 = arith.constant 0 : index
    %c0_22 = arith.constant 0 : index
    %c0_23 = arith.constant 0 : index
    %37 = vector.load %arg7[%c0_21, %c0_22, %c0_23] : memref<1x1x128xf32, #tpu.memory_space<vmem>>, vector<1x1x128xf32>
    %38 = vector.shape_cast %37 : vector<1x1x128xf32> to vector<1x128xf32>
    %39 = vector.broadcast %38 : vector<1x128xf32> to vector<64x128xf32>
    %40 = arith.addf %36, %39 : vector<64x128xf32>
    %41 = arith.truncf %40 : vector<64x128xf32> to vector<64x128xbf16>
    %c0_24 = arith.constant 0 : index
    %c0_25 = arith.constant 0 : index
    %c0_26 = arith.constant 0 : index
    %42 = vector.load %arg8[%c0_24, %c0_25, %c0_26] : memref<1x64x128xbf16, #tpu.memory_space<vmem>>, vector<1x64x128xbf16>
    %43 = vector.shape_cast %42 : vector<1x64x128xbf16> to vector<64x128xbf16>
    %44 = vector.shape_cast %41 : vector<64x128xbf16> to vector<1x64x128xbf16>
    tpu.vector_store %arg8[%c0_24, %c0_25, %c0_26], %44 {strides = array<i32>} : memref<1x64x128xbf16, #tpu.memory_space<vmem>>, vector<1x64x128xbf16>,
    %cst_27 = arith.constant dense<0.000000e+00> : vector<128xf32>
    %45 = vector.multi_reduction <add>, %40, %cst_27 [0] : vector<64x128xf32> to vector<128xf32>
    %46 = vector.shape_cast %45 : vector<128xf32> to vector<1x128xf32>
    %c0_28 = arith.constant 0 : index
    %c0_29 = arith.constant 0 : index
    %c0_30 = arith.constant 0 : index
    %c0_31 = arith.constant 0 : index
    %47 = vector.load %arg9[%c0_28, %c0_29, %c0_30, %c0_31] : memref<1x1x1x128xf32, #tpu.memory_space<vmem>>, vector<1x1x1x128xf32>
    %48 = vector.shape_cast %47 : vector<1x1x1x128xf32> to vector<1x128xf32>
    %49 = vector.shape_cast %46 : vector<1x128xf32> to vector<1x1x1x128xf32>
    tpu.vector_store %arg9[%c0_28, %c0_29, %c0_30, %c0_31], %49 {strides = array<i32>} : memref<1x1x1x128xf32, #tpu.memory_space<vmem>>, vector<1x1x1x128xf32>,
    %50 = arith.mulf %40, %40 : vector<64x128xf32>
    %cst_32 = arith.constant dense<0.000000e+00> : vector<128xf32>
    %51 = vector.multi_reduction <add>, %50, %cst_32 [0] : vector<64x128xf32> to vector<128xf32>
    %52 = vector.shape_cast %51 : vector<128xf32> to vector<1x128xf32>
    %c0_33 = arith.constant 0 : index
    %c0_34 = arith.constant 0 : index
    %c0_35 = arith.constant 0 : index
    %c0_36 = arith.constant 0 : index
    %53 = vector.load %arg10[%c0_33, %c0_34, %c0_35, %c0_36] : memref<1x1x1x128xf32, #tpu.memory_space<vmem>>, vector<1x1x1x128xf32>
    %54 = vector.shape_cast %53 : vector<1x1x1x128xf32> to vector<1x128xf32>
    %55 = vector.shape_cast %52 : vector<1x128xf32> to vector<1x1x1x128xf32>
    tpu.vector_store %arg10[%c0_33, %c0_34, %c0_35, %c0_36], %55 {strides = array<i32>} : memref<1x1x1x128xf32, #tpu.memory_space<vmem>>, vector<1x1x1x128xf32>,
    %cst_37 = arith.constant dense<0xFF800000> : vector<128xf32>
    %56 = vector.multi_reduction <maximumf>, %40, %cst_37 [0] : vector<64x128xf32> to vector<128xf32>
    %57 = vector.shape_cast %56 : vector<128xf32> to vector<1x128xf32>
    %c0_38 = arith.constant 0 : index
    %c0_39 = arith.constant 0 : index
    %c0_40 = arith.constant 0 : index
    %c0_41 = arith.constant 0 : index
    %58 = vector.load %arg11[%c0_38, %c0_39, %c0_40, %c0_41] : memref<1x1x1x128xf32, #tpu.memory_space<vmem>>, vector<1x1x1x128xf32>
    %59 = vector.shape_cast %58 : vector<1x1x1x128xf32> to vector<1x128xf32>
    %60 = vector.shape_cast %57 : vector<1x128xf32> to vector<1x1x1x128xf32>
    tpu.vector_store %arg11[%c0_38, %c0_39, %c0_40, %c0_41], %60 {strides = array<i32>} : memref<1x1x1x128xf32, #tpu.memory_space<vmem>>, vector<1x1x1x128xf32>,
    return
  }
  func.func @transform_0(%arg0: i32, %arg1: i32) -> (i32, i32, i32) {
    %c0_i32 = arith.constant 0 : i32
    %c0_i32_0 = arith.constant 0 : i32
    return %arg0, %arg1, %c0_i32 : i32, i32, i32
  }
  func.func @transform_1(%arg0: i32, %arg1: i32) -> (i32, i32) {
    %c0_i32 = arith.constant 0 : i32
    %c0_i32_0 = arith.constant 0 : i32
    %c0_i32_1 = arith.constant 0 : i32
    return %c0_i32, %c0_i32_0 : i32, i32
  }
  func.func @transform_2(%arg0: i32, %arg1: i32) -> (i32, i32) {
    %c0_i32 = arith.constant 0 : i32
    %c0_i32_0 = arith.constant 0 : i32
    %c0_i32_1 = arith.constant 0 : i32
    return %c0_i32, %c0_i32_0 : i32, i32
  }
  func.func @transform_3(%arg0: i32, %arg1: i32) -> (i32, i32, i32) {
    %c0_i32 = arith.constant 0 : i32
    %c0_i32_0 = arith.constant 0 : i32
    %c0_i32_1 = arith.constant 0 : i32
    %c0_i32_2 = arith.constant 0 : i32
    return %c0_i32, %c0_i32_0, %c0_i32_1 : i32, i32, i32
  }
  func.func @transform_4(%arg0: i32, %arg1: i32) -> (i32, i32) {
    %c0_i32 = arith.constant 0 : i32
    %c0_i32_0 = arith.constant 0 : i32
    %c0_i32_1 = arith.constant 0 : i32
    return %c0_i32, %c0_i32_0 : i32, i32
  }
  func.func @transform_5(%arg0: i32, %arg1: i32) -> (i32, i32, i32) {
    %c0_i32 = arith.constant 0 : i32
    %c0_i32_0 = arith.constant 0 : i32
    %c0_i32_1 = arith.constant 0 : i32
    return %arg0, %c0_i32, %c0_i32_0 : i32, i32, i32
  }
  func.func @transform_6(%arg0: i32, %arg1: i32) -> (i32, i32, i32) {
    %c0_i32 = arith.constant 0 : i32
    %c0_i32_0 = arith.constant 0 : i32
    return %arg0, %arg1, %c0_i32 : i32, i32, i32
  }
  func.func @transform_7(%arg0: i32, %arg1: i32) -> (i32, i32, i32, i32) {
    %c0_i32 = arith.constant 0 : i32
    %c0_i32_0 = arith.constant 0 : i32
    %c0_i32_1 = arith.constant 0 : i32
    return %arg0, %arg1, %c0_i32, %c0_i32_0 : i32, i32, i32, i32
  }
  func.func @transform_8(%arg0: i32, %arg1: i32) -> (i32, i32, i32, i32) {
    %c0_i32 = arith.constant 0 : i32
    %c0_i32_0 = arith.constant 0 : i32
    %c0_i32_1 = arith.constant 0 : i32
    return %arg0, %arg1, %c0_i32, %c0_i32_0 : i32, i32, i32, i32
  }
  func.func @transform_9(%arg0: i32, %arg1: i32) -> (i32, i32, i32, i32) {
    %c0_i32 = arith.constant 0 : i32
    %c0_i32_0 = arith.constant 0 : i32
    %c0_i32_1 = arith.constant 0 : i32
    return %arg0, %arg1, %c0_i32, %c0_i32_0 : i32, i32, i32, i32
  }
}

module attributes {stable_mosaic.version = 11 : i64} {
  func.func @kernel(%arg0: i32, %arg1: i32, %arg2: memref<1x64x128xbf16, #tpu.memory_space<vmem>>, %arg3: memref<1x128xf32, #tpu.memory_space<vmem>>, %arg4: memref<1x128xf32, #tpu.memory_space<vmem>>, %arg5: memref<2x128x128xbf16, #tpu.memory_space<vmem>>, %arg6: memref<1x128xf32, #tpu.memory_space<vmem>>, %arg7: memref<1x50x64xf32, #tpu.memory_space<vmem>>) attributes {dimension_semantics = [#tpu.dimension_semantics<parallel>, #tpu.dimension_semantics<parallel>], iteration_bounds = array<i64: 2, 1>, scalar_prefetch = 0 : i64, scratch_operands = 0 : i64, tpu.core_type = #tpu.core_type<tc>, window_params = [{transform_indices = @transform_0, window_bounds = array<i64: 1, 64, 128>}, {pipeline_mode = #tpu.pipeline_mode<synchronous>, transform_indices = @transform_1, window_bounds = array<i64: 1, 128>}, {pipeline_mode = #tpu.pipeline_mode<synchronous>, transform_indices = @transform_2, window_bounds = array<i64: 1, 128>}, {pipeline_mode = #tpu.pipeline_mode<synchronous>, transform_indices = @transform_3, window_bounds = array<i64: 2, 128, 128>}, {pipeline_mode = #tpu.pipeline_mode<synchronous>, transform_indices = @transform_4, window_bounds = array<i64: 1, 128>}, {transform_indices = @transform_5, window_bounds = array<i64: 1, 50, 64>}]} {
    %c0 = arith.constant 0 : index
    %c0_0 = arith.constant 0 : index
    %c0_1 = arith.constant 0 : index
    %0 = vector.load %arg2[%c0, %c0_0, %c0_1] : memref<1x64x128xbf16, #tpu.memory_space<vmem>>, vector<1x64x128xbf16>
    %1 = vector.shape_cast %0 : vector<1x64x128xbf16> to vector<64x128xbf16>
    %2 = arith.extf %1 : vector<64x128xbf16> to vector<64x128xf32>
    %c0_2 = arith.constant 0 : index
    %c0_3 = arith.constant 0 : index
    %3 = vector.load %arg3[%c0_2, %c0_3] : memref<1x128xf32, #tpu.memory_space<vmem>>, vector<1x128xf32>
    %c0_4 = arith.constant 0 : index
    %c0_5 = arith.constant 0 : index
    %4 = vector.load %arg4[%c0_4, %c0_5] : memref<1x128xf32, #tpu.memory_space<vmem>>, vector<1x128xf32>
    %5 = vector.broadcast %3 : vector<1x128xf32> to vector<64x128xf32>
    %6 = arith.subf %2, %5 : vector<64x128xf32>
    %7 = vector.broadcast %4 : vector<1x128xf32> to vector<64x128xf32>
    %8 = arith.mulf %6, %7 : vector<64x128xf32>
    %9 = math.tanh %8 : vector<64x128xf32>
    %cst = arith.constant 1.000000e+00 : f32
    %10 = vector.broadcast %cst : f32 to vector<64x128xf32>
    %cst_6 = arith.constant 1.000000e+00 : f32
    %11 = vector.broadcast %cst_6 : f32 to vector<64x128xf32>
    %12 = arith.mulf %11, %9 : vector<64x128xf32>
    %cst_7 = arith.constant 0.000000e+00 : f32
    %13 = vector.broadcast %cst_7 : f32 to vector<64x128xf32>
    %14 = arith.addf %13, %12 : vector<64x128xf32>
    %cst_8 = arith.constant 5.000000e-01 : f32
    %15 = vector.broadcast %cst_8 : f32 to vector<64x128xf32>
    %16 = arith.mulf %14, %15 : vector<64x128xf32>
    %cst_9 = arith.constant 1.500000e+00 : f32
    %17 = vector.broadcast %cst_9 : f32 to vector<64x128xf32>
    %18 = arith.mulf %17, %9 : vector<64x128xf32>
    %cst_10 = arith.constant 0.000000e+00 : f32
    %19 = vector.broadcast %cst_10 : f32 to vector<64x128xf32>
    %20 = arith.addf %18, %19 : vector<64x128xf32>
    %21 = arith.mulf %20, %16 : vector<64x128xf32>
    %cst_11 = arith.constant -3.750000e-01 : f32
    %22 = vector.broadcast %cst_11 : f32 to vector<64x128xf32>
    %23 = arith.mulf %22, %10 : vector<64x128xf32>
    %24 = arith.addf %21, %23 : vector<64x128xf32>
    %25 = arith.truncf %16 : vector<64x128xf32> to vector<64x128xbf16>
    %c0_12 = arith.constant 0 : index
    %c0_13 = arith.constant 0 : index
    %c0_14 = arith.constant 0 : index
    %26 = vector.load %arg5[%c0_12, %c0_13, %c0_14] : memref<2x128x128xbf16, #tpu.memory_space<vmem>>, vector<1x128x128xbf16>
    %27 = vector.shape_cast %26 : vector<1x128x128xbf16> to vector<128x128xbf16>
    %cst_15 = arith.constant dense<0.000000e+00> : vector<64x128xf32>
    %28 = tpu.matmul %25, %27, %cst_15 {dimension_numbers = #tpu.dot_dimension_numbers<[1], [0], [0], [1], [0, 0, 1, 1], [], []>} : vector<64x128xbf16>, vector<128x128xbf16>, vector<64x128xf32> -> vector<64x128xf32>
    %29 = arith.truncf %24 : vector<64x128xf32> to vector<64x128xbf16>
    %c1 = arith.constant 1 : index
    %c0_16 = arith.constant 0 : index
    %c0_17 = arith.constant 0 : index
    %30 = vector.load %arg5[%c1, %c0_16, %c0_17] : memref<2x128x128xbf16, #tpu.memory_space<vmem>>, vector<1x128x128xbf16>
    %31 = vector.shape_cast %30 : vector<1x128x128xbf16> to vector<128x128xbf16>
    %cst_18 = arith.constant dense<0.000000e+00> : vector<64x128xf32>
    %32 = tpu.matmul %29, %31, %cst_18 {dimension_numbers = #tpu.dot_dimension_numbers<[1], [0], [0], [1], [0, 0, 1, 1], [], []>} : vector<64x128xbf16>, vector<128x128xbf16>, vector<64x128xf32> -> vector<64x128xf32>
    %33 = arith.addf %28, %32 : vector<64x128xf32>
    %c0_19 = arith.constant 0 : index
    %c0_20 = arith.constant 0 : index
    %34 = vector.load %arg6[%c0_19, %c0_20] : memref<1x128xf32, #tpu.memory_space<vmem>>, vector<1x128xf32>
    %35 = vector.broadcast %34 : vector<1x128xf32> to vector<64x128xf32>
    %36 = arith.addf %33, %35 : vector<64x128xf32>
    %37 = tpu.transpose %36, [1, 0] : vector<64x128xf32> -> vector<128x64xf32>
    %38 = vector.extract_strided_slice %37 {offsets = [0, 0], sizes = [50, 64], strides = [1, 1]} : vector<128x64xf32> to vector<50x64xf32>
    %c0_21 = arith.constant 0 : index
    %c0_22 = arith.constant 0 : index
    %c0_23 = arith.constant 0 : index
    %39 = vector.load %arg7[%c0_21, %c0_22, %c0_23] : memref<1x50x64xf32, #tpu.memory_space<vmem>>, vector<1x50x64xf32>
    %40 = vector.shape_cast %39 : vector<1x50x64xf32> to vector<50x64xf32>
    %41 = vector.shape_cast %38 : vector<50x64xf32> to vector<1x50x64xf32>
    tpu.vector_store %arg7[%c0_21, %c0_22, %c0_23], %41 {strides = array<i32>} : memref<1x50x64xf32, #tpu.memory_space<vmem>>, vector<1x50x64xf32>,
    return
  }
  func.func @transform_0(%arg0: i32, %arg1: i32) -> (i32, i32, i32) {
    %c0_i32 = arith.constant 0 : i32
    %c0_i32_0 = arith.constant 0 : i32
    return %arg0, %arg1, %c0_i32 : i32, i32, i32
  }
  func.func @transform_1(%arg0: i32, %arg1: i32) -> (i32, i32) {
    %c0_i32 = arith.constant 0 : i32
    %c0_i32_0 = arith.constant 0 : i32
    %c0_i32_1 = arith.constant 0 : i32
    return %c0_i32, %c0_i32_0 : i32, i32
  }
  func.func @transform_2(%arg0: i32, %arg1: i32) -> (i32, i32) {
    %c0_i32 = arith.constant 0 : i32
    %c0_i32_0 = arith.constant 0 : i32
    %c0_i32_1 = arith.constant 0 : i32
    return %c0_i32, %c0_i32_0 : i32, i32
  }
  func.func @transform_3(%arg0: i32, %arg1: i32) -> (i32, i32, i32) {
    %c0_i32 = arith.constant 0 : i32
    %c0_i32_0 = arith.constant 0 : i32
    %c0_i32_1 = arith.constant 0 : i32
    %c0_i32_2 = arith.constant 0 : i32
    return %c0_i32, %c0_i32_0, %c0_i32_1 : i32, i32, i32
  }
  func.func @transform_4(%arg0: i32, %arg1: i32) -> (i32, i32) {
    %c0_i32 = arith.constant 0 : i32
    %c0_i32_0 = arith.constant 0 : i32
    %c0_i32_1 = arith.constant 0 : i32
    return %c0_i32, %c0_i32_0 : i32, i32
  }
  func.func @transform_5(%arg0: i32, %arg1: i32) -> (i32, i32, i32) {
    %c0_i32 = arith.constant 0 : i32
    %c0_i32_0 = arith.constant 0 : i32
    return %arg0, %c0_i32, %arg1 : i32, i32, i32
  }
}

</mosaic_0001>

<llo_original>
// kernel: pointnet_kan_forward.4
$region0: #{pointnet_kan_forward.4}
  #allocation0 [shape = 'u32[]', space=smem, size = 0x4, offset = 0x4, fixed_abs, tag = 'smem constant byte address 0x4 - core index']
  #allocation1 [shape = 'u32[144,128]{1,0:T(1,128)}', space=vmem, size = 0x12000, scoped, tag = 'internal scratch']
  %s0 = inlined_call_operand.vmem [shape: f32[2,64,3], index: 0, kind: input, shape index: {}]
  %s1 = inlined_call_operand.vmem [shape: f32[1,3], index: 1, kind: input, shape index: {}]
  %s2 = inlined_call_operand.vmem [shape: f32[1,3], index: 2, kind: input, shape index: {}]
  %s3 = inlined_call_operand.vmem [shape: bf16[2,3,128], index: 3, kind: input, shape index: {}]
  %s4 = inlined_call_operand.vmem [shape: f32[1,128], index: 4, kind: input, shape index: {}]
  %s5 = inlined_call_operand.vmem [shape: bf16[2,64,128], index: 5, kind: output, shape index: {0}]
  %s6 = inlined_call_operand.vmem [shape: f32[2,1,1,128], index: 6, kind: output, shape index: {1}]
  %s7 = inlined_call_operand.vmem [shape: f32[2,1,1,128], index: 7, kind: output, shape index: {2}]
  %s8 = inlined_call_operand.hbm [shape: f32[2,1,1,128], index: 8, kind: output, shape index: {3}]
  %9 = xla_tuple %s5, %s6, %s7, %s8
  %s10 = sld [smem:[#allocation0]]
  $region77: #{pointnet_kan_forward.4} parent=0
    _
  %s12 = ssub.s32 1, %s10
  %s13 = scalar_select 0, %s12, %s10
  $region1: #{pointnet_kan_forward.4} parent=0
    #allocation2 [shape = 'u8[1024]{0}', space=vmem, size = 0x400, scoped, tag = 'output window, operand 3']
    #allocation3 [shape = 's32[2]{0}', space=sflag, size = 0x8, scoped, tag = 'scoped memory for pointnet_kan_forward.4']
    %14 = vsyncpa [#allocation3], 0
    %s15 = scalar_lea.sflag [#allocation3], 1
    %16 = vsyncpa %s15, 0
    loop: start=0, step=1, limit=4
    $region2: #{pointnet_kan_forward.4} parent=1 // loop_pre_header
      _
    $region3: #{pointnet_kan_forward.4} parent=1 // loop_header
      %s18 = sphi 0, %s22
      %p19 = scmp.ge.s32.totalorder %s18, 4
      %s25 = sphi 0, %s37
      %s26 = sphi 0, %s33
      %s27 = sphi 0, %s25
      %s28 = sphi 0, %s26
      %s29 = sphi 0, %s27
      %s30 = sphi 0, %s28
      %s42 = sphi 0, %s44
      %s45 = sphi 0, %s42
      %s46 = sphi 0, %s45
      %s62 = sphi 0, %s46
      %s66 = sphi 0, %s66
      %s68 = sphi 0, %s66
      %s69 = sphi 0, %s68
      %s83 = sphi 0, %s69
      %s87 = sphi 0, %s87
      %s89 = sphi 0, %s87
      %s90 = sphi 0, %s89
      %s104 = sphi 0, %s90
      %s108 = sphi 0, %s108
      %s110 = sphi 0, %s108
      %s111 = sphi 0, %s110
      %s125 = sphi 0, %s111
      %s129 = sphi 0, %s129
      %s131 = sphi 0, %s129
      %s132 = sphi 0, %s131
      %s146 = sphi 0, %s132
      %s154 = sphi 0, %s156
      %s157 = sphi 0, %s154
      %s158 = sphi 0, %s157
      %s174 = sphi 0, %s158
      %s182 = sphi 0, %s184
      %s185 = sphi 0, %s182
      %s186 = sphi 0, %s185
      %s202 = sphi 0, %s186
      %s210 = sphi 0, %s212
      %s213 = sphi 0, %s210
      %s214 = sphi 0, %s213
      %s230 = sphi 0, %s214
      %s238 = sphi 0, %s240
      %s241 = sphi 0, %s238
      %s242 = sphi 0, %s241
      %s258 = sphi 0, %s242
    $region4: #{pointnet_kan_forward.4} parent=1 // loop_header_branch
      %21 = sbr.rel (%p19) target = $region8
    $region5: #{pointnet_kan_forward.4} parent=1 // loop_body
      %s23 = ssub.s32 %s18, 1
      %s24 = ssub.s32 %s18, 2
      %s31 = sadd.s32 1, %s26
      %p32 = scmp.ge.s32.totalorder %s31, 1
      %s33 = scalar_select %p32, 0, %s31
      %s34 = sadd.s32 1, %s25
      %s35 = scalar_select %p32, %s34, %s25
      %p36 = scmp.ge.s32.totalorder %s35, 2
      %s37 = scalar_select %p36, 0, %s35
      %s38 = ssub.s32 %s25, %s37
      %s39 = ssub.s32 %s26, %s33
      %s40 = sor.u32 %s38, %s39
      %p41 = scmp.eq.s32.totalorder %s40, 0
      %s43 = sadd.s32 %s42, 1
      %s44 = scalar_select %p41, %s42, %s43
      %p47 = pneg %p41
      %p48 = scmp.eq.s32.totalorder %s18, 1
      %p49 = por %p47, %p48
      %p50 = scmp.ne.s32.totalorder %s42, %s45
      %p51 = scmp.eq.s32.totalorder %s18, 0
      %p52 = por %p50, %p51
      %p53 = scmp.ne.s32.totalorder %s42, %s45
      %p54 = scmp.eq.s32.totalorder %s23, 1
      %p55 = por %p53, %p54
      %p56 = scmp.ne.s32.totalorder %s45, %s46
      %p57 = scmp.eq.s32.totalorder %s23, 0
      %p58 = por %p56, %p57
      %p59 = scmp.ne.s32.totalorder %s45, %s46
      %p60 = scmp.eq.s32.totalorder %s24, 1
      %p61 = por %p59, %p60
      %p63 = scmp.ne.s32.totalorder %s46, %s62
      %p64 = scmp.eq.s32.totalorder %s24, 0
      %p65 = por %p63, %p64
      %s67 = sadd.s32 %s66, 1
      %p70 = scmp.eq.s32.totalorder %s18, 1
      %p71 = scmp.ne.s32.totalorder %s66, %s68
      %p72 = scmp.eq.s32.totalorder %s18, 0
      %p73 = por %p71, %p72
      %p74 = scmp.ne.s32.totalorder %s66, %s68
      %p75 = scmp.eq.s32.totalorder %s23, 1
      %p76 = por %p74, %p75
      %p77 = scmp.ne.s32.totalorder %s68, %s69
      %p78 = scmp.eq.s32.totalorder %s23, 0
      %p79 = por %p77, %p78
      %p80 = scmp.ne.s32.totalorder %s68, %s69
      %p81 = scmp.eq.s32.totalorder %s24, 1
      %p82 = por %p80, %p81
      %p84 = scmp.ne.s32.totalorder %s69, %s83
      %p85 = scmp.eq.s32.totalorder %s24, 0
      %p86 = por %p84, %p85
      %s88 = sadd.s32 %s87, 1
      %p91 = scmp.eq.s32.totalorder %s18, 1
      %p92 = scmp.ne.s32.totalorder %s87, %s89
      %p93 = scmp.eq.s32.totalorder %s18, 0
      %p94 = por %p92, %p93
      %p95 = scmp.ne.s32.totalorder %s87, %s89
      %p96 = scmp.eq.s32.totalorder %s23, 1
      %p97 = por %p95, %p96
      %p98 = scmp.ne.s32.totalorder %s89, %s90
      %p99 = scmp.eq.s32.totalorder %s23, 0
      %p100 = por %p98, %p99
      %p101 = scmp.ne.s32.totalorder %s89, %s90
      %p102 = scmp.eq.s32.totalorder %s24, 1
      %p103 = por %p101, %p102
      %p105 = scmp.ne.s32.totalorder %s90, %s104
      %p106 = scmp.eq.s32.totalorder %s24, 0
      %p107 = por %p105, %p106
      %s109 = sadd.s32 %s108, 1
      %p112 = scmp.eq.s32.totalorder %s18, 1
      %p113 = scmp.ne.s32.totalorder %s108, %s110
      %p114 = scmp.eq.s32.totalorder %s18, 0
      %p115 = por %p113, %p114
      %p116 = scmp.ne.s32.totalorder %s108, %s110
      %p117 = scmp.eq.s32.totalorder %s23, 1
      %p118 = por %p116, %p117
      %p119 = scmp.ne.s32.totalorder %s110, %s111
      %p120 = scmp.eq.s32.totalorder %s23, 0
      %p121 = por %p119, %p120
      %p122 = scmp.ne.s32.totalorder %s110, %s111
      %p123 = scmp.eq.s32.totalorder %s24, 1
      %p124 = por %p122, %p123
      %p126 = scmp.ne.s32.totalorder %s111, %s125
      %p127 = scmp.eq.s32.totalorder %s24, 0
      %p128 = por %p126, %p127
      %s130 = sadd.s32 %s129, 1
      %p133 = scmp.eq.s32.totalorder %s18, 1
      %p134 = scmp.ne.s32.totalorder %s129, %s131
      %p135 = scmp.eq.s32.totalorder %s18, 0
      %p136 = por %p134, %p135
      %p137 = scmp.ne.s32.totalorder %s129, %s131
      %p138 = scmp.eq.s32.totalorder %s23, 1
      %p139 = por %p137, %p138
      %p140 = scmp.ne.s32.totalorder %s131, %s132
      %p141 = scmp.eq.s32.totalorder %s23, 0
      %p142 = por %p140, %p141
      %p143 = scmp.ne.s32.totalorder %s131, %s132
      %p144 = scmp.eq.s32.totalorder %s24, 1
      %p145 = por %p143, %p144
      %p147 = scmp.ne.s32.totalorder %s132, %s146
      %p148 = scmp.eq.s32.totalorder %s24, 0
      %p149 = por %p147, %p148
      %s150 = ssub.s32 %s25, %s37
      %s151 = ssub.s32 %s26, %s33
      %s152 = sor.u32 %s150, %s151
      %p153 = scmp.eq.s32.totalorder %s152, 0
      %s155 = sadd.s32 %s154, 1
      %s156 = scalar_select %p153, %s154, %s155
      %p159 = pneg %p153
      %p160 = scmp.eq.s32.totalorder %s18, 1
      %p161 = por %p159, %p160
      %p162 = scmp.ne.s32.totalorder %s154, %s157
      %p163 = scmp.eq.s32.totalorder %s18, 0
      %p164 = por %p162, %p163
      %p165 = scmp.ne.s32.totalorder %s154, %s157
      %p166 = scmp.eq.s32.totalorder %s23, 1
      %p167 = por %p165, %p166
      %p168 = scmp.ne.s32.totalorder %s157, %s158
      %p169 = scmp.eq.s32.totalorder %s23, 0
      %p170 = por %p168, %p169
      %p171 = scmp.ne.s32.totalorder %s157, %s158
      %p172 = scmp.eq.s32.totalorder %s24, 1
      %p173 = por %p171, %p172
      %p175 = scmp.ne.s32.totalorder %s158, %s174
      %p176 = scmp.eq.s32.totalorder %s24, 0
      %p177 = por %p175, %p176
      %s178 = ssub.s32 %s25, %s37
      %s179 = ssub.s32 %s26, %s33
      %s180 = sor.u32 %s178, %s179
      %p181 = scmp.eq.s32.totalorder %s180, 0
      %s183 = sadd.s32 %s182, 1
      %s184 = scalar_select %p181, %s182, %s183
      %p187 = pneg %p181
      %p188 = scmp.eq.s32.totalorder %s18, 1
      %p189 = por %p187, %p188
      %p190 = scmp.ne.s32.totalorder %s182, %s185
      %p191 = scmp.eq.s32.totalorder %s18, 0
      %p192 = por %p190, %p191
      %p193 = scmp.ne.s32.totalorder %s182, %s185
      %p194 = scmp.eq.s32.totalorder %s23, 1
      %p195 = por %p193, %p194
      %p196 = scmp.ne.s32.totalorder %s185, %s186
      %p197 = scmp.eq.s32.totalorder %s23, 0
      %p198 = por %p196, %p197
      %p199 = scmp.ne.s32.totalorder %s185, %s186
      %p200 = scmp.eq.s32.totalorder %s24, 1
      %p201 = por %p199, %p200
      %p203 = scmp.ne.s32.totalorder %s186, %s202
      %p204 = scmp.eq.s32.totalorder %s24, 0
      %p205 = por %p203, %p204
      %s206 = ssub.s32 %s25, %s37
      %s207 = ssub.s32 %s26, %s33
      %s208 = sor.u32 %s206, %s207
      %p209 = scmp.eq.s32.totalorder %s208, 0
      %s211 = sadd.s32 %s210, 1
      %s212 = scalar_select %p209, %s210, %s211
      %p215 = pneg %p209
      %p216 = scmp.eq.s32.totalorder %s18, 1
      %p217 = por %p215, %p216
      %p218 = scmp.ne.s32.totalorder %s210, %s213
      %p219 = scmp.eq.s32.totalorder %s18, 0
      %p220 = por %p218, %p219
      %p221 = scmp.ne.s32.totalorder %s210, %s213
      %p222 = scmp.eq.s32.totalorder %s23, 1
      %p223 = por %p221, %p222
      %p224 = scmp.ne.s32.totalorder %s213, %s214
      %p225 = scmp.eq.s32.totalorder %s23, 0
      %p226 = por %p224, %p225
      %p227 = scmp.ne.s32.totalorder %s213, %s214
      %p228 = scmp.eq.s32.totalorder %s24, 1
      %p229 = por %p227, %p228
      %p231 = scmp.ne.s32.totalorder %s214, %s230
      %p232 = scmp.eq.s32.totalorder %s24, 0
      %p233 = por %p231, %p232
      %s234 = ssub.s32 %s25, %s37
      %s235 = ssub.s32 %s26, %s33
      %s236 = sor.u32 %s234, %s235
      %p237 = scmp.eq.s32.totalorder %s236, 0
      %s239 = sadd.s32 %s238, 1
      %s240 = scalar_select %p237, %s238, %s239
      %p243 = pneg %p237
      %p244 = scmp.eq.s32.totalorder %s18, 1
      %p245 = por %p243, %p244
      %p246 = scmp.ne.s32.totalorder %s238, %s241
      %p247 = scmp.eq.s32.totalorder %s18, 0
      %p248 = por %p246, %p247
      %p249 = scmp.ne.s32.totalorder %s238, %s241
      %p250 = scmp.eq.s32.totalorder %s23, 1
      %p251 = por %p249, %p250
      %p252 = scmp.ne.s32.totalorder %s241, %s242
      %p253 = scmp.eq.s32.totalorder %s23, 0
      %p254 = por %p252, %p253
      %p255 = scmp.ne.s32.totalorder %s241, %s242
      %p256 = scmp.eq.s32.totalorder %s24, 1
      %p257 = por %p255, %p256
      %p259 = scmp.ne.s32.totalorder %s242, %s258
      %p260 = scmp.eq.s32.totalorder %s24, 0
      %p261 = por %p259, %p260
      %p262 = scmp.le.s32.totalorder 1, %s18
      %p263 = scmp.lt.s32.totalorder %s18, 3
      %p264 = pnand %p262, %p263
      %p265 = pneg %p264
      // Predicated region
      $region9: #{pointnet_kan_forward.4} parent=5 // pred_check
        _
      $region10: #{pointnet_kan_forward.4} parent=5 // pred_check_branch
        %267 = sbr.rel (%p264) target = $region12
      $region11: #{pointnet_kan_forward.4} parent=5 // pred_region
        %s268 = ssub.s32 %s18, 1
        // Predicated region
        $region13: #{pointnet_kan_forward.4} parent=11 // pred_check
          %p269 = pneg %p79
        $region14: #{pointnet_kan_forward.4} parent=11 // pred_check_branch
          %271 = sbr.rel (%p269) target = $region16
        $region15: #{pointnet_kan_forward.4} parent=11 // pred_region
          _
        $region16: #{pointnet_kan_forward.4} parent=11 // pred_fallthru
          _
        // Predicated region
        $region17: #{pointnet_kan_forward.4} parent=11 // pred_check
          %p272 = pneg %p100
        $region18: #{pointnet_kan_forward.4} parent=11 // pred_check_branch
          %274 = sbr.rel (%p272) target = $region20
        $region19: #{pointnet_kan_forward.4} parent=11 // pred_region
          _
        $region20: #{pointnet_kan_forward.4} parent=11 // pred_fallthru
          _
        // Predicated region
        $region21: #{pointnet_kan_forward.4} parent=11 // pred_check
          %p275 = pneg %p121
        $region22: #{pointnet_kan_forward.4} parent=11 // pred_check_branch
          %277 = sbr.rel (%p275) target = $region24
        $region23: #{pointnet_kan_forward.4} parent=11 // pred_region
          _
        $region24: #{pointnet_kan_forward.4} parent=11 // pred_fallthru
          _
        // Predicated region
        $region25: #{pointnet_kan_forward.4} parent=11 // pred_check
          %p278 = pneg %p142
        $region26: #{pointnet_kan_forward.4} parent=11 // pred_check_branch
          %280 = sbr.rel (%p278) target = $region28
        $region27: #{pointnet_kan_forward.4} parent=11 // pred_region
          _
        $region28: #{pointnet_kan_forward.4} parent=11 // pred_fallthru
          _
      $region12: #{pointnet_kan_forward.4} parent=5 // pred_fallthru
        _
      %p281 = scmp.lt.s32.totalorder %s18, 2
      // Predicated region
      $region29: #{pointnet_kan_forward.4} parent=5 // pred_check
        %p282 = pneg %p281
      $region30: #{pointnet_kan_forward.4} parent=5 // pred_check_branch
        %284 = sbr.rel (%p282) target = $region32
      $region31: #{pointnet_kan_forward.4} parent=5 // pred_region
        // Predicated region
        $region33: #{pointnet_kan_forward.4} parent=31 // pred_check
          %p285 = pneg %p52
        $region34: #{pointnet_kan_forward.4} parent=31 // pred_check_branch
          %287 = sbr.rel (%p285) target = $region36
        $region35: #{pointnet_kan_forward.4} parent=31 // pred_region
          %s288 = smul.u32 8, %s26
          %p289 = scmp.lt.s32.totalorder %s25, 1
          %s290 = scalar_select %p289, %s25, 1
          %p291 = scmp.lt.s32.totalorder %s288, 7
          %s292 = scalar_select %p291, %s288, 7
          %s293 = smul.addr %s290, 8
          %s294 = sadd.s32 %s292, %s293
          %s295 = smul.addr %s294, 8
          %s296 = scalar_lea.vmem %s0, %s295
          %s297 = smul.u32 8, %s26
        $region36: #{pointnet_kan_forward.4} parent=31 // pred_fallthru
          _
      $region32: #{pointnet_kan_forward.4} parent=5 // pred_fallthru
        _
      %p298 = scmp.le.s32.totalorder 1, %s18
      %p299 = scmp.lt.s32.totalorder %s18, 3
      %p300 = pnand %p298, %p299
      %p301 = pneg %p300
      // Predicated region
      $region37: #{pointnet_kan_forward.4} parent=5 // pred_check
        _
      $region38: #{pointnet_kan_forward.4} parent=5 // pred_check_branch
        %303 = sbr.rel (%p300) target = $region40
      $region39: #{pointnet_kan_forward.4} parent=5 // pred_region
        %s304 = ssub.s32 %s18, 1
        %s305 = smul.u32 8, %s28
        %p306 = scmp.lt.s32.totalorder %s27, 1
        %s307 = scalar_select %p306, %s27, 1
        %p308 = scmp.lt.s32.totalorder %s305, 7
        %s309 = scalar_select %p308, %s305, 7
        %s310 = smul.addr %s307, 8
        %s311 = sadd.s32 %s309, %s310
        %s312 = smul.addr %s311, 8
        %s313 = scalar_lea.vmem %s0, %s312
        %p314 = pneg %p58
        %p315 = pneg %p55
        %p316 = pneg %p79
        %p317 = pneg %p76
        %p318 = pneg %p100
        %p319 = pneg %p97
        %p320 = pneg %p121
        %p321 = pneg %p118
        %p322 = pneg %p142
        %p323 = pneg %p139
        %p324 = pneg %p170
        %p325 = pneg %p167
        %s326 = smul.u32 8, %s28
        %p327 = scmp.lt.s32.totalorder %s27, 1
        %s328 = scalar_select %p327, %s27, 1
        %p329 = scmp.lt.s32.totalorder %s326, 7
        %s330 = scalar_select %p329, %s326, 7
        %s331 = smul.addr %s328, 8
        %s332 = sadd.s32 %s330, %s331
        %s333 = smul.addr %s332, 4
        %s334 = scalar_lea.vmem %s5, %s333
        %p335 = pneg %p198
        %p336 = pneg %p195
        %p337 = scmp.lt.s32.totalorder %s27, 1
        %s338 = scalar_select %p337, %s27, 1
        %p339 = scmp.lt.s32.totalorder %s28, 0
        %s340 = scalar_select %p339, %s28, 0
        %s341 = sadd.s32 %s340, %s338
        %s342 = scalar_lea.vmem %s6, %s341
        %p343 = pneg %p226
        %p344 = pneg %p223
        %p345 = scmp.lt.s32.totalorder %s27, 1
        %s346 = scalar_select %p345, %s27, 1
        %p347 = scmp.lt.s32.totalorder %s28, 0
        %s348 = scalar_select %p347, %s28, 0
        %s349 = sadd.s32 %s348, %s346
        %s350 = scalar_lea.vmem %s7, %s349
        %p351 = pneg %p254
        %p352 = pneg %p251
        %s353 = sand.u32 %s241, 1
        %s354 = scalar_lea.sflag [#allocation3], %s353
        %s355 = sand.u32 %s241, 1
        %s356 = scalar_lea.vmem [#allocation2], %s355
        %s357 = smul.u32 8, %s28
        %p358 = scmp.lt.s32.totalorder %s27, 1
        %s359 = scalar_select %p358, %s27, 1
        %p360 = scmp.lt.s32.totalorder %s357, 7
        %s361 = scalar_select %p360, %s357, 7
        %s362 = smul.addr %s359, 8
        %s363 = sadd.s32 %s361, %s362
        %s364 = smul.addr %s363, 8
        %s365 = scalar_lea.vmem %s0, %s364
        %s366 = smul.u32 8, %s28
        %s367 = smul.u32 8, %s28
        %p368 = scmp.lt.s32.totalorder %s27, 1
        %s369 = scalar_select %p368, %s27, 1
        %p370 = scmp.lt.s32.totalorder %s367, 7
        %s371 = scalar_select %p370, %s367, 7
        %s372 = smul.addr %s369, 8
        %s373 = sadd.s32 %s371, %s372
        %s374 = smul.addr %s373, 4
        %s375 = scalar_lea.vmem %s5, %s374
        %s376 = smul.u32 8, %s28
        %p377 = scmp.lt.s32.totalorder %s27, 1
        %s378 = scalar_select %p377, %s27, 1
        %p379 = scmp.lt.s32.totalorder %s28, 0
        %s380 = scalar_select %p379, %s28, 0
        %s381 = sadd.s32 %s380, %s378
        %s382 = scalar_lea.vmem %s6, %s381
        %p383 = scmp.lt.s32.totalorder %s27, 1
        %s384 = scalar_select %p383, %s27, 1
        %p385 = scmp.lt.s32.totalorder %s28, 0
        %s386 = scalar_select %p385, %s28, 0
        %s387 = sadd.s32 %s386, %s384
        %s388 = scalar_lea.vmem %s7, %s387
        %v390 = vld [vmem:[%s365] sm:$0xff]
        %v391 = vld [vmem:[%s365 + $0x8] sm:$0xff]
        %v392 = vld [vmem:[%s365 + $0x10] sm:$0xff]
        %v393 = vld [vmem:[%s365 + $0x18] sm:$0xff]
        %v394 = vld [vmem:[%s365 + $0x20] sm:$0xff]
        %v395 = vld [vmem:[%s365 + $0x28] sm:$0xff]
        %v396 = vld [vmem:[%s365 + $0x30] sm:$0xff]
        %v397 = vld [vmem:[%s365 + $0x38] sm:$0xff]
        %v398 = vld [vmem:[%s1] sm:$0x1]
        %v399 = vld [vmem:[%s2] sm:$0x1]
        %v401 = vlaneseq
        %v402 = vshrl.u32 %v401, 7
        %v403 = vsub.s32 0, %v402
        %v404 = vrot.slane %v398, %v403
        %v406 = vsub.f32 %v390, %v404
        %v407 = vsub.f32 %v391, %v404
        %v408 = vsub.f32 %v392, %v404
        %v409 = vsub.f32 %v393, %v404
        %v410 = vsub.f32 %v394, %v404
        %v411 = vsub.f32 %v395, %v404
        %v412 = vsub.f32 %v396, %v404
        %v413 = vsub.f32 %v397, %v404
        %v415 = vlaneseq
        %v416 = vshrl.u32 %v415, 7
        %v417 = vsub.s32 0, %v416
        %v418 = vrot.slane %v399, %v417
        %v420 = vmul.f32 %v406, %v418
        %v421 = vmul.f32 %v407, %v418
        %v422 = vmul.f32 %v408, %v418
        %v423 = vmul.f32 %v409, %v418
        %v424 = vmul.f32 %v410, %v418
        %v425 = vmul.f32 %v411, %v418
        %v426 = vmul.f32 %v412, %v418
        %v427 = vmul.f32 %v413, %v418
        %v428 = vtanh.pop %v420
        %v429 = vtanh.pop %v421
        %v430 = vtanh.pop %v422
        %v431 = vtanh.pop %v423
        %v432 = vtanh.pop %v424
        %v433 = vtanh.pop %v425
        %v434 = vtanh.pop %v426
        %v435 = vtanh.pop %v427
        %v436 = vadd.f32 %v428, 0.0
        %v437 = vadd.f32 %v429, 0.0
        %v438 = vadd.f32 %v430, 0.0
        %v439 = vadd.f32 %v431, 0.0
        %v440 = vadd.f32 %v432, 0.0
        %v441 = vadd.f32 %v433, 0.0
        %v442 = vadd.f32 %v434, 0.0
        %v443 = vadd.f32 %v435, 0.0
        %v444 = vmul.f32 %v436, 0.5
        %v445 = vmul.f32 %v437, 0.5
        %v446 = vmul.f32 %v438, 0.5
        %v447 = vmul.f32 %v439, 0.5
        %v448 = vmul.f32 %v440, 0.5
        %v449 = vmul.f32 %v441, 0.5
        %v450 = vmul.f32 %v442, 0.5
        %v451 = vmul.f32 %v443, 0.5
        %v452 = vmul.f32 %v428, 1.5
        %v453 = vmul.f32 %v429, 1.5
        %v454 = vmul.f32 %v430, 1.5
        %v455 = vmul.f32 %v431, 1.5
        %v456 = vmul.f32 %v432, 1.5
        %v457 = vmul.f32 %v433, 1.5
        %v458 = vmul.f32 %v434, 1.5
        %v459 = vmul.f32 %v435, 1.5
        %v460 = vadd.f32 %v452, 0.0
        %v461 = vadd.f32 %v453, 0.0
        %v462 = vadd.f32 %v454, 0.0
        %v463 = vadd.f32 %v455, 0.0
        %v464 = vadd.f32 %v456, 0.0
        %v465 = vadd.f32 %v457, 0.0
        %v466 = vadd.f32 %v458, 0.0
        %v467 = vadd.f32 %v459, 0.0
        %v468 = vmul.f32 %v460, %v444
        %v469 = vmul.f32 %v461, %v445
        %v470 = vmul.f32 %v462, %v446
        %v471 = vmul.f32 %v463, %v447
        %v472 = vmul.f32 %v464, %v448
        %v473 = vmul.f32 %v465, %v449
        %v474 = vmul.f32 %v466, %v450
        %v475 = vmul.f32 %v467, %v451
        %v476 = vadd.f32 %v468, -0.375
        %v477 = vadd.f32 %v469, -0.375
        %v478 = vadd.f32 %v470, -0.375
        %v479 = vadd.f32 %v471, -0.375
        %v480 = vadd.f32 %v472, -0.375
        %v481 = vadd.f32 %v473, -0.375
        %v482 = vadd.f32 %v474, -0.375
        %v483 = vadd.f32 %v475, -0.375
        %v484 = vpack.c.bf16 %v445, %v444
        %v485 = vpack.c.bf16 %v447, %v446
        %v486 = vpack.c.bf16 %v449, %v448
        %v487 = vpack.c.bf16 %v451, %v450
        %v488 = vld [vmem:[%s3] sm:$0x3]
        %v489 = vpack.c.bf16 %v477, %v476
        %v490 = vpack.c.bf16 %v479, %v478
        %v491 = vpack.c.bf16 %v481, %v480
        %v492 = vpack.c.bf16 %v483, %v482
        %s493 = scalar_lea.vmem %s3, 2
        %v494 = vld [vmem:[%s493] sm:$0x3]
        %vm495 = vcmask 23552
        %v497 = vsel %vm495, %v489, 0
        %v500 = vsel %vm495, %v490, 0
        %v503 = vsel %vm495, %v491, 0
        %v506 = vsel %vm495, %v492, 0
        %vm508 = vcmask 1040384
        %vm509 = vcmask 1041408
        %v510 = vsel %vm508, 4294967295, 65535
        %v511 = vsel %vm509, %v510, 0
        %v513 = vand.u32 %v494, %v511
        %515 = vmatprep.subr.bf16.mxu0 0
        %516 = vmatpush1.bf16.msra.mxu0 %v513
        %517 = vmatprep.subr.bf16.mxu0 0
        %518 = vmatpush1.bf16.msra.mxu0 0
        %519 = vmatprep.subr.bf16.mxu0 0
        %520 = vmatpush1.bf16.msra.mxu0 0
        %521 = vmatprep.subr.bf16.mxu0 0
        %522 = vmatpush1.bf16.msra.mxu0 0
        %523 = vmatprep.subr.bf16.mxu0 0
        %524 = vmatpush1.bf16.msra.mxu0 0
        %525 = vmatprep.subr.bf16.mxu0 0
        %526 = vmatpush1.bf16.msra.mxu0 0
        %527 = vmatprep.subr.bf16.mxu0 0
        %528 = vmatpush1.bf16.msra.mxu0 0
        %529 = vmatprep.subr.bf16.mxu0 0
        %530 = vmatpush1.bf16.msra.mxu0 0
        %531 = vmatprep.subr.bf16.mxu0 0
        %532 = vmatpush1.bf16.msra.mxu0 0
        %533 = vmatprep.subr.bf16.mxu0 0
        %534 = vmatpush1.bf16.msra.mxu0 0
        %535 = vmatprep.subr.bf16.mxu0 0
        %536 = vmatpush1.bf16.msra.mxu0 0
        %537 = vmatprep.subr.bf16.mxu0 0
        %538 = vmatpush1.bf16.msra.mxu0 0
        %539 = vmatprep.subr.bf16.mxu0 0
        %540 = vmatpush1.bf16.msra.mxu0 0
        %541 = vmatprep.subr.bf16.mxu0 0
        %542 = vmatpush1.bf16.msra.mxu0 0
        %543 = vmatprep.subr.bf16.mxu0 0
        %544 = vmatpush1.bf16.msra.mxu0 0
        %545 = vmatprep.subr.bf16.mxu0 0
        %546 = vmatpush1.bf16.msra.mxu0 0
        %547 = vmatprep.mubr.bf16.mxu0 0
        %548 = vmatmul.mubr.bf16.gmra.mrb[0].mxu0 %v497
        %v549 = vpop.f32.mrb[0].mxu0
        %v550 = vadd.f32 0.0, %v549
        %v551 = vpop.f32.mrb[0].mxu0
        %v552 = vpop.f32.mrb[0].mxu0
        %v553 = vadd.f32 0.0, %v552
        %v554 = vpop.f32.mrb[0].mxu0
        %555 = vmatprep.mubr.bf16.mxu0 0
        %556 = vmatmul.mubr.bf16.gmra.mrb[0].mxu0 %v500
        %v557 = vpop.f32.mrb[0].mxu0
        %v558 = vadd.f32 0.0, %v557
        %v559 = vpop.f32.mrb[0].mxu0
        %v560 = vpop.f32.mrb[0].mxu0
        %v561 = vadd.f32 0.0, %v560
        %v562 = vpop.f32.mrb[0].mxu0
        %563 = vmatprep.mubr.bf16.mxu0 0
        %564 = vmatmul.mubr.bf16.gmra.mrb[0].mxu0 %v503
        %v565 = vpop.f32.mrb[0].mxu0
        %v566 = vadd.f32 0.0, %v565
        %v567 = vpop.f32.mrb[0].mxu0
        %v568 = vpop.f32.mrb[0].mxu0
        %v569 = vadd.f32 0.0, %v568
        %v570 = vpop.f32.mrb[0].mxu0
        %571 = vmatprep.mubr.bf16.mxu0 0
        %572 = vmatmul.mubr.bf16.gmra.mrb[0].mxu0 %v506
        %v573 = vpop.f32.mrb[0].mxu0
        %v574 = vadd.f32 0.0, %v573
        %v575 = vpop.f32.mrb[0].mxu0
        %v576 = vpop.f32.mrb[0].mxu0
        %v577 = vadd.f32 0.0, %v576
        %v578 = vpop.f32.mrb[0].mxu0
        %579 = vdwg.mxu0
        %v581 = vsel %vm495, %v484, 0
        %v584 = vsel %vm495, %v485, 0
        %v587 = vsel %vm495, %v486, 0
        %v590 = vsel %vm495, %v487, 0
        %v593 = vand.u32 %v488, %v511
        %595 = vmatprep.subr.bf16.mxu0 0
        %596 = vmatpush1.bf16.msra.mxu0 %v593
        %597 = vmatprep.subr.bf16.mxu0 0
        %598 = vmatpush1.bf16.msra.mxu0 0
        %599 = vmatprep.subr.bf16.mxu0 0
        %600 = vmatpush1.bf16.msra.mxu0 0
        %601 = vmatprep.subr.bf16.mxu0 0
        %602 = vmatpush1.bf16.msra.mxu0 0
        %603 = vmatprep.subr.bf16.mxu0 0
        %604 = vmatpush1.bf16.msra.mxu0 0
        %605 = vmatprep.subr.bf16.mxu0 0
        %606 = vmatpush1.bf16.msra.mxu0 0
        %607 = vmatprep.subr.bf16.mxu0 0
        %608 = vmatpush1.bf16.msra.mxu0 0
        %609 = vmatprep.subr.bf16.mxu0 0
        %610 = vmatpush1.bf16.msra.mxu0 0
        %611 = vmatprep.subr.bf16.mxu0 0
        %612 = vmatpush1.bf16.msra.mxu0 0
        %613 = vmatprep.subr.bf16.mxu0 0
        %614 = vmatpush1.bf16.msra.mxu0 0
        %615 = vmatprep.subr.bf16.mxu0 0
        %616 = vmatpush1.bf16.msra.mxu0 0
        %617 = vmatprep.subr.bf16.mxu0 0
        %618 = vmatpush1.bf16.msra.mxu0 0
        %619 = vmatprep.subr.bf16.mxu0 0
        %620 = vmatpush1.bf16.msra.mxu0 0
        %621 = vmatprep.subr.bf16.mxu0 0
        %622 = vmatpush1.bf16.msra.mxu0 0
        %623 = vmatprep.subr.bf16.mxu0 0
        %624 = vmatpush1.bf16.msra.mxu0 0
        %625 = vmatprep.subr.bf16.mxu0 0
        %626 = vmatpush1.bf16.msra.mxu0 0
        %627 = vmatprep.mubr.bf16.mxu0 0
        %628 = vmatmul.mubr.bf16.gmra.mrb[0].mxu0 %v581
        %v629 = vpop.f32.mrb[0].mxu0
        %v630 = vadd.f32 %v550, %v629
        %v631 = vpop.f32.mrb[0].mxu0
        %v632 = vpop.f32.mrb[0].mxu0
        %v633 = vadd.f32 %v553, %v632
        %v634 = vpop.f32.mrb[0].mxu0
        %635 = vmatprep.mubr.bf16.mxu0 0
        %636 = vmatmul.mubr.bf16.gmra.mrb[0].mxu0 %v584
        %v637 = vpop.f32.mrb[0].mxu0
        %v638 = vadd.f32 %v558, %v637
        %v639 = vpop.f32.mrb[0].mxu0
        %v640 = vpop.f32.mrb[0].mxu0
        %v641 = vadd.f32 %v561, %v640
        %v642 = vpop.f32.mrb[0].mxu0
        %643 = vmatprep.mubr.bf16.mxu0 0
        %644 = vmatmul.mubr.bf16.gmra.mrb[0].mxu0 %v587
        %v645 = vpop.f32.mrb[0].mxu0
        %v646 = vadd.f32 %v566, %v645
        %v647 = vpop.f32.mrb[0].mxu0
        %v648 = vpop.f32.mrb[0].mxu0
        %v649 = vadd.f32 %v569, %v648
        %v650 = vpop.f32.mrb[0].mxu0
        %651 = vmatprep.mubr.bf16.mxu0 0
        %652 = vmatmul.mubr.bf16.gmra.mrb[0].mxu0 %v590
        %v653 = vpop.f32.mrb[0].mxu0
        %v654 = vadd.f32 %v574, %v653
        %v655 = vpop.f32.mrb[0].mxu0
        %v656 = vpop.f32.mrb[0].mxu0
        %v657 = vadd.f32 %v577, %v656
        %v658 = vpop.f32.mrb[0].mxu0
        %659 = vdwg.mxu0
        %v660 = vld [vmem:[%s4] sm:$0x1]
        %v662 = vlaneseq
        %v663 = vshrl.u32 %v662, 7
        %v664 = vsub.s32 0, %v663
        %v665 = vrot.slane %v660, %v664
        %v667 = vadd.f32 %v630, %v665
        %v668 = vadd.f32 %v633, %v665
        %v669 = vadd.f32 %v638, %v665
        %v670 = vadd.f32 %v641, %v665
        %v671 = vadd.f32 %v646, %v665
        %v672 = vadd.f32 %v649, %v665
        %v673 = vadd.f32 %v654, %v665
        %v674 = vadd.f32 %v657, %v665
        %v675 = vpack.c.bf16 %v668, %v667
        %v676 = vpack.c.bf16 %v670, %v669
        %v677 = vpack.c.bf16 %v672, %v671
        %v678 = vpack.c.bf16 %v674, %v673
        %v683 = vunpack.c.l.b16 %v675
        %v684 = vunpack.c.h.b16 %v675
        %v685 = vunpack.c.l.b16 %v676
        %v686 = vunpack.c.h.b16 %v676
        %v687 = vunpack.c.l.b16 %v677
        %v688 = vunpack.c.h.b16 %v677
        %v689 = vunpack.c.l.b16 %v678
        %v690 = vunpack.c.h.b16 %v678
        %v691 = vpack.c.b16 %v683, %v683
        %v692 = vpack.c.b16 %v684, %v684
        %v693 = vpack.c.b16 %v685, %v685
        %v694 = vpack.c.b16 %v686, %v686
        %v695 = vpack.c.b16 %v687, %v687
        %v696 = vpack.c.b16 %v688, %v688
        %v697 = vpack.c.b16 %v689, %v689
        %v698 = vpack.c.b16 %v690, %v690
        %707 = vst [vmem:[%s375] sm:$0xf] %v691
        %708 = vst [vmem:[%s375 + $0x4] sm:$0xf] %v692
        %709 = vst [vmem:[%s375 + $0x8] sm:$0xf] %v693
        %710 = vst [vmem:[%s375 + $0xc] sm:$0xf] %v694
        %711 = vst [vmem:[%s375 + $0x10] sm:$0xf] %v695
        %712 = vst [vmem:[%s375 + $0x14] sm:$0xf] %v696
        %713 = vst [vmem:[%s375 + $0x18] sm:$0xf] %v697
        %714 = vst [vmem:[%s375 + $0x1c] sm:$0xf] %v698
        %v715 = vadd.f32 %v667, %v668
        %v716 = vadd.f32 %v715, %v669
        %v717 = vadd.f32 %v716, %v670
        %v718 = vadd.f32 %v717, %v671
        %v719 = vadd.f32 %v718, %v672
        %v720 = vadd.f32 %v719, %v673
        %v721 = vadd.f32 %v720, %v674
        %v722 = vrot.slane %v721, 4
        %v723 = vadd.f32 %v721, %v722
        %v724 = vrot.slane %v723, 2
        %v725 = vadd.f32 %v723, %v724
        %v726 = vrot.slane %v725, 1
        %v727 = vadd.f32 %v725, %v726
        %728 = vst [vmem:[%s382] sm:$0x1] %v727
        %v729 = vmul.f32 %v667, %v667
        %v730 = vmul.f32 %v668, %v668
        %v731 = vmul.f32 %v669, %v669
        %v732 = vmul.f32 %v670, %v670
        %v733 = vmul.f32 %v671, %v671
        %v734 = vmul.f32 %v672, %v672
        %v735 = vmul.f32 %v673, %v673
        %v736 = vmul.f32 %v674, %v674
        %v737 = vadd.f32 %v729, %v730
        %v738 = vadd.f32 %v737, %v731
        %v739 = vadd.f32 %v738, %v732
        %v740 = vadd.f32 %v739, %v733
        %v741 = vadd.f32 %v740, %v734
        %v742 = vadd.f32 %v741, %v735
        %v743 = vadd.f32 %v742, %v736
        %v744 = vrot.slane %v743, 4
        %v745 = vadd.f32 %v743, %v744
        %v746 = vrot.slane %v745, 2
        %v747 = vadd.f32 %v745, %v746
        %v748 = vrot.slane %v747, 1
        %v749 = vadd.f32 %v747, %v748
        %750 = vst [vmem:[%s388] sm:$0x1] %v749
        %v751 = vmax.f32 %v667, %v671
        %v752 = vmax.f32 %v668, %v672
        %v753 = vmax.f32 %v669, %v673
        %v754 = vmax.f32 %v670, %v674
        %v755 = vmax.f32 %v751, %v752
        %v756 = vmax.f32 %v753, %v754
        %v757 = vmax.f32 %v755, %v756
        %v758 = vrot.slane %v757, 4
        %v759 = vmax.f32 %v757, %v758
        %v760 = vrot.slane %v759, 2
        %v761 = vmax.f32 %v759, %v760
        %v762 = vrot.slane %v761, 1
        %v763 = vmax.f32 %v761, %v762
        %764 = vst [vmem:[%s356] sm:$0x1] %v763
        %s765 = smul.u32 8, %s28
        %p766 = scmp.lt.s32.totalorder %s27, 1
        %s767 = scalar_select %p766, %s27, 1
        %p768 = scmp.lt.s32.totalorder %s765, 7
        %s769 = scalar_select %p768, %s765, 7
        %s770 = smul.addr %s767, 8
        %s771 = sadd.s32 %s769, %s770
        %s772 = smul.addr %s771, 4
        %s773 = scalar_lea.vmem %s5, %s772
        %p774 = scmp.lt.s32.totalorder %s27, 1
        %s775 = scalar_select %p774, %s27, 1
        %p776 = scmp.lt.s32.totalorder %s28, 0
        %s777 = scalar_select %p776, %s28, 0
        %s778 = sadd.s32 %s777, %s775
        %s779 = scalar_lea.vmem %s6, %s778
        %p780 = scmp.lt.s32.totalorder %s27, 1
        %s781 = scalar_select %p780, %s27, 1
        %p782 = scmp.lt.s32.totalorder %s28, 0
        %s783 = scalar_select %p782, %s28, 0
        %s784 = sadd.s32 %s783, %s781
        %s785 = scalar_lea.vmem %s7, %s784
        %s786 = sand.u32 %s241, 1
        %s787 = scalar_lea.sflag [#allocation3], %s786
        %s788 = sand.u32 %s241, 1
        %s789 = scalar_lea.vmem [#allocation2], %s788
        // Predicated region
        $region41: #{pointnet_kan_forward.4} parent=39 // pred_check
          %p790 = pneg %p167
        $region42: #{pointnet_kan_forward.4} parent=39 // pred_check_branch
          %792 = sbr.rel (%p790) target = $region44
        $region43: #{pointnet_kan_forward.4} parent=39 // pred_region
          %s793 = smul.u32 8, %s28
        $region44: #{pointnet_kan_forward.4} parent=39 // pred_fallthru
          _
        // Predicated region
        $region45: #{pointnet_kan_forward.4} parent=39 // pred_check
          %p794 = pneg %p195
        $region46: #{pointnet_kan_forward.4} parent=39 // pred_check_branch
          %796 = sbr.rel (%p794) target = $region48
        $region47: #{pointnet_kan_forward.4} parent=39 // pred_region
          _
        $region48: #{pointnet_kan_forward.4} parent=39 // pred_fallthru
          _
        // Predicated region
        $region49: #{pointnet_kan_forward.4} parent=39 // pred_check
          %p797 = pneg %p223
        $region50: #{pointnet_kan_forward.4} parent=39 // pred_check_branch
          %799 = sbr.rel (%p797) target = $region52
        $region51: #{pointnet_kan_forward.4} parent=39 // pred_region
          _
        $region52: #{pointnet_kan_forward.4} parent=39 // pred_fallthru
          _
        // Predicated region
        $region53: #{pointnet_kan_forward.4} parent=39 // pred_check
          %p800 = pneg %p251
        $region54: #{pointnet_kan_forward.4} parent=39 // pred_check_branch
          %802 = sbr.rel (%p800) target = $region56
        $region55: #{pointnet_kan_forward.4} parent=39 // pred_region
          %s804 = ssub.s32 16, 16
          %805 = vsyncadd %s787, %s804
          %s806 = sadd.s32 %s28, %s27
          %s807 = smul.addr %s806, 16
          %s808 = scalar_lea.hbm %s8, %s807
          %s810 = sshll.u32 %s789, 4
          %s811 = int_to_ptr.vmem [resolvable:$true] %s810
          %813 = dma.vmem_to_hbm [thread:$0]  %s811, 16, %s808, %s787
        $region56: #{pointnet_kan_forward.4} parent=39 // pred_fallthru
          _
      $region40: #{pointnet_kan_forward.4} parent=5 // pred_fallthru
        _
      %p814 = scmp.le.s32.totalorder 2, %s18
      // Predicated region
      $region57: #{pointnet_kan_forward.4} parent=5 // pred_check
        %p815 = pneg %p814
      $region58: #{pointnet_kan_forward.4} parent=5 // pred_check_branch
        %817 = sbr.rel (%p815) target = $region60
      $region59: #{pointnet_kan_forward.4} parent=5 // pred_region
        %s818 = ssub.s32 %s18, 2
        // Predicated region
        $region61: #{pointnet_kan_forward.4} parent=59 // pred_check
          %p819 = pneg %p173
        $region62: #{pointnet_kan_forward.4} parent=59 // pred_check_branch
          %821 = sbr.rel (%p819) target = $region64
        $region63: #{pointnet_kan_forward.4} parent=59 // pred_region
          %s822 = smul.u32 8, %s30
          %p823 = scmp.lt.s32.totalorder %s29, 1
          %s824 = scalar_select %p823, %s29, 1
          %p825 = scmp.lt.s32.totalorder %s822, 7
          %s826 = scalar_select %p825, %s822, 7
          %s827 = smul.addr %s824, 8
          %s828 = sadd.s32 %s826, %s827
          %s829 = smul.addr %s828, 4
          %s830 = scalar_lea.vmem %s5, %s829
        $region64: #{pointnet_kan_forward.4} parent=59 // pred_fallthru
          _
        // Predicated region
        $region65: #{pointnet_kan_forward.4} parent=59 // pred_check
          %p831 = pneg %p201
        $region66: #{pointnet_kan_forward.4} parent=59 // pred_check_branch
          %833 = sbr.rel (%p831) target = $region68
        $region67: #{pointnet_kan_forward.4} parent=59 // pred_region
          %p834 = scmp.lt.s32.totalorder %s29, 1
          %s835 = scalar_select %p834, %s29, 1
          %p836 = scmp.lt.s32.totalorder %s30, 0
          %s837 = scalar_select %p836, %s30, 0
          %s838 = sadd.s32 %s837, %s835
          %s839 = scalar_lea.vmem %s6, %s838
        $region68: #{pointnet_kan_forward.4} parent=59 // pred_fallthru
          _
        // Predicated region
        $region69: #{pointnet_kan_forward.4} parent=59 // pred_check
          %p840 = pneg %p229
        $region70: #{pointnet_kan_forward.4} parent=59 // pred_check_branch
          %842 = sbr.rel (%p840) target = $region72
        $region71: #{pointnet_kan_forward.4} parent=59 // pred_region
          %p843 = scmp.lt.s32.totalorder %s29, 1
          %s844 = scalar_select %p843, %s29, 1
          %p845 = scmp.lt.s32.totalorder %s30, 0
          %s846 = scalar_select %p845, %s30, 0
          %s847 = sadd.s32 %s846, %s844
          %s848 = scalar_lea.vmem %s7, %s847
        $region72: #{pointnet_kan_forward.4} parent=59 // pred_fallthru
          _
        // Predicated region
        $region73: #{pointnet_kan_forward.4} parent=59 // pred_check
          %p849 = pneg %p257
        $region74: #{pointnet_kan_forward.4} parent=59 // pred_check_branch
          %851 = sbr.rel (%p849) target = $region76
        $region75: #{pointnet_kan_forward.4} parent=59 // pred_region
          %s852 = sand.u32 %s242, 1
          %s853 = scalar_lea.sflag [#allocation3], %s852
          %s854 = sand.u32 %s242, 1
          %s855 = scalar_lea.vmem [#allocation2], %s854
          %856 = dma.done %s853, 16
        $region76: #{pointnet_kan_forward.4} parent=59 // pred_fallthru
          _
      $region60: #{pointnet_kan_forward.4} parent=5 // pred_fallthru
        _
    $region6: #{pointnet_kan_forward.4} parent=1 // loop_footer
      %s22 = sadd.s32 1, %s18
    $region7: #{pointnet_kan_forward.4} parent=1 // loop_footer_branch
      %17 = sbr.rel target = $region3
    $region8: #{pointnet_kan_forward.4} parent=1 // loop_exit
      _
    %857 = vsyncpa [#allocation3], 1
    %s858 = scalar_lea.sflag [#allocation3], 1
    %859 = vsyncpa %s858, 1

// kernel: pointnet_kan_forward.5
$region0: #{pointnet_kan_forward.5}
  #allocation0 [shape = 'u32[]', space=smem, size = 0x4, offset = 0x4, fixed_abs, tag = 'smem constant byte address 0x4 - core index']
  #allocation1 [shape = 'u32[144,128]{1,0:T(1,128)}', space=vmem, size = 0x12000, scoped, tag = 'internal scratch']
  %s0 = inlined_call_operand.vmem [shape: bf16[2,64,128], index: 0, kind: input, shape index: {}]
  %s1 = inlined_call_operand.vmem [shape: f32[1,128], index: 1, kind: input, shape index: {}]
  %s2 = inlined_call_operand.vmem [shape: f32[1,128], index: 2, kind: input, shape index: {}]
  %s3 = inlined_call_operand.vmem [shape: bf16[2,128,1024], index: 3, kind: input, shape index: {}]
  %s4 = inlined_call_operand.vmem [shape: f32[1,1024], index: 4, kind: input, shape index: {}]
  %s5 = inlined_call_operand.vmem [shape: f32[2,1,1,1024], index: 5, kind: output, shape index: {0}]
  %s6 = inlined_call_operand.vmem [shape: f32[2,1,1,1024], index: 6, kind: output, shape index: {1}]
  %s7 = inlined_call_operand.vmem [shape: f32[2,1,1,1024], index: 7, kind: output, shape index: {2}]
  %8 = xla_tuple %s5, %s6, %s7
  %s9 = sld [smem:[#allocation0]]
  $region69: #{pointnet_kan_forward.5} parent=0
    _
  %s11 = ssub.s32 1, %s9
  %s12 = scalar_select 0, %s11, %s9
  loop: start=0, step=1, limit=4
  $region2: #{pointnet_kan_forward.5} parent=0 // loop_pre_header
    _
  $region3: #{pointnet_kan_forward.5} parent=0 // loop_header
    %s14 = sphi 0, %s18
    %p15 = scmp.ge.s32.totalorder %s14, 4
    %s21 = sphi 0, %s33
    %s22 = sphi 0, %s29
    %s23 = sphi 0, %s21
    %s24 = sphi 0, %s22
    %s25 = sphi 0, %s23
    %s26 = sphi 0, %s24
    %s38 = sphi 0, %s40
    %s41 = sphi 0, %s38
    %s42 = sphi 0, %s41
    %s58 = sphi 0, %s42
    %s62 = sphi 0, %s62
    %s64 = sphi 0, %s62
    %s65 = sphi 0, %s64
    %s79 = sphi 0, %s65
    %s83 = sphi 0, %s83
    %s85 = sphi 0, %s83
    %s86 = sphi 0, %s85
    %s100 = sphi 0, %s86
    %s104 = sphi 0, %s104
    %s106 = sphi 0, %s104
    %s107 = sphi 0, %s106
    %s121 = sphi 0, %s107
    %s125 = sphi 0, %s125
    %s127 = sphi 0, %s125
    %s128 = sphi 0, %s127
    %s142 = sphi 0, %s128
    %s150 = sphi 0, %s152
    %s153 = sphi 0, %s150
    %s154 = sphi 0, %s153
    %s170 = sphi 0, %s154
    %s178 = sphi 0, %s180
    %s181 = sphi 0, %s178
    %s182 = sphi 0, %s181
    %s198 = sphi 0, %s182
    %s206 = sphi 0, %s208
    %s209 = sphi 0, %s206
    %s210 = sphi 0, %s209
    %s226 = sphi 0, %s210
  $region4: #{pointnet_kan_forward.5} parent=0 // loop_header_branch
    %17 = sbr.rel (%p15) target = $region8
  $region5: #{pointnet_kan_forward.5} parent=0 // loop_body
    %s19 = ssub.s32 %s14, 1
    %s20 = ssub.s32 %s14, 2
    %s27 = sadd.s32 1, %s22
    %p28 = scmp.ge.s32.totalorder %s27, 1
    %s29 = scalar_select %p28, 0, %s27
    %s30 = sadd.s32 1, %s21
    %s31 = scalar_select %p28, %s30, %s21
    %p32 = scmp.ge.s32.totalorder %s31, 2
    %s33 = scalar_select %p32, 0, %s31
    %s34 = ssub.s32 %s21, %s33
    %s35 = ssub.s32 %s22, %s29
    %s36 = sor.u32 %s34, %s35
    %p37 = scmp.eq.s32.totalorder %s36, 0
    %s39 = sadd.s32 %s38, 1
    %s40 = scalar_select %p37, %s38, %s39
    %p43 = pneg %p37
    %p44 = scmp.eq.s32.totalorder %s14, 1
    %p45 = por %p43, %p44
    %p46 = scmp.ne.s32.totalorder %s38, %s41
    %p47 = scmp.eq.s32.totalorder %s14, 0
    %p48 = por %p46, %p47
    %p49 = scmp.ne.s32.totalorder %s38, %s41
    %p50 = scmp.eq.s32.totalorder %s19, 1
    %p51 = por %p49, %p50
    %p52 = scmp.ne.s32.totalorder %s41, %s42
    %p53 = scmp.eq.s32.totalorder %s19, 0
    %p54 = por %p52, %p53
    %p55 = scmp.ne.s32.totalorder %s41, %s42
    %p56 = scmp.eq.s32.totalorder %s20, 1
    %p57 = por %p55, %p56
    %p59 = scmp.ne.s32.totalorder %s42, %s58
    %p60 = scmp.eq.s32.totalorder %s20, 0
    %p61 = por %p59, %p60
    %s63 = sadd.s32 %s62, 1
    %p66 = scmp.eq.s32.totalorder %s14, 1
    %p67 = scmp.ne.s32.totalorder %s62, %s64
    %p68 = scmp.eq.s32.totalorder %s14, 0
    %p69 = por %p67, %p68
    %p70 = scmp.ne.s32.totalorder %s62, %s64
    %p71 = scmp.eq.s32.totalorder %s19, 1
    %p72 = por %p70, %p71
    %p73 = scmp.ne.s32.totalorder %s64, %s65
    %p74 = scmp.eq.s32.totalorder %s19, 0
    %p75 = por %p73, %p74
    %p76 = scmp.ne.s32.totalorder %s64, %s65
    %p77 = scmp.eq.s32.totalorder %s20, 1
    %p78 = por %p76, %p77
    %p80 = scmp.ne.s32.totalorder %s65, %s79
    %p81 = scmp.eq.s32.totalorder %s20, 0
    %p82 = por %p80, %p81
    %s84 = sadd.s32 %s83, 1
    %p87 = scmp.eq.s32.totalorder %s14, 1
    %p88 = scmp.ne.s32.totalorder %s83, %s85
    %p89 = scmp.eq.s32.totalorder %s14, 0
    %p90 = por %p88, %p89
    %p91 = scmp.ne.s32.totalorder %s83, %s85
    %p92 = scmp.eq.s32.totalorder %s19, 1
    %p93 = por %p91, %p92
    %p94 = scmp.ne.s32.totalorder %s85, %s86
    %p95 = scmp.eq.s32.totalorder %s19, 0
    %p96 = por %p94, %p95
    %p97 = scmp.ne.s32.totalorder %s85, %s86
    %p98 = scmp.eq.s32.totalorder %s20, 1
    %p99 = por %p97, %p98
    %p101 = scmp.ne.s32.totalorder %s86, %s100
    %p102 = scmp.eq.s32.totalorder %s20, 0
    %p103 = por %p101, %p102
    %s105 = sadd.s32 %s104, 1
    %p108 = scmp.eq.s32.totalorder %s14, 1
    %p109 = scmp.ne.s32.totalorder %s104, %s106
    %p110 = scmp.eq.s32.totalorder %s14, 0
    %p111 = por %p109, %p110
    %p112 = scmp.ne.s32.totalorder %s104, %s106
    %p113 = scmp.eq.s32.totalorder %s19, 1
    %p114 = por %p112, %p113
    %p115 = scmp.ne.s32.totalorder %s106, %s107
    %p116 = scmp.eq.s32.totalorder %s19, 0
    %p117 = por %p115, %p116
    %p118 = scmp.ne.s32.totalorder %s106, %s107
    %p119 = scmp.eq.s32.totalorder %s20, 1
    %p120 = por %p118, %p119
    %p122 = scmp.ne.s32.totalorder %s107, %s121
    %p123 = scmp.eq.s32.totalorder %s20, 0
    %p124 = por %p122, %p123
    %s126 = sadd.s32 %s125, 1
    %p129 = scmp.eq.s32.totalorder %s14, 1
    %p130 = scmp.ne.s32.totalorder %s125, %s127
    %p131 = scmp.eq.s32.totalorder %s14, 0
    %p132 = por %p130, %p131
    %p133 = scmp.ne.s32.totalorder %s125, %s127
    %p134 = scmp.eq.s32.totalorder %s19, 1
    %p135 = por %p133, %p134
    %p136 = scmp.ne.s32.totalorder %s127, %s128
    %p137 = scmp.eq.s32.totalorder %s19, 0
    %p138 = por %p136, %p137
    %p139 = scmp.ne.s32.totalorder %s127, %s128
    %p140 = scmp.eq.s32.totalorder %s20, 1
    %p141 = por %p139, %p140
    %p143 = scmp.ne.s32.totalorder %s128, %s142
    %p144 = scmp.eq.s32.totalorder %s20, 0
    %p145 = por %p143, %p144
    %s146 = ssub.s32 %s21, %s33
    %s147 = ssub.s32 %s22, %s29
    %s148 = sor.u32 %s146, %s147
    %p149 = scmp.eq.s32.totalorder %s148, 0
    %s151 = sadd.s32 %s150, 1
    %s152 = scalar_select %p149, %s150, %s151
    %p155 = pneg %p149
    %p156 = scmp.eq.s32.totalorder %s14, 1
    %p157 = por %p155, %p156
    %p158 = scmp.ne.s32.totalorder %s150, %s153
    %p159 = scmp.eq.s32.totalorder %s14, 0
    %p160 = por %p158, %p159
    %p161 = scmp.ne.s32.totalorder %s150, %s153
    %p162 = scmp.eq.s32.totalorder %s19, 1
    %p163 = por %p161, %p162
    %p164 = scmp.ne.s32.totalorder %s153, %s154
    %p165 = scmp.eq.s32.totalorder %s19, 0
    %p166 = por %p164, %p165
    %p167 = scmp.ne.s32.totalorder %s153, %s154
    %p168 = scmp.eq.s32.totalorder %s20, 1
    %p169 = por %p167, %p168
    %p171 = scmp.ne.s32.totalorder %s154, %s170
    %p172 = scmp.eq.s32.totalorder %s20, 0
    %p173 = por %p171, %p172
    %s174 = ssub.s32 %s21, %s33
    %s175 = ssub.s32 %s22, %s29
    %s176 = sor.u32 %s174, %s175
    %p177 = scmp.eq.s32.totalorder %s176, 0
    %s179 = sadd.s32 %s178, 1
    %s180 = scalar_select %p177, %s178, %s179
    %p183 = pneg %p177
    %p184 = scmp.eq.s32.totalorder %s14, 1
    %p185 = por %p183, %p184
    %p186 = scmp.ne.s32.totalorder %s178, %s181
    %p187 = scmp.eq.s32.totalorder %s14, 0
    %p188 = por %p186, %p187
    %p189 = scmp.ne.s32.totalorder %s178, %s181
    %p190 = scmp.eq.s32.totalorder %s19, 1
    %p191 = por %p189, %p190
    %p192 = scmp.ne.s32.totalorder %s181, %s182
    %p193 = scmp.eq.s32.totalorder %s19, 0
    %p194 = por %p192, %p193
    %p195 = scmp.ne.s32.totalorder %s181, %s182
    %p196 = scmp.eq.s32.totalorder %s20, 1
    %p197 = por %p195, %p196
    %p199 = scmp.ne.s32.totalorder %s182, %s198
    %p200 = scmp.eq.s32.totalorder %s20, 0
    %p201 = por %p199, %p200
    %s202 = ssub.s32 %s21, %s33
    %s203 = ssub.s32 %s22, %s29
    %s204 = sor.u32 %s202, %s203
    %p205 = scmp.eq.s32.totalorder %s204, 0
    %s207 = sadd.s32 %s206, 1
    %s208 = scalar_select %p205, %s206, %s207
    %p211 = pneg %p205
    %p212 = scmp.eq.s32.totalorder %s14, 1
    %p213 = por %p211, %p212
    %p214 = scmp.ne.s32.totalorder %s206, %s209
    %p215 = scmp.eq.s32.totalorder %s14, 0
    %p216 = por %p214, %p215
    %p217 = scmp.ne.s32.totalorder %s206, %s209
    %p218 = scmp.eq.s32.totalorder %s19, 1
    %p219 = por %p217, %p218
    %p220 = scmp.ne.s32.totalorder %s209, %s210
    %p221 = scmp.eq.s32.totalorder %s19, 0
    %p222 = por %p220, %p221
    %p223 = scmp.ne.s32.totalorder %s209, %s210
    %p224 = scmp.eq.s32.totalorder %s20, 1
    %p225 = por %p223, %p224
    %p227 = scmp.ne.s32.totalorder %s210, %s226
    %p228 = scmp.eq.s32.totalorder %s20, 0
    %p229 = por %p227, %p228
    %p230 = scmp.le.s32.totalorder 1, %s14
    %p231 = scmp.lt.s32.totalorder %s14, 3
    %p232 = pnand %p230, %p231
    %p233 = pneg %p232
    // Predicated region
    $region9: #{pointnet_kan_forward.5} parent=5 // pred_check
      _
    $region10: #{pointnet_kan_forward.5} parent=5 // pred_check_branch
      %235 = sbr.rel (%p232) target = $region12
    $region11: #{pointnet_kan_forward.5} parent=5 // pred_region
      %s236 = ssub.s32 %s14, 1
      // Predicated region
      $region13: #{pointnet_kan_forward.5} parent=11 // pred_check
        %p237 = pneg %p75
      $region14: #{pointnet_kan_forward.5} parent=11 // pred_check_branch
        %239 = sbr.rel (%p237) target = $region16
      $region15: #{pointnet_kan_forward.5} parent=11 // pred_region
        _
      $region16: #{pointnet_kan_forward.5} parent=11 // pred_fallthru
        _
      // Predicated region
      $region17: #{pointnet_kan_forward.5} parent=11 // pred_check
        %p240 = pneg %p96
      $region18: #{pointnet_kan_forward.5} parent=11 // pred_check_branch
        %242 = sbr.rel (%p240) target = $region20
      $region19: #{pointnet_kan_forward.5} parent=11 // pred_region
        _
      $region20: #{pointnet_kan_forward.5} parent=11 // pred_fallthru
        _
      // Predicated region
      $region21: #{pointnet_kan_forward.5} parent=11 // pred_check
        %p243 = pneg %p117
      $region22: #{pointnet_kan_forward.5} parent=11 // pred_check_branch
        %245 = sbr.rel (%p243) target = $region24
      $region23: #{pointnet_kan_forward.5} parent=11 // pred_region
        _
      $region24: #{pointnet_kan_forward.5} parent=11 // pred_fallthru
        _
      // Predicated region
      $region25: #{pointnet_kan_forward.5} parent=11 // pred_check
        %p246 = pneg %p138
      $region26: #{pointnet_kan_forward.5} parent=11 // pred_check_branch
        %248 = sbr.rel (%p246) target = $region28
      $region27: #{pointnet_kan_forward.5} parent=11 // pred_region
        _
      $region28: #{pointnet_kan_forward.5} parent=11 // pred_fallthru
        _
    $region12: #{pointnet_kan_forward.5} parent=5 // pred_fallthru
      _
    %p249 = scmp.lt.s32.totalorder %s14, 2
    // Predicated region
    $region29: #{pointnet_kan_forward.5} parent=5 // pred_check
      %p250 = pneg %p249
    $region30: #{pointnet_kan_forward.5} parent=5 // pred_check_branch
      %252 = sbr.rel (%p250) target = $region32
    $region31: #{pointnet_kan_forward.5} parent=5 // pred_region
      // Predicated region
      $region33: #{pointnet_kan_forward.5} parent=31 // pred_check
        %p253 = pneg %p48
      $region34: #{pointnet_kan_forward.5} parent=31 // pred_check_branch
        %255 = sbr.rel (%p253) target = $region36
      $region35: #{pointnet_kan_forward.5} parent=31 // pred_region
        %s256 = smul.u32 8, %s22
        %p257 = scmp.lt.s32.totalorder %s21, 1
        %s258 = scalar_select %p257, %s21, 1
        %p259 = scmp.lt.s32.totalorder %s256, 7
        %s260 = scalar_select %p259, %s256, 7
        %s261 = smul.addr %s258, 8
        %s262 = sadd.s32 %s260, %s261
        %s263 = smul.addr %s262, 4
        %s264 = scalar_lea.vmem %s0, %s263
        %s265 = smul.u32 8, %s22
      $region36: #{pointnet_kan_forward.5} parent=31 // pred_fallthru
        _
    $region32: #{pointnet_kan_forward.5} parent=5 // pred_fallthru
      _
    %p266 = scmp.le.s32.totalorder 1, %s14
    %p267 = scmp.lt.s32.totalorder %s14, 3
    %p268 = pnand %p266, %p267
    %p269 = pneg %p268
    // Predicated region
    $region37: #{pointnet_kan_forward.5} parent=5 // pred_check
      _
    $region38: #{pointnet_kan_forward.5} parent=5 // pred_check_branch
      %271 = sbr.rel (%p268) target = $region40
    $region39: #{pointnet_kan_forward.5} parent=5 // pred_region
      %s272 = ssub.s32 %s14, 1
      %s273 = smul.u32 8, %s24
      %p274 = scmp.lt.s32.totalorder %s23, 1
      %s275 = scalar_select %p274, %s23, 1
      %p276 = scmp.lt.s32.totalorder %s273, 7
      %s277 = scalar_select %p276, %s273, 7
      %s278 = smul.addr %s275, 8
      %s279 = sadd.s32 %s277, %s278
      %s280 = smul.addr %s279, 4
      %s281 = scalar_lea.vmem %s0, %s280
      %p282 = pneg %p54
      %p283 = pneg %p51
      %p284 = pneg %p75
      %p285 = pneg %p72
      %p286 = pneg %p96
      %p287 = pneg %p93
      %p288 = pneg %p117
      %p289 = pneg %p114
      %p290 = pneg %p138
      %p291 = pneg %p135
      %p292 = pneg %p166
      %p293 = pneg %p163
      %p294 = scmp.lt.s32.totalorder %s23, 1
      %s295 = scalar_select %p294, %s23, 1
      %p296 = scmp.lt.s32.totalorder %s24, 0
      %s297 = scalar_select %p296, %s24, 0
      %s298 = smul.addr %s297, 8
      %s299 = smul.addr %s295, 8
      %s300 = sadd.s32 %s298, %s299
      %s301 = scalar_lea.vmem %s5, %s300
      %p302 = pneg %p194
      %p303 = pneg %p191
      %p304 = scmp.lt.s32.totalorder %s23, 1
      %s305 = scalar_select %p304, %s23, 1
      %p306 = scmp.lt.s32.totalorder %s24, 0
      %s307 = scalar_select %p306, %s24, 0
      %s308 = smul.addr %s307, 8
      %s309 = smul.addr %s305, 8
      %s310 = sadd.s32 %s308, %s309
      %s311 = scalar_lea.vmem %s6, %s310
      %p312 = pneg %p222
      %p313 = pneg %p219
      %p314 = scmp.lt.s32.totalorder %s23, 1
      %s315 = scalar_select %p314, %s23, 1
      %p316 = scmp.lt.s32.totalorder %s24, 0
      %s317 = scalar_select %p316, %s24, 0
      %s318 = smul.addr %s317, 8
      %s319 = smul.addr %s315, 8
      %s320 = sadd.s32 %s318, %s319
      %s321 = scalar_lea.vmem %s7, %s320
      %s322 = smul.u32 8, %s24
      %p323 = scmp.lt.s32.totalorder %s23, 1
      %s324 = scalar_select %p323, %s23, 1
      %p325 = scmp.lt.s32.totalorder %s322, 7
      %s326 = scalar_select %p325, %s322, 7
      %s327 = smul.addr %s324, 8
      %s328 = sadd.s32 %s326, %s327
      %s329 = smul.addr %s328, 4
      %s330 = scalar_lea.vmem %s0, %s329
      %s331 = smul.u32 8, %s24
      %p332 = scmp.lt.s32.totalorder %s23, 1
      %s333 = scalar_select %p332, %s23, 1
      %p334 = scmp.lt.s32.totalorder %s24, 0
      %s335 = scalar_select %p334, %s24, 0
      %s336 = smul.addr %s335, 8
      %s337 = smul.addr %s333, 8
      %s338 = sadd.s32 %s336, %s337
      %s339 = scalar_lea.vmem %s5, %s338
      %p340 = scmp.lt.s32.totalorder %s23, 1
      %s341 = scalar_select %p340, %s23, 1
      %p342 = scmp.lt.s32.totalorder %s24, 0
      %s343 = scalar_select %p342, %s24, 0
      %s344 = smul.addr %s343, 8
      %s345 = smul.addr %s341, 8
      %s346 = sadd.s32 %s344, %s345
      %s347 = scalar_lea.vmem %s6, %s346
      %p348 = scmp.lt.s32.totalorder %s23, 1
      %s349 = scalar_select %p348, %s23, 1
      %p350 = scmp.lt.s32.totalorder %s24, 0
      %s351 = scalar_select %p350, %s24, 0
      %s352 = smul.addr %s351, 8
      %s353 = smul.addr %s349, 8
      %s354 = sadd.s32 %s352, %s353
      %s355 = scalar_lea.vmem %s7, %s354
      %v357 = vld [vmem:[%s330] sm:$0xf]
      %v358 = vld [vmem:[%s330 + $0x4] sm:$0xf]
      %v359 = vld [vmem:[%s330 + $0x8] sm:$0xf]
      %v360 = vld [vmem:[%s330 + $0xc] sm:$0xf]
      %v361 = vld [vmem:[%s330 + $0x10] sm:$0xf]
      %v362 = vld [vmem:[%s330 + $0x14] sm:$0xf]
      %v363 = vld [vmem:[%s330 + $0x18] sm:$0xf]
      %v364 = vld [vmem:[%s330 + $0x1c] sm:$0xf]
      %v365 = vunpack.c.l.bf16 %v357
      %v366 = vunpack.c.l.bf16 %v358
      %v367 = vunpack.c.l.bf16 %v359
      %v368 = vunpack.c.l.bf16 %v360
      %v369 = vunpack.c.l.bf16 %v361
      %v370 = vunpack.c.l.bf16 %v362
      %v371 = vunpack.c.l.bf16 %v363
      %v372 = vunpack.c.l.bf16 %v364
      %v373 = vld [vmem:[%s1] sm:$0x1]
      %v374 = vld [vmem:[%s2] sm:$0x1]
      %v376 = vlaneseq
      %v377 = vshrl.u32 %v376, 7
      %v378 = vsub.s32 0, %v377
      %v379 = vrot.slane %v373, %v378
      %v381 = vsub.f32 %v365, %v379
      %v382 = vsub.f32 %v366, %v379
      %v383 = vsub.f32 %v367, %v379
      %v384 = vsub.f32 %v368, %v379
      %v385 = vsub.f32 %v369, %v379
      %v386 = vsub.f32 %v370, %v379
      %v387 = vsub.f32 %v371, %v379
      %v388 = vsub.f32 %v372, %v379
      %v390 = vlaneseq
      %v391 = vshrl.u32 %v390, 7
      %v392 = vsub.s32 0, %v391
      %v393 = vrot.slane %v374, %v392
      %v395 = vmul.f32 %v381, %v393
      %v396 = vmul.f32 %v382, %v393
      %v397 = vmul.f32 %v383, %v393
      %v398 = vmul.f32 %v384, %v393
      %v399 = vmul.f32 %v385, %v393
      %v400 = vmul.f32 %v386, %v393
      %v401 = vmul.f32 %v387, %v393
      %v402 = vmul.f32 %v388, %v393
      %v403 = vtanh.pop %v395
      %v404 = vtanh.pop %v396
      %v405 = vtanh.pop %v397
      %v406 = vtanh.pop %v398
      %v407 = vtanh.pop %v399
      %v408 = vtanh.pop %v400
      %v409 = vtanh.pop %v401
      %v410 = vtanh.pop %v402
      %v411 = vadd.f32 %v403, 0.0
      %v412 = vadd.f32 %v404, 0.0
      %v413 = vadd.f32 %v405, 0.0
      %v414 = vadd.f32 %v406, 0.0
      %v415 = vadd.f32 %v407, 0.0
      %v416 = vadd.f32 %v408, 0.0
      %v417 = vadd.f32 %v409, 0.0
      %v418 = vadd.f32 %v410, 0.0
      %v419 = vmul.f32 %v411, 0.5
      %v420 = vmul.f32 %v412, 0.5
      %v421 = vmul.f32 %v413, 0.5
      %v422 = vmul.f32 %v414, 0.5
      %v423 = vmul.f32 %v415, 0.5
      %v424 = vmul.f32 %v416, 0.5
      %v425 = vmul.f32 %v417, 0.5
      %v426 = vmul.f32 %v418, 0.5
      %v427 = vmul.f32 %v403, 1.5
      %v428 = vmul.f32 %v404, 1.5
      %v429 = vmul.f32 %v405, 1.5
      %v430 = vmul.f32 %v406, 1.5
      %v431 = vmul.f32 %v407, 1.5
      %v432 = vmul.f32 %v408, 1.5
      %v433 = vmul.f32 %v409, 1.5
      %v434 = vmul.f32 %v410, 1.5
      %v435 = vadd.f32 %v427, 0.0
      %v436 = vadd.f32 %v428, 0.0
      %v437 = vadd.f32 %v429, 0.0
      %v438 = vadd.f32 %v430, 0.0
      %v439 = vadd.f32 %v431, 0.0
      %v440 = vadd.f32 %v432, 0.0
      %v441 = vadd.f32 %v433, 0.0
      %v442 = vadd.f32 %v434, 0.0
      %v443 = vmul.f32 %v435, %v419
      %v444 = vmul.f32 %v436, %v420
      %v445 = vmul.f32 %v437, %v421
      %v446 = vmul.f32 %v438, %v422
      %v447 = vmul.f32 %v439, %v423
      %v448 = vmul.f32 %v440, %v424
      %v449 = vmul.f32 %v441, %v425
      %v450 = vmul.f32 %v442, %v426
      %v451 = vadd.f32 %v443, -0.375
      %v452 = vadd.f32 %v444, -0.375
      %v453 = vadd.f32 %v445, -0.375
      %v454 = vadd.f32 %v446, -0.375
      %v455 = vadd.f32 %v447, -0.375
      %v456 = vadd.f32 %v448, -0.375
      %v457 = vadd.f32 %v449, -0.375
      %v458 = vadd.f32 %v450, -0.375
      %v459 = vpack.c.bf16 %v420, %v419
      %v460 = vpack.c.bf16 %v422, %v421
      %v461 = vpack.c.bf16 %v424, %v423
      %v462 = vpack.c.bf16 %v426, %v425
      %v463 = vld [vmem:[%s3] sm:$0xff]
      %v464 = vld [vmem:[%s3 + $0x8] sm:$0xff]
      %v465 = vld [vmem:[%s3 + $0x10] sm:$0xff]
      %v466 = vld [vmem:[%s3 + $0x18] sm:$0xff]
      %v467 = vld [vmem:[%s3 + $0x20] sm:$0xff]
      %v468 = vld [vmem:[%s3 + $0x28] sm:$0xff]
      %v469 = vld [vmem:[%s3 + $0x30] sm:$0xff]
      %v470 = vld [vmem:[%s3 + $0x38] sm:$0xff]
      %v471 = vld [vmem:[%s3 + $0x40] sm:$0xff]
      %v472 = vld [vmem:[%s3 + $0x48] sm:$0xff]
      %v473 = vld [vmem:[%s3 + $0x50] sm:$0xff]
      %v474 = vld [vmem:[%s3 + $0x58] sm:$0xff]
      %v475 = vld [vmem:[%s3 + $0x60] sm:$0xff]
      %v476 = vld [vmem:[%s3 + $0x68] sm:$0xff]
      %v477 = vld [vmem:[%s3 + $0x70] sm:$0xff]
      %v478 = vld [vmem:[%s3 + $0x78] sm:$0xff]
      %v479 = vld [vmem:[%s3 + $0x80] sm:$0xff]
      %v480 = vld [vmem:[%s3 + $0x88] sm:$0xff]
      %v481 = vld [vmem:[%s3 + $0x90] sm:$0xff]
      %v482 = vld [vmem:[%s3 + $0x98] sm:$0xff]
      %v483 = vld [vmem:[%s3 + $0xa0] sm:$0xff]
      %v484 = vld [vmem:[%s3 + $0xa8] sm:$0xff]
      %v485 = vld [vmem:[%s3 + $0xb0] sm:$0xff]
      %v486 = vld [vmem:[%s3 + $0xb8] sm:$0xff]
      %v487 = vld [vmem:[%s3 + $0xc0] sm:$0xff]
      %v488 = vld [vmem:[%s3 + $0xc8] sm:$0xff]
      %v489 = vld [vmem:[%s3 + $0xd0] sm:$0xff]
      %v490 = vld [vmem:[%s3 + $0xd8] sm:$0xff]
      %v491 = vld [vmem:[%s3 + $0xe0] sm:$0xff]
      %v492 = vld [vmem:[%s3 + $0xe8] sm:$0xff]
      %v493 = vld [vmem:[%s3 + $0xf0] sm:$0xff]
      %v494 = vld [vmem:[%s3 + $0xf8] sm:$0xff]
      %v495 = vld [vmem:[%s3 + $0x100] sm:$0xff]
      %v496 = vld [vmem:[%s3 + $0x108] sm:$0xff]
      %v497 = vld [vmem:[%s3 + $0x110] sm:$0xff]
      %v498 = vld [vmem:[%s3 + $0x118] sm:$0xff]
      %v499 = vld [vmem:[%s3 + $0x120] sm:$0xff]
      %v500 = vld [vmem:[%s3 + $0x128] sm:$0xff]
      %v501 = vld [vmem:[%s3 + $0x130] sm:$0xff]
      %v502 = vld [vmem:[%s3 + $0x138] sm:$0xff]
      %v503 = vld [vmem:[%s3 + $0x140] sm:$0xff]
      %v504 = vld [vmem:[%s3 + $0x148] sm:$0xff]
      %v505 = vld [vmem:[%s3 + $0x150] sm:$0xff]
      %v506 = vld [vmem:[%s3 + $0x158] sm:$0xff]
      %v507 = vld [vmem:[%s3 + $0x160] sm:$0xff]
      %v508 = vld [vmem:[%s3 + $0x168] sm:$0xff]
      %v509 = vld [vmem:[%s3 + $0x170] sm:$0xff]
      %v510 = vld [vmem:[%s3 + $0x178] sm:$0xff]
      %v511 = vld [vmem:[%s3 + $0x180] sm:$0xff]
      %v512 = vld [vmem:[%s3 + $0x188] sm:$0xff]
      %v513 = vld [vmem:[%s3 + $0x190] sm:$0xff]
      %v514 = vld [vmem:[%s3 + $0x198] sm:$0xff]
      %v515 = vld [vmem:[%s3 + $0x1a0] sm:$0xff]
      %v516 = vld [vmem:[%s3 + $0x1a8] sm:$0xff]
      %v517 = vld [vmem:[%s3 + $0x1b0] sm:$0xff]
      %v518 = vld [vmem:[%s3 + $0x1b8] sm:$0xff]
      %v519 = vld [vmem:[%s3 + $0x1c0] sm:$0xff]
      %v520 = vld [vmem:[%s3 + $0x1c8] sm:$0xff]
      %v521 = vld [vmem:[%s3 + $0x1d0] sm:$0xff]
      %v522 = vld [vmem:[%s3 + $0x1d8] sm:$0xff]
      %v523 = vld [vmem:[%s3 + $0x1e0] sm:$0xff]
      %v524 = vld [vmem:[%s3 + $0x1e8] sm:$0xff]
      %v525 = vld [vmem:[%s3 + $0x1f0] sm:$0xff]
      %v526 = vld [vmem:[%s3 + $0x1f8] sm:$0xff]
      %v527 = vpack.c.bf16 %v452, %v451
      %v528 = vpack.c.bf16 %v454, %v453
      %v529 = vpack.c.bf16 %v456, %v455
      %v530 = vpack.c.bf16 %v458, %v457
      %s531 = scalar_lea.vmem %s3, 512
      %v532 = vld [vmem:[%s531] sm:$0xff]
      %v533 = vld [vmem:[%s531 + $0x8] sm:$0xff]
      %v534 = vld [vmem:[%s531 + $0x10] sm:$0xff]
      %v535 = vld [vmem:[%s531 + $0x18] sm:$0xff]
      %v536 = vld [vmem:[%s531 + $0x20] sm:$0xff]
      %v537 = vld [vmem:[%s531 + $0x28] sm:$0xff]
      %v538 = vld [vmem:[%s531 + $0x30] sm:$0xff]
      %v539 = vld [vmem:[%s531 + $0x38] sm:$0xff]
      %v540 = vld [vmem:[%s531 + $0x40] sm:$0xff]
      %v541 = vld [vmem:[%s531 + $0x48] sm:$0xff]
      %v542 = vld [vmem:[%s531 + $0x50] sm:$0xff]
      %v543 = vld [vmem:[%s531 + $0x58] sm:$0xff]
      %v544 = vld [vmem:[%s531 + $0x60] sm:$0xff]
      %v545 = vld [vmem:[%s531 + $0x68] sm:$0xff]
      %v546 = vld [vmem:[%s531 + $0x70] sm:$0xff]
      %v547 = vld [vmem:[%s531 + $0x78] sm:$0xff]
      %v548 = vld [vmem:[%s531 + $0x80] sm:$0xff]
      %v549 = vld [vmem:[%s531 + $0x88] sm:$0xff]
      %v550 = vld [vmem:[%s531 + $0x90] sm:$0xff]
      %v551 = vld [vmem:[%s531 + $0x98] sm:$0xff]
      %v552 = vld [vmem:[%s531 + $0xa0] sm:$0xff]
      %v553 = vld [vmem:[%s531 + $0xa8] sm:$0xff]
      %v554 = vld [vmem:[%s531 + $0xb0] sm:$0xff]
      %v555 = vld [vmem:[%s531 + $0xb8] sm:$0xff]
      %v556 = vld [vmem:[%s531 + $0xc0] sm:$0xff]
      %v557 = vld [vmem:[%s531 + $0xc8] sm:$0xff]
      %v558 = vld [vmem:[%s531 + $0xd0] sm:$0xff]
      %v559 = vld [vmem:[%s531 + $0xd8] sm:$0xff]
      %v560 = vld [vmem:[%s531 + $0xe0] sm:$0xff]
      %v561 = vld [vmem:[%s531 + $0xe8] sm:$0xff]
      %v562 = vld [vmem:[%s531 + $0xf0] sm:$0xff]
      %v563 = vld [vmem:[%s531 + $0xf8] sm:$0xff]
      %v564 = vld [vmem:[%s531 + $0x100] sm:$0xff]
      %v565 = vld [vmem:[%s531 + $0x108] sm:$0xff]
      %v566 = vld [vmem:[%s531 + $0x110] sm:$0xff]
      %v567 = vld [vmem:[%s531 + $0x118] sm:$0xff]
      %v568 = vld [vmem:[%s531 + $0x120] sm:$0xff]
      %v569 = vld [vmem:[%s531 + $0x128] sm:$0xff]
      %v570 = vld [vmem:[%s531 + $0x130] sm:$0xff]
      %v571 = vld [vmem:[%s531 + $0x138] sm:$0xff]
      %v572 = vld [vmem:[%s531 + $0x140] sm:$0xff]
      %v573 = vld [vmem:[%s531 + $0x148] sm:$0xff]
      %v574 = vld [vmem:[%s531 + $0x150] sm:$0xff]
      %v575 = vld [vmem:[%s531 + $0x158] sm:$0xff]
      %v576 = vld [vmem:[%s531 + $0x160] sm:$0xff]
      %v577 = vld [vmem:[%s531 + $0x168] sm:$0xff]
      %v578 = vld [vmem:[%s531 + $0x170] sm:$0xff]
      %v579 = vld [vmem:[%s531 + $0x178] sm:$0xff]
      %v580 = vld [vmem:[%s531 + $0x180] sm:$0xff]
      %v581 = vld [vmem:[%s531 + $0x188] sm:$0xff]
      %v582 = vld [vmem:[%s531 + $0x190] sm:$0xff]
      %v583 = vld [vmem:[%s531 + $0x198] sm:$0xff]
      %v584 = vld [vmem:[%s531 + $0x1a0] sm:$0xff]
      %v585 = vld [vmem:[%s531 + $0x1a8] sm:$0xff]
      %v586 = vld [vmem:[%s531 + $0x1b0] sm:$0xff]
      %v587 = vld [vmem:[%s531 + $0x1b8] sm:$0xff]
      %v588 = vld [vmem:[%s531 + $0x1c0] sm:$0xff]
      %v589 = vld [vmem:[%s531 + $0x1c8] sm:$0xff]
      %v590 = vld [vmem:[%s531 + $0x1d0] sm:$0xff]
      %v591 = vld [vmem:[%s531 + $0x1d8] sm:$0xff]
      %v592 = vld [vmem:[%s531 + $0x1e0] sm:$0xff]
      %v593 = vld [vmem:[%s531 + $0x1e8] sm:$0xff]
      %v594 = vld [vmem:[%s531 + $0x1f0] sm:$0xff]
      %v595 = vld [vmem:[%s531 + $0x1f8] sm:$0xff]
      %v660 = vunpack.c.l.b16 %v532
      %v661 = vunpack.c.h.b16 %v532
      %v662 = vunpack.c.l.b16 %v533
      %v663 = vunpack.c.h.b16 %v533
      %v664 = vunpack.c.l.b16 %v534
      %v665 = vunpack.c.h.b16 %v534
      %v666 = vunpack.c.l.b16 %v535
      %v667 = vunpack.c.h.b16 %v535
      %v668 = vunpack.c.l.b16 %v536
      %v669 = vunpack.c.h.b16 %v536
      %v670 = vunpack.c.l.b16 %v537
      %v671 = vunpack.c.h.b16 %v537
      %v672 = vunpack.c.l.b16 %v538
      %v673 = vunpack.c.h.b16 %v538
      %v674 = vunpack.c.l.b16 %v539
      %v675 = vunpack.c.h.b16 %v539
      %v676 = vunpack.c.l.b16 %v540
      %v677 = vunpack.c.h.b16 %v540
      %v678 = vunpack.c.l.b16 %v541
      %v679 = vunpack.c.h.b16 %v541
      %v680 = vunpack.c.l.b16 %v542
      %v681 = vunpack.c.h.b16 %v542
      %v682 = vunpack.c.l.b16 %v543
      %v683 = vunpack.c.h.b16 %v543
      %v684 = vunpack.c.l.b16 %v544
      %v685 = vunpack.c.h.b16 %v544
      %v686 = vunpack.c.l.b16 %v545
      %v687 = vunpack.c.h.b16 %v545
      %v688 = vunpack.c.l.b16 %v546
      %v689 = vunpack.c.h.b16 %v546
      %v690 = vunpack.c.l.b16 %v547
      %v691 = vunpack.c.h.b16 %v547
      %v692 = vunpack.c.l.b16 %v548
      %v693 = vunpack.c.h.b16 %v548
      %v694 = vunpack.c.l.b16 %v549
      %v695 = vunpack.c.h.b16 %v549
      %v696 = vunpack.c.l.b16 %v550
      %v697 = vunpack.c.h.b16 %v550
      %v698 = vunpack.c.l.b16 %v551
      %v699 = vunpack.c.h.b16 %v551
      %v700 = vunpack.c.l.b16 %v552
      %v701 = vunpack.c.h.b16 %v552
      %v702 = vunpack.c.l.b16 %v553
      %v703 = vunpack.c.h.b16 %v553
      %v704 = vunpack.c.l.b16 %v554
      %v705 = vunpack.c.h.b16 %v554
      %v706 = vunpack.c.l.b16 %v555
      %v707 = vunpack.c.h.b16 %v555
      %v708 = vunpack.c.l.b16 %v556
      %v709 = vunpack.c.h.b16 %v556
      %v710 = vunpack.c.l.b16 %v557
      %v711 = vunpack.c.h.b16 %v557
      %v712 = vunpack.c.l.b16 %v558
      %v713 = vunpack.c.h.b16 %v558
      %v714 = vunpack.c.l.b16 %v559
      %v715 = vunpack.c.h.b16 %v559
      %v716 = vunpack.c.l.b16 %v560
      %v717 = vunpack.c.h.b16 %v560
      %v718 = vunpack.c.l.b16 %v561
      %v719 = vunpack.c.h.b16 %v561
      %v720 = vunpack.c.l.b16 %v562
      %v721 = vunpack.c.h.b16 %v562
      %v722 = vunpack.c.l.b16 %v563
      %v723 = vunpack.c.h.b16 %v563
      %v724 = vunpack.c.l.b16 %v564
      %v725 = vunpack.c.h.b16 %v564
      %v726 = vunpack.c.l.b16 %v565
      %v727 = vunpack.c.h.b16 %v565
      %v728 = vunpack.c.l.b16 %v566
      %v729 = vunpack.c.h.b16 %v566
      %v730 = vunpack.c.l.b16 %v567
      %v731 = vunpack.c.h.b16 %v567
      %v732 = vunpack.c.l.b16 %v568
      %v733 = vunpack.c.h.b16 %v568
      %v734 = vunpack.c.l.b16 %v569
      %v735 = vunpack.c.h.b16 %v569
      %v736 = vunpack.c.l.b16 %v570
      %v737 = vunpack.c.h.b16 %v570
      %v738 = vunpack.c.l.b16 %v571
      %v739 = vunpack.c.h.b16 %v571
      %v740 = vunpack.c.l.b16 %v572
      %v741 = vunpack.c.h.b16 %v572
      %v742 = vunpack.c.l.b16 %v573
      %v743 = vunpack.c.h.b16 %v573
      %v744 = vunpack.c.l.b16 %v574
      %v745 = vunpack.c.h.b16 %v574
      %v746 = vunpack.c.l.b16 %v575
      %v747 = vunpack.c.h.b16 %v575
      %v748 = vunpack.c.l.b16 %v576
      %v749 = vunpack.c.h.b16 %v576
      %v750 = vunpack.c.l.b16 %v577
      %v751 = vunpack.c.h.b16 %v577
      %v752 = vunpack.c.l.b16 %v578
      %v753 = vunpack.c.h.b16 %v578
      %v754 = vunpack.c.l.b16 %v579
      %v755 = vunpack.c.h.b16 %v579
      %v756 = vunpack.c.l.b16 %v580
      %v757 = vunpack.c.h.b16 %v580
      %v758 = vunpack.c.l.b16 %v581
      %v759 = vunpack.c.h.b16 %v581
      %v760 = vunpack.c.l.b16 %v582
      %v761 = vunpack.c.h.b16 %v582
      %v762 = vunpack.c.l.b16 %v583
      %v763 = vunpack.c.h.b16 %v583
      %v764 = vunpack.c.l.b16 %v584
      %v765 = vunpack.c.h.b16 %v584
      %v766 = vunpack.c.l.b16 %v585
      %v767 = vunpack.c.h.b16 %v585
      %v768 = vunpack.c.l.b16 %v586
      %v769 = vunpack.c.h.b16 %v586
      %v770 = vunpack.c.l.b16 %v587
      %v771 = vunpack.c.h.b16 %v587
      %v772 = vunpack.c.l.b16 %v588
      %v773 = vunpack.c.h.b16 %v588
      %v774 = vunpack.c.l.b16 %v589
      %v775 = vunpack.c.h.b16 %v589
      %v776 = vunpack.c.l.b16 %v590
      %v777 = vunpack.c.h.b16 %v590
      %v778 = vunpack.c.l.b16 %v591
      %v779 = vunpack.c.h.b16 %v591
      %v780 = vunpack.c.l.b16 %v592
      %v781 = vunpack.c.h.b16 %v592
      %v782 = vunpack.c.l.b16 %v593
      %v783 = vunpack.c.h.b16 %v593
      %v784 = vunpack.c.l.b16 %v594
      %v785 = vunpack.c.h.b16 %v594
      %v786 = vunpack.c.l.b16 %v595
      %v787 = vunpack.c.h.b16 %v595
      %v788 = vpack.c.b16 %v668, %v660
      %v789 = vpack.c.b16 %v669, %v661
      %v790 = vpack.c.b16 %v670, %v662
      %v791 = vpack.c.b16 %v671, %v663
      %v792 = vpack.c.b16 %v672, %v664
      %v793 = vpack.c.b16 %v673, %v665
      %v794 = vpack.c.b16 %v674, %v666
      %v795 = vpack.c.b16 %v675, %v667
      %v796 = vpack.c.b16 %v684, %v676
      %v797 = vpack.c.b16 %v685, %v677
      %v798 = vpack.c.b16 %v686, %v678
      %v799 = vpack.c.b16 %v687, %v679
      %v800 = vpack.c.b16 %v688, %v680
      %v801 = vpack.c.b16 %v689, %v681
      %v802 = vpack.c.b16 %v690, %v682
      %v803 = vpack.c.b16 %v691, %v683
      %v804 = vpack.c.b16 %v700, %v692
      %v805 = vpack.c.b16 %v701, %v693
      %v806 = vpack.c.b16 %v702, %v694
      %v807 = vpack.c.b16 %v703, %v695
      %v808 = vpack.c.b16 %v704, %v696
      %v809 = vpack.c.b16 %v705, %v697
      %v810 = vpack.c.b16 %v706, %v698
      %v811 = vpack.c.b16 %v707, %v699
      %v812 = vpack.c.b16 %v716, %v708
      %v813 = vpack.c.b16 %v717, %v709
      %v814 = vpack.c.b16 %v718, %v710
      %v815 = vpack.c.b16 %v719, %v711
      %v816 = vpack.c.b16 %v720, %v712
      %v817 = vpack.c.b16 %v721, %v713
      %v818 = vpack.c.b16 %v722, %v714
      %v819 = vpack.c.b16 %v723, %v715
      %v820 = vpack.c.b16 %v732, %v724
      %v821 = vpack.c.b16 %v733, %v725
      %v822 = vpack.c.b16 %v734, %v726
      %v823 = vpack.c.b16 %v735, %v727
      %v824 = vpack.c.b16 %v736, %v728
      %v825 = vpack.c.b16 %v737, %v729
      %v826 = vpack.c.b16 %v738, %v730
      %v827 = vpack.c.b16 %v739, %v731
      %v828 = vpack.c.b16 %v748, %v740
      %v829 = vpack.c.b16 %v749, %v741
      %v830 = vpack.c.b16 %v750, %v742
      %v831 = vpack.c.b16 %v751, %v743
      %v832 = vpack.c.b16 %v752, %v744
      %v833 = vpack.c.b16 %v753, %v745
      %v834 = vpack.c.b16 %v754, %v746
      %v835 = vpack.c.b16 %v755, %v747
      %v836 = vpack.c.b16 %v764, %v756
      %v837 = vpack.c.b16 %v765, %v757
      %v838 = vpack.c.b16 %v766, %v758
      %v839 = vpack.c.b16 %v767, %v759
      %v840 = vpack.c.b16 %v768, %v760
      %v841 = vpack.c.b16 %v769, %v761
      %v842 = vpack.c.b16 %v770, %v762
      %v843 = vpack.c.b16 %v771, %v763
      %v844 = vpack.c.b16 %v780, %v772
      %v845 = vpack.c.b16 %v781, %v773
      %v846 = vpack.c.b16 %v782, %v774
      %v847 = vpack.c.b16 %v783, %v775
      %v848 = vpack.c.b16 %v784, %v776
      %v849 = vpack.c.b16 %v785, %v777
      %v850 = vpack.c.b16 %v786, %v778
      %v851 = vpack.c.b16 %v787, %v779
      %916 = vmatprep.subr.bf16.mxu0 %v789
      %917 = vmatpush1.bf16.msra.mxu0 %v788
      %918 = vmatprep.subr.bf16.mxu0 %v797
      %919 = vmatpush1.bf16.msra.mxu0 %v796
      %920 = vmatprep.subr.bf16.mxu0 %v805
      %921 = vmatpush1.bf16.msra.mxu0 %v804
      %922 = vmatprep.subr.bf16.mxu0 %v813
      %923 = vmatpush1.bf16.msra.mxu0 %v812
      %924 = vmatprep.subr.bf16.mxu0 %v821
      %925 = vmatpush1.bf16.msra.mxu0 %v820
      %926 = vmatprep.subr.bf16.mxu0 %v829
      %927 = vmatpush1.bf16.msra.mxu0 %v828
      %928 = vmatprep.subr.bf16.mxu0 %v837
      %929 = vmatpush1.bf16.msra.mxu0 %v836
      %930 = vmatprep.subr.bf16.mxu0 %v845
      %931 = vmatpush1.bf16.msra.mxu0 %v844
      %932 = vmatprep.subr.bf16.mxu0 0
      %933 = vmatpush1.bf16.msra.mxu0 0
      %934 = vmatprep.subr.bf16.mxu0 0
      %935 = vmatpush1.bf16.msra.mxu0 0
      %936 = vmatprep.subr.bf16.mxu0 0
      %937 = vmatpush1.bf16.msra.mxu0 0
      %938 = vmatprep.subr.bf16.mxu0 0
      %939 = vmatpush1.bf16.msra.mxu0 0
      %940 = vmatprep.subr.bf16.mxu0 0
      %941 = vmatpush1.bf16.msra.mxu0 0
      %942 = vmatprep.subr.bf16.mxu0 0
      %943 = vmatpush1.bf16.msra.mxu0 0
      %944 = vmatprep.subr.bf16.mxu0 0
      %945 = vmatpush1.bf16.msra.mxu0 0
      %946 = vmatprep.subr.bf16.mxu0 0
      %947 = vmatpush1.bf16.msra.mxu0 0
      %948 = vmatprep.mubr.bf16.mxu0 0
      %949 = vmatmul.mubr.bf16.gmra.mrb[0].mxu0 %v527
      %v950 = vpop.f32.mrb[0].mxu0
      %v951 = vadd.f32 0.0, %v950
      %v952 = vpop.f32.mrb[0].mxu0
      %v953 = vadd.f32 0.0, %v952
      %v954 = vpop.f32.mrb[0].mxu0
      %v955 = vadd.f32 0.0, %v954
      %v956 = vpop.f32.mrb[0].mxu0
      %v957 = vadd.f32 0.0, %v956
      %958 = vmatprep.mubr.bf16.mxu0 0
      %959 = vmatmul.mubr.bf16.gmra.mrb[0].mxu0 %v528
      %v960 = vpop.f32.mrb[0].mxu0
      %v961 = vadd.f32 0.0, %v960
      %v962 = vpop.f32.mrb[0].mxu0
      %v963 = vadd.f32 0.0, %v962
      %v964 = vpop.f32.mrb[0].mxu0
      %v965 = vadd.f32 0.0, %v964
      %v966 = vpop.f32.mrb[0].mxu0
      %v967 = vadd.f32 0.0, %v966
      %968 = vmatprep.mubr.bf16.mxu0 0
      %969 = vmatmul.mubr.bf16.gmra.mrb[0].mxu0 %v529
      %v970 = vpop.f32.mrb[0].mxu0
      %v971 = vadd.f32 0.0, %v970
      %v972 = vpop.f32.mrb[0].mxu0
      %v973 = vadd.f32 0.0, %v972
      %v974 = vpop.f32.mrb[0].mxu0
      %v975 = vadd.f32 0.0, %v974
      %v976 = vpop.f32.mrb[0].mxu0
      %v977 = vadd.f32 0.0, %v976
      %978 = vmatprep.mubr.bf16.mxu0 0
      %979 = vmatmul.mubr.bf16.gmra.mrb[0].mxu0 %v530
      %v980 = vpop.f32.mrb[0].mxu0
      %v981 = vadd.f32 0.0, %v980
      %v982 = vpop.f32.mrb[0].mxu0
      %v983 = vadd.f32 0.0, %v982
      %v984 = vpop.f32.mrb[0].mxu0
      %v985 = vadd.f32 0.0, %v984
      %v986 = vpop.f32.mrb[0].mxu0
      %v987 = vadd.f32 0.0, %v986
      %988 = vdwg.mxu0
      %989 = vmatprep.subr.bf16.mxu0 %v791
      %990 = vmatpush1.bf16.msra.mxu0 %v790
      %991 = vmatprep.subr.bf16.mxu0 %v799
      %992 = vmatpush1.bf16.msra.mxu0 %v798
      %993 = vmatprep.subr.bf16.mxu0 %v807
      %994 = vmatpush1.bf16.msra.mxu0 %v806
      %995 = vmatprep.subr.bf16.mxu0 %v815
      %996 = vmatpush1.bf16.msra.mxu0 %v814
      %997 = vmatprep.subr.bf16.mxu0 %v823
      %998 = vmatpush1.bf16.msra.mxu0 %v822
      %999 = vmatprep.subr.bf16.mxu0 %v831
      %1000 = vmatpush1.bf16.msra.mxu0 %v830
      %1001 = vmatprep.subr.bf16.mxu0 %v839
      %1002 = vmatpush1.bf16.msra.mxu0 %v838
      %1003 = vmatprep.subr.bf16.mxu0 %v847
      %1004 = vmatpush1.bf16.msra.mxu0 %v846
      %1005 = vmatprep.subr.bf16.mxu0 0
      %1006 = vmatpush1.bf16.msra.mxu0 0
      %1007 = vmatprep.subr.bf16.mxu0 0
      %1008 = vmatpush1.bf16.msra.mxu0 0
      %1009 = vmatprep.subr.bf16.mxu0 0
      %1010 = vmatpush1.bf16.msra.mxu0 0
      %1011 = vmatprep.subr.bf16.mxu0 0
      %1012 = vmatpush1.bf16.msra.mxu0 0
      %1013 = vmatprep.subr.bf16.mxu0 0
      %1014 = vmatpush1.bf16.msra.mxu0 0
      %1015 = vmatprep.subr.bf16.mxu0 0
      %1016 = vmatpush1.bf16.msra.mxu0 0
      %1017 = vmatprep.subr.bf16.mxu0 0
      %1018 = vmatpush1.bf16.msra.mxu0 0
      %1019 = vmatprep.subr.bf16.mxu0 0
      %1020 = vmatpush1.bf16.msra.mxu0 0
      %1021 = vmatprep.mubr.bf16.mxu0 0
      %1022 = vmatmul.mubr.bf16.gmra.mrb[0].mxu0 %v527
      %v1023 = vpop.f32.mrb[0].mxu0
      %v1024 = vadd.f32 0.0, %v1023
      %v1025 = vpop.f32.mrb[0].mxu0
      %v1026 = vadd.f32 0.0, %v1025
      %v1027 = vpop.f32.mrb[0].mxu0
      %v1028 = vadd.f32 0.0, %v1027
      %v1029 = vpop.f32.mrb[0].mxu0
      %v1030 = vadd.f32 0.0, %v1029
      %1031 = vmatprep.mubr.bf16.mxu0 0
      %1032 = vmatmul.mubr.bf16.gmra.mrb[0].mxu0 %v528
      %v1033 = vpop.f32.mrb[0].mxu0
      %v1034 = vadd.f32 0.0, %v1033
      %v1035 = vpop.f32.mrb[0].mxu0
      %v1036 = vadd.f32 0.0, %v1035
      %v1037 = vpop.f32.mrb[0].mxu0
      %v1038 = vadd.f32 0.0, %v1037
      %v1039 = vpop.f32.mrb[0].mxu0
      %v1040 = vadd.f32 0.0, %v1039
      %1041 = vmatprep.mubr.bf16.mxu0 0
      %1042 = vmatmul.mubr.bf16.gmra.mrb[0].mxu0 %v529
      %v1043 = vpop.f32.mrb[0].mxu0
      %v1044 = vadd.f32 0.0, %v1043
      %v1045 = vpop.f32.mrb[0].mxu0
      %v1046 = vadd.f32 0.0, %v1045
      %v1047 = vpop.f32.mrb[0].mxu0
      %v1048 = vadd.f32 0.0, %v1047
      %v1049 = vpop.f32.mrb[0].mxu0
      %v1050 = vadd.f32 0.0, %v1049
      %1051 = vmatprep.mubr.bf16.mxu0 0
      %1052 = vmatmul.mubr.bf16.gmra.mrb[0].mxu0 %v530
      %v1053 = vpop.f32.mrb[0].mxu0
      %v1054 = vadd.f32 0.0, %v1053
      %v1055 = vpop.f32.mrb[0].mxu0
      %v1056 = vadd.f32 0.0, %v1055
      %v1057 = vpop.f32.mrb[0].mxu0
      %v1058 = vadd.f32 0.0, %v1057
      %v1059 = vpop.f32.mrb[0].mxu0
      %v1060 = vadd.f32 0.0, %v1059
      %1061 = vdwg.mxu0
      %1062 = vmatprep.subr.bf16.mxu0 %v793
      %1063 = vmatpush1.bf16.msra.mxu0 %v792
      %1064 = vmatprep.subr.bf16.mxu0 %v801
      %1065 = vmatpush1.bf16.msra.mxu0 %v800
      %1066 = vmatprep.subr.bf16.mxu0 %v809
      %1067 = vmatpush1.bf16.msra.mxu0 %v808
      %1068 = vmatprep.subr.bf16.mxu0 %v817
      %1069 = vmatpush1.bf16.msra.mxu0 %v816
      %1070 = vmatprep.subr.bf16.mxu0 %v825
      %1071 = vmatpush1.bf16.msra.mxu0 %v824
      %1072 = vmatprep.subr.bf16.mxu0 %v833
      %1073 = vmatpush1.bf16.msra.mxu0 %v832
      %1074 = vmatprep.subr.bf16.mxu0 %v841
      %1075 = vmatpush1.bf16.msra.mxu0 %v840
      %1076 = vmatprep.subr.bf16.mxu0 %v849
      %1077 = vmatpush1.bf16.msra.mxu0 %v848
      %1078 = vmatprep.subr.bf16.mxu0 0
      %1079 = vmatpush1.bf16.msra.mxu0 0
      %1080 = vmatprep.subr.bf16.mxu0 0
      %1081 = vmatpush1.bf16.msra.mxu0 0
      %1082 = vmatprep.subr.bf16.mxu0 0
      %1083 = vmatpush1.bf16.msra.mxu0 0
      %1084 = vmatprep.subr.bf16.mxu0 0
      %1085 = vmatpush1.bf16.msra.mxu0 0
      %1086 = vmatprep.subr.bf16.mxu0 0
      %1087 = vmatpush1.bf16.msra.mxu0 0
      %1088 = vmatprep.subr.bf16.mxu0 0
      %1089 = vmatpush1.bf16.msra.mxu0 0
      %1090 = vmatprep.subr.bf16.mxu0 0
      %1091 = vmatpush1.bf16.msra.mxu0 0
      %1092 = vmatprep.subr.bf16.mxu0 0
      %1093 = vmatpush1.bf16.msra.mxu0 0
      %1094 = vmatprep.mubr.bf16.mxu0 0
      %1095 = vmatmul.mubr.bf16.gmra.mrb[0].mxu0 %v527
      %v1096 = vpop.f32.mrb[0].mxu0
      %v1097 = vadd.f32 0.0, %v1096
      %v1098 = vpop.f32.mrb[0].mxu0
      %v1099 = vadd.f32 0.0, %v1098
      %v1100 = vpop.f32.mrb[0].mxu0
      %v1101 = vadd.f32 0.0, %v1100
      %v1102 = vpop.f32.mrb[0].mxu0
      %v1103 = vadd.f32 0.0, %v1102
      %1104 = vmatprep.mubr.bf16.mxu0 0
      %1105 = vmatmul.mubr.bf16.gmra.mrb[0].mxu0 %v528
      %v1106 = vpop.f32.mrb[0].mxu0
      %v1107 = vadd.f32 0.0, %v1106
      %v1108 = vpop.f32.mrb[0].mxu0
      %v1109 = vadd.f32 0.0, %v1108
      %v1110 = vpop.f32.mrb[0].mxu0
      %v1111 = vadd.f32 0.0, %v1110
      %v1112 = vpop.f32.mrb[0].mxu0
      %v1113 = vadd.f32 0.0, %v1112
      %1114 = vmatprep.mubr.bf16.mxu0 0
      %1115 = vmatmul.mubr.bf16.gmra.mrb[0].mxu0 %v529
      %v1116 = vpop.f32.mrb[0].mxu0
      %v1117 = vadd.f32 0.0, %v1116
      %v1118 = vpop.f32.mrb[0].mxu0
      %v1119 = vadd.f32 0.0, %v1118
      %v1120 = vpop.f32.mrb[0].mxu0
      %v1121 = vadd.f32 0.0, %v1120
      %v1122 = vpop.f32.mrb[0].mxu0
      %v1123 = vadd.f32 0.0, %v1122
      %1124 = vmatprep.mubr.bf16.mxu0 0
      %1125 = vmatmul.mubr.bf16.gmra.mrb[0].mxu0 %v530
      %v1126 = vpop.f32.mrb[0].mxu0
      %v1127 = vadd.f32 0.0, %v1126
      %v1128 = vpop.f32.mrb[0].mxu0
      %v1129 = vadd.f32 0.0, %v1128
      %v1130 = vpop.f32.mrb[0].mxu0
      %v1131 = vadd.f32 0.0, %v1130
      %v1132 = vpop.f32.mrb[0].mxu0
      %v1133 = vadd.f32 0.0, %v1132
      %1134 = vdwg.mxu0
      %1135 = vmatprep.subr.bf16.mxu0 %v795
      %1136 = vmatpush1.bf16.msra.mxu0 %v794
      %1137 = vmatprep.subr.bf16.mxu0 %v803
      %1138 = vmatpush1.bf16.msra.mxu0 %v802
      %1139 = vmatprep.subr.bf16.mxu0 %v811
      %1140 = vmatpush1.bf16.msra.mxu0 %v810
      %1141 = vmatprep.subr.bf16.mxu0 %v819
      %1142 = vmatpush1.bf16.msra.mxu0 %v818
      %1143 = vmatprep.subr.bf16.mxu0 %v827
      %1144 = vmatpush1.bf16.msra.mxu0 %v826
      %1145 = vmatprep.subr.bf16.mxu0 %v835
      %1146 = vmatpush1.bf16.msra.mxu0 %v834
      %1147 = vmatprep.subr.bf16.mxu0 %v843
      %1148 = vmatpush1.bf16.msra.mxu0 %v842
      %1149 = vmatprep.subr.bf16.mxu0 %v851
      %1150 = vmatpush1.bf16.msra.mxu0 %v850
      %1151 = vmatprep.subr.bf16.mxu0 0
      %1152 = vmatpush1.bf16.msra.mxu0 0
      %1153 = vmatprep.subr.bf16.mxu0 0
      %1154 = vmatpush1.bf16.msra.mxu0 0
      %1155 = vmatprep.subr.bf16.mxu0 0
      %1156 = vmatpush1.bf16.msra.mxu0 0
      %1157 = vmatprep.subr.bf16.mxu0 0
      %1158 = vmatpush1.bf16.msra.mxu0 0
      %1159 = vmatprep.subr.bf16.mxu0 0
      %1160 = vmatpush1.bf16.msra.mxu0 0
      %1161 = vmatprep.subr.bf16.mxu0 0
      %1162 = vmatpush1.bf16.msra.mxu0 0
      %1163 = vmatprep.subr.bf16.mxu0 0
      %1164 = vmatpush1.bf16.msra.mxu0 0
      %1165 = vmatprep.subr.bf16.mxu0 0
      %1166 = vmatpush1.bf16.msra.mxu0 0
      %1167 = vmatprep.mubr.bf16.mxu0 0
      %1168 = vmatmul.mubr.bf16.gmra.mrb[0].mxu0 %v527
      %v1169 = vpop.f32.mrb[0].mxu0
      %v1170 = vadd.f32 0.0, %v1169
      %v1171 = vpop.f32.mrb[0].mxu0
      %v1172 = vadd.f32 0.0, %v1171
      %v1173 = vpop.f32.mrb[0].mxu0
      %v1174 = vadd.f32 0.0, %v1173
      %v1175 = vpop.f32.mrb[0].mxu0
      %v1176 = vadd.f32 0.0, %v1175
      %1177 = vmatprep.mubr.bf16.mxu0 0
      %1178 = vmatmul.mubr.bf16.gmra.mrb[0].mxu0 %v528
      %v1179 = vpop.f32.mrb[0].mxu0
      %v1180 = vadd.f32 0.0, %v1179
      %v1181 = vpop.f32.mrb[0].mxu0
      %v1182 = vadd.f32 0.0, %v1181
      %v1183 = vpop.f32.mrb[0].mxu0
      %v1184 = vadd.f32 0.0, %v1183
      %v1185 = vpop.f32.mrb[0].mxu0
      %v1186 = vadd.f32 0.0, %v1185
      %1187 = vmatprep.mubr.bf16.mxu0 0
      %1188 = vmatmul.mubr.bf16.gmra.mrb[0].mxu0 %v529
      %v1189 = vpop.f32.mrb[0].mxu0
      %v1190 = vadd.f32 0.0, %v1189
      %v1191 = vpop.f32.mrb[0].mxu0
      %v1192 = vadd.f32 0.0, %v1191
      %v1193 = vpop.f32.mrb[0].mxu0
      %v1194 = vadd.f32 0.0, %v1193
      %v1195 = vpop.f32.mrb[0].mxu0
      %v1196 = vadd.f32 0.0, %v1195
      %1197 = vmatprep.mubr.bf16.mxu0 0
      %1198 = vmatmul.mubr.bf16.gmra.mrb[0].mxu0 %v530
      %v1199 = vpop.f32.mrb[0].mxu0
      %v1200 = vadd.f32 0.0, %v1199
      %v1201 = vpop.f32.mrb[0].mxu0
      %v1202 = vadd.f32 0.0, %v1201
      %v1203 = vpop.f32.mrb[0].mxu0
      %v1204 = vadd.f32 0.0, %v1203
      %v1205 = vpop.f32.mrb[0].mxu0
      %v1206 = vadd.f32 0.0, %v1205
      %1207 = vdwg.mxu0
      %v1272 = vunpack.c.l.b16 %v463
      %v1273 = vunpack.c.h.b16 %v463
      %v1274 = vunpack.c.l.b16 %v464
      %v1275 = vunpack.c.h.b16 %v464
      %v1276 = vunpack.c.l.b16 %v465
      %v1277 = vunpack.c.h.b16 %v465
      %v1278 = vunpack.c.l.b16 %v466
      %v1279 = vunpack.c.h.b16 %v466
      %v1280 = vunpack.c.l.b16 %v467
      %v1281 = vunpack.c.h.b16 %v467
      %v1282 = vunpack.c.l.b16 %v468
      %v1283 = vunpack.c.h.b16 %v468
      %v1284 = vunpack.c.l.b16 %v469
      %v1285 = vunpack.c.h.b16 %v469
      %v1286 = vunpack.c.l.b16 %v470
      %v1287 = vunpack.c.h.b16 %v470
      %v1288 = vunpack.c.l.b16 %v471
      %v1289 = vunpack.c.h.b16 %v471
      %v1290 = vunpack.c.l.b16 %v472
      %v1291 = vunpack.c.h.b16 %v472
      %v1292 = vunpack.c.l.b16 %v473
      %v1293 = vunpack.c.h.b16 %v473
      %v1294 = vunpack.c.l.b16 %v474
      %v1295 = vunpack.c.h.b16 %v474
      %v1296 = vunpack.c.l.b16 %v475
      %v1297 = vunpack.c.h.b16 %v475
      %v1298 = vunpack.c.l.b16 %v476
      %v1299 = vunpack.c.h.b16 %v476
      %v1300 = vunpack.c.l.b16 %v477
      %v1301 = vunpack.c.h.b16 %v477
      %v1302 = vunpack.c.l.b16 %v478
      %v1303 = vunpack.c.h.b16 %v478
      %v1304 = vunpack.c.l.b16 %v479
      %v1305 = vunpack.c.h.b16 %v479
      %v1306 = vunpack.c.l.b16 %v480
      %v1307 = vunpack.c.h.b16 %v480
      %v1308 = vunpack.c.l.b16 %v481
      %v1309 = vunpack.c.h.b16 %v481
      %v1310 = vunpack.c.l.b16 %v482
      %v1311 = vunpack.c.h.b16 %v482
      %v1312 = vunpack.c.l.b16 %v483
      %v1313 = vunpack.c.h.b16 %v483
      %v1314 = vunpack.c.l.b16 %v484
      %v1315 = vunpack.c.h.b16 %v484
      %v1316 = vunpack.c.l.b16 %v485
      %v1317 = vunpack.c.h.b16 %v485
      %v1318 = vunpack.c.l.b16 %v486
      %v1319 = vunpack.c.h.b16 %v486
      %v1320 = vunpack.c.l.b16 %v487
      %v1321 = vunpack.c.h.b16 %v487
      %v1322 = vunpack.c.l.b16 %v488
      %v1323 = vunpack.c.h.b16 %v488
      %v1324 = vunpack.c.l.b16 %v489
      %v1325 = vunpack.c.h.b16 %v489
      %v1326 = vunpack.c.l.b16 %v490
      %v1327 = vunpack.c.h.b16 %v490
      %v1328 = vunpack.c.l.b16 %v491
      %v1329 = vunpack.c.h.b16 %v491
      %v1330 = vunpack.c.l.b16 %v492
      %v1331 = vunpack.c.h.b16 %v492
      %v1332 = vunpack.c.l.b16 %v493
      %v1333 = vunpack.c.h.b16 %v493
      %v1334 = vunpack.c.l.b16 %v494
      %v1335 = vunpack.c.h.b16 %v494
      %v1336 = vunpack.c.l.b16 %v495
      %v1337 = vunpack.c.h.b16 %v495
      %v1338 = vunpack.c.l.b16 %v496
      %v1339 = vunpack.c.h.b16 %v496
      %v1340 = vunpack.c.l.b16 %v497
      %v1341 = vunpack.c.h.b16 %v497
      %v1342 = vunpack.c.l.b16 %v498
      %v1343 = vunpack.c.h.b16 %v498
      %v1344 = vunpack.c.l.b16 %v499
      %v1345 = vunpack.c.h.b16 %v499
      %v1346 = vunpack.c.l.b16 %v500
      %v1347 = vunpack.c.h.b16 %v500
      %v1348 = vunpack.c.l.b16 %v501
      %v1349 = vunpack.c.h.b16 %v501
      %v1350 = vunpack.c.l.b16 %v502
      %v1351 = vunpack.c.h.b16 %v502
      %v1352 = vunpack.c.l.b16 %v503
      %v1353 = vunpack.c.h.b16 %v503
      %v1354 = vunpack.c.l.b16 %v504
      %v1355 = vunpack.c.h.b16 %v504
      %v1356 = vunpack.c.l.b16 %v505
      %v1357 = vunpack.c.h.b16 %v505
      %v1358 = vunpack.c.l.b16 %v506
      %v1359 = vunpack.c.h.b16 %v506
      %v1360 = vunpack.c.l.b16 %v507
      %v1361 = vunpack.c.h.b16 %v507
      %v1362 = vunpack.c.l.b16 %v508
      %v1363 = vunpack.c.h.b16 %v508
      %v1364 = vunpack.c.l.b16 %v509
      %v1365 = vunpack.c.h.b16 %v509
      %v1366 = vunpack.c.l.b16 %v510
      %v1367 = vunpack.c.h.b16 %v510
      %v1368 = vunpack.c.l.b16 %v511
      %v1369 = vunpack.c.h.b16 %v511
      %v1370 = vunpack.c.l.b16 %v512
      %v1371 = vunpack.c.h.b16 %v512
      %v1372 = vunpack.c.l.b16 %v513
      %v1373 = vunpack.c.h.b16 %v513
      %v1374 = vunpack.c.l.b16 %v514
      %v1375 = vunpack.c.h.b16 %v514
      %v1376 = vunpack.c.l.b16 %v515
      %v1377 = vunpack.c.h.b16 %v515
      %v1378 = vunpack.c.l.b16 %v516
      %v1379 = vunpack.c.h.b16 %v516
      %v1380 = vunpack.c.l.b16 %v517
      %v1381 = vunpack.c.h.b16 %v517
      %v1382 = vunpack.c.l.b16 %v518
      %v1383 = vunpack.c.h.b16 %v518
      %v1384 = vunpack.c.l.b16 %v519
      %v1385 = vunpack.c.h.b16 %v519
      %v1386 = vunpack.c.l.b16 %v520
      %v1387 = vunpack.c.h.b16 %v520
      %v1388 = vunpack.c.l.b16 %v521
      %v1389 = vunpack.c.h.b16 %v521
      %v1390 = vunpack.c.l.b16 %v522
      %v1391 = vunpack.c.h.b16 %v522
      %v1392 = vunpack.c.l.b16 %v523
      %v1393 = vunpack.c.h.b16 %v523
      %v1394 = vunpack.c.l.b16 %v524
      %v1395 = vunpack.c.h.b16 %v524
      %v1396 = vunpack.c.l.b16 %v525
      %v1397 = vunpack.c.h.b16 %v525
      %v1398 = vunpack.c.l.b16 %v526
      %v1399 = vunpack.c.h.b16 %v526
      %v1400 = vpack.c.b16 %v1280, %v1272
      %v1401 = vpack.c.b16 %v1281, %v1273
      %v1402 = vpack.c.b16 %v1282, %v1274
      %v1403 = vpack.c.b16 %v1283, %v1275
      %v1404 = vpack.c.b16 %v1284, %v1276
      %v1405 = vpack.c.b16 %v1285, %v1277
      %v1406 = vpack.c.b16 %v1286, %v1278
      %v1407 = vpack.c.b16 %v1287, %v1279
      %v1408 = vpack.c.b16 %v1296, %v1288
      %v1409 = vpack.c.b16 %v1297, %v1289
      %v1410 = vpack.c.b16 %v1298, %v1290
      %v1411 = vpack.c.b16 %v1299, %v1291
      %v1412 = vpack.c.b16 %v1300, %v1292
      %v1413 = vpack.c.b16 %v1301, %v1293
      %v1414 = vpack.c.b16 %v1302, %v1294
      %v1415 = vpack.c.b16 %v1303, %v1295
      %v1416 = vpack.c.b16 %v1312, %v1304
      %v1417 = vpack.c.b16 %v1313, %v1305
      %v1418 = vpack.c.b16 %v1314, %v1306
      %v1419 = vpack.c.b16 %v1315, %v1307
      %v1420 = vpack.c.b16 %v1316, %v1308
      %v1421 = vpack.c.b16 %v1317, %v1309
      %v1422 = vpack.c.b16 %v1318, %v1310
      %v1423 = vpack.c.b16 %v1319, %v1311
      %v1424 = vpack.c.b16 %v1328, %v1320
      %v1425 = vpack.c.b16 %v1329, %v1321
      %v1426 = vpack.c.b16 %v1330, %v1322
      %v1427 = vpack.c.b16 %v1331, %v1323
      %v1428 = vpack.c.b16 %v1332, %v1324
      %v1429 = vpack.c.b16 %v1333, %v1325
      %v1430 = vpack.c.b16 %v1334, %v1326
      %v1431 = vpack.c.b16 %v1335, %v1327
      %v1432 = vpack.c.b16 %v1344, %v1336
      %v1433 = vpack.c.b16 %v1345, %v1337
      %v1434 = vpack.c.b16 %v1346, %v1338
      %v1435 = vpack.c.b16 %v1347, %v1339
      %v1436 = vpack.c.b16 %v1348, %v1340
      %v1437 = vpack.c.b16 %v1349, %v1341
      %v1438 = vpack.c.b16 %v1350, %v1342
      %v1439 = vpack.c.b16 %v1351, %v1343
      %v1440 = vpack.c.b16 %v1360, %v1352
      %v1441 = vpack.c.b16 %v1361, %v1353
      %v1442 = vpack.c.b16 %v1362, %v1354
      %v1443 = vpack.c.b16 %v1363, %v1355
      %v1444 = vpack.c.b16 %v1364, %v1356
      %v1445 = vpack.c.b16 %v1365, %v1357
      %v1446 = vpack.c.b16 %v1366, %v1358
      %v1447 = vpack.c.b16 %v1367, %v1359
      %v1448 = vpack.c.b16 %v1376, %v1368
      %v1449 = vpack.c.b16 %v1377, %v1369
      %v1450 = vpack.c.b16 %v1378, %v1370
      %v1451 = vpack.c.b16 %v1379, %v1371
      %v1452 = vpack.c.b16 %v1380, %v1372
      %v1453 = vpack.c.b16 %v1381, %v1373
      %v1454 = vpack.c.b16 %v1382, %v1374
      %v1455 = vpack.c.b16 %v1383, %v1375
      %v1456 = vpack.c.b16 %v1392, %v1384
      %v1457 = vpack.c.b16 %v1393, %v1385
      %v1458 = vpack.c.b16 %v1394, %v1386
      %v1459 = vpack.c.b16 %v1395, %v1387
      %v1460 = vpack.c.b16 %v1396, %v1388
      %v1461 = vpack.c.b16 %v1397, %v1389
      %v1462 = vpack.c.b16 %v1398, %v1390
      %v1463 = vpack.c.b16 %v1399, %v1391
      %1528 = vmatprep.subr.bf16.mxu0 %v1401
      %1529 = vmatpush1.bf16.msra.mxu0 %v1400
      %1530 = vmatprep.subr.bf16.mxu0 %v1409
      %1531 = vmatpush1.bf16.msra.mxu0 %v1408
      %1532 = vmatprep.subr.bf16.mxu0 %v1417
      %1533 = vmatpush1.bf16.msra.mxu0 %v1416
      %1534 = vmatprep.subr.bf16.mxu0 %v1425
      %1535 = vmatpush1.bf16.msra.mxu0 %v1424
      %1536 = vmatprep.subr.bf16.mxu0 %v1433
      %1537 = vmatpush1.bf16.msra.mxu0 %v1432
      %1538 = vmatprep.subr.bf16.mxu0 %v1441
      %1539 = vmatpush1.bf16.msra.mxu0 %v1440
      %1540 = vmatprep.subr.bf16.mxu0 %v1449
      %1541 = vmatpush1.bf16.msra.mxu0 %v1448
      %1542 = vmatprep.subr.bf16.mxu0 %v1457
      %1543 = vmatpush1.bf16.msra.mxu0 %v1456
      %1544 = vmatprep.subr.bf16.mxu0 0
      %1545 = vmatpush1.bf16.msra.mxu0 0
      %1546 = vmatprep.subr.bf16.mxu0 0
      %1547 = vmatpush1.bf16.msra.mxu0 0
      %1548 = vmatprep.subr.bf16.mxu0 0
      %1549 = vmatpush1.bf16.msra.mxu0 0
      %1550 = vmatprep.subr.bf16.mxu0 0
      %1551 = vmatpush1.bf16.msra.mxu0 0
      %1552 = vmatprep.subr.bf16.mxu0 0
      %1553 = vmatpush1.bf16.msra.mxu0 0
      %1554 = vmatprep.subr.bf16.mxu0 0
      %1555 = vmatpush1.bf16.msra.mxu0 0
      %1556 = vmatprep.subr.bf16.mxu0 0
      %1557 = vmatpush1.bf16.msra.mxu0 0
      %1558 = vmatprep.subr.bf16.mxu0 0
      %1559 = vmatpush1.bf16.msra.mxu0 0
      %1560 = vmatprep.mubr.bf16.mxu0 0
      %1561 = vmatmul.mubr.bf16.gmra.mrb[0].mxu0 %v459
      %v1562 = vpop.f32.mrb[0].mxu0
      %v1563 = vadd.f32 %v951, %v1562
      %v1564 = vpop.f32.mrb[0].mxu0
      %v1565 = vadd.f32 %v953, %v1564
      %v1566 = vpop.f32.mrb[0].mxu0
      %v1567 = vadd.f32 %v955, %v1566
      %v1568 = vpop.f32.mrb[0].mxu0
      %v1569 = vadd.f32 %v957, %v1568
      %1570 = vmatprep.mubr.bf16.mxu0 0
      %1571 = vmatmul.mubr.bf16.gmra.mrb[0].mxu0 %v460
      %v1572 = vpop.f32.mrb[0].mxu0
      %v1573 = vadd.f32 %v961, %v1572
      %v1574 = vpop.f32.mrb[0].mxu0
      %v1575 = vadd.f32 %v963, %v1574
      %v1576 = vpop.f32.mrb[0].mxu0
      %v1577 = vadd.f32 %v965, %v1576
      %v1578 = vpop.f32.mrb[0].mxu0
      %v1579 = vadd.f32 %v967, %v1578
      %1580 = vmatprep.mubr.bf16.mxu0 0
      %1581 = vmatmul.mubr.bf16.gmra.mrb[0].mxu0 %v461
      %v1582 = vpop.f32.mrb[0].mxu0
      %v1583 = vadd.f32 %v971, %v1582
      %v1584 = vpop.f32.mrb[0].mxu0
      %v1585 = vadd.f32 %v973, %v1584
      %v1586 = vpop.f32.mrb[0].mxu0
      %v1587 = vadd.f32 %v975, %v1586
      %v1588 = vpop.f32.mrb[0].mxu0
      %v1589 = vadd.f32 %v977, %v1588
      %1590 = vmatprep.mubr.bf16.mxu0 0
      %1591 = vmatmul.mubr.bf16.gmra.mrb[0].mxu0 %v462
      %v1592 = vpop.f32.mrb[0].mxu0
      %v1593 = vadd.f32 %v981, %v1592
      %v1594 = vpop.f32.mrb[0].mxu0
      %v1595 = vadd.f32 %v983, %v1594
      %v1596 = vpop.f32.mrb[0].mxu0
      %v1597 = vadd.f32 %v985, %v1596
      %v1598 = vpop.f32.mrb[0].mxu0
      %v1599 = vadd.f32 %v987, %v1598
      %1600 = vdwg.mxu0
      %1601 = vmatprep.subr.bf16.mxu0 %v1403
      %1602 = vmatpush1.bf16.msra.mxu0 %v1402
      %1603 = vmatprep.subr.bf16.mxu0 %v1411
      %1604 = vmatpush1.bf16.msra.mxu0 %v1410
      %1605 = vmatprep.subr.bf16.mxu0 %v1419
      %1606 = vmatpush1.bf16.msra.mxu0 %v1418
      %1607 = vmatprep.subr.bf16.mxu0 %v1427
      %1608 = vmatpush1.bf16.msra.mxu0 %v1426
      %1609 = vmatprep.subr.bf16.mxu0 %v1435
      %1610 = vmatpush1.bf16.msra.mxu0 %v1434
      %1611 = vmatprep.subr.bf16.mxu0 %v1443
      %1612 = vmatpush1.bf16.msra.mxu0 %v1442
      %1613 = vmatprep.subr.bf16.mxu0 %v1451
      %1614 = vmatpush1.bf16.msra.mxu0 %v1450
      %1615 = vmatprep.subr.bf16.mxu0 %v1459
      %1616 = vmatpush1.bf16.msra.mxu0 %v1458
      %1617 = vmatprep.subr.bf16.mxu0 0
      %1618 = vmatpush1.bf16.msra.mxu0 0
      %1619 = vmatprep.subr.bf16.mxu0 0
      %1620 = vmatpush1.bf16.msra.mxu0 0
      %1621 = vmatprep.subr.bf16.mxu0 0
      %1622 = vmatpush1.bf16.msra.mxu0 0
      %1623 = vmatprep.subr.bf16.mxu0 0
      %1624 = vmatpush1.bf16.msra.mxu0 0
      %1625 = vmatprep.subr.bf16.mxu0 0
      %1626 = vmatpush1.bf16.msra.mxu0 0
      %1627 = vmatprep.subr.bf16.mxu0 0
      %1628 = vmatpush1.bf16.msra.mxu0 0
      %1629 = vmatprep.subr.bf16.mxu0 0
      %1630 = vmatpush1.bf16.msra.mxu0 0
      %1631 = vmatprep.subr.bf16.mxu0 0
      %1632 = vmatpush1.bf16.msra.mxu0 0
      %1633 = vmatprep.mubr.bf16.mxu0 0
      %1634 = vmatmul.mubr.bf16.gmra.mrb[0].mxu0 %v459
      %v1635 = vpop.f32.mrb[0].mxu0
      %v1636 = vadd.f32 %v1024, %v1635
      %v1637 = vpop.f32.mrb[0].mxu0
      %v1638 = vadd.f32 %v1026, %v1637
      %v1639 = vpop.f32.mrb[0].mxu0
      %v1640 = vadd.f32 %v1028, %v1639
      %v1641 = vpop.f32.mrb[0].mxu0
      %v1642 = vadd.f32 %v1030, %v1641
      %1643 = vmatprep.mubr.bf16.mxu0 0
      %1644 = vmatmul.mubr.bf16.gmra.mrb[0].mxu0 %v460
      %v1645 = vpop.f32.mrb[0].mxu0
      %v1646 = vadd.f32 %v1034, %v1645
      %v1647 = vpop.f32.mrb[0].mxu0
      %v1648 = vadd.f32 %v1036, %v1647
      %v1649 = vpop.f32.mrb[0].mxu0
      %v1650 = vadd.f32 %v1038, %v1649
      %v1651 = vpop.f32.mrb[0].mxu0
      %v1652 = vadd.f32 %v1040, %v1651
      %1653 = vmatprep.mubr.bf16.mxu0 0
      %1654 = vmatmul.mubr.bf16.gmra.mrb[0].mxu0 %v461
      %v1655 = vpop.f32.mrb[0].mxu0
      %v1656 = vadd.f32 %v1044, %v1655
      %v1657 = vpop.f32.mrb[0].mxu0
      %v1658 = vadd.f32 %v1046, %v1657
      %v1659 = vpop.f32.mrb[0].mxu0
      %v1660 = vadd.f32 %v1048, %v1659
      %v1661 = vpop.f32.mrb[0].mxu0
      %v1662 = vadd.f32 %v1050, %v1661
      %1663 = vmatprep.mubr.bf16.mxu0 0
      %1664 = vmatmul.mubr.bf16.gmra.mrb[0].mxu0 %v462
      %v1665 = vpop.f32.mrb[0].mxu0
      %v1666 = vadd.f32 %v1054, %v1665
      %v1667 = vpop.f32.mrb[0].mxu0
      %v1668 = vadd.f32 %v1056, %v1667
      %v1669 = vpop.f32.mrb[0].mxu0
      %v1670 = vadd.f32 %v1058, %v1669
      %v1671 = vpop.f32.mrb[0].mxu0
      %v1672 = vadd.f32 %v1060, %v1671
      %1673 = vdwg.mxu0
      %1674 = vmatprep.subr.bf16.mxu0 %v1405
      %1675 = vmatpush1.bf16.msra.mxu0 %v1404
      %1676 = vmatprep.subr.bf16.mxu0 %v1413
      %1677 = vmatpush1.bf16.msra.mxu0 %v1412
      %1678 = vmatprep.subr.bf16.mxu0 %v1421
      %1679 = vmatpush1.bf16.msra.mxu0 %v1420
      %1680 = vmatprep.subr.bf16.mxu0 %v1429
      %1681 = vmatpush1.bf16.msra.mxu0 %v1428
      %1682 = vmatprep.subr.bf16.mxu0 %v1437
      %1683 = vmatpush1.bf16.msra.mxu0 %v1436
      %1684 = vmatprep.subr.bf16.mxu0 %v1445
      %1685 = vmatpush1.bf16.msra.mxu0 %v1444
      %1686 = vmatprep.subr.bf16.mxu0 %v1453
      %1687 = vmatpush1.bf16.msra.mxu0 %v1452
      %1688 = vmatprep.subr.bf16.mxu0 %v1461
      %1689 = vmatpush1.bf16.msra.mxu0 %v1460
      %1690 = vmatprep.subr.bf16.mxu0 0
      %1691 = vmatpush1.bf16.msra.mxu0 0
      %1692 = vmatprep.subr.bf16.mxu0 0
      %1693 = vmatpush1.bf16.msra.mxu0 0
      %1694 = vmatprep.subr.bf16.mxu0 0
      %1695 = vmatpush1.bf16.msra.mxu0 0
      %1696 = vmatprep.subr.bf16.mxu0 0
      %1697 = vmatpush1.bf16.msra.mxu0 0
      %1698 = vmatprep.subr.bf16.mxu0 0
      %1699 = vmatpush1.bf16.msra.mxu0 0
      %1700 = vmatprep.subr.bf16.mxu0 0
      %1701 = vmatpush1.bf16.msra.mxu0 0
      %1702 = vmatprep.subr.bf16.mxu0 0
      %1703 = vmatpush1.bf16.msra.mxu0 0
      %1704 = vmatprep.subr.bf16.mxu0 0
      %1705 = vmatpush1.bf16.msra.mxu0 0
      %1706 = vmatprep.mubr.bf16.mxu0 0
      %1707 = vmatmul.mubr.bf16.gmra.mrb[0].mxu0 %v459
      %v1708 = vpop.f32.mrb[0].mxu0
      %v1709 = vadd.f32 %v1097, %v1708
      %v1710 = vpop.f32.mrb[0].mxu0
      %v1711 = vadd.f32 %v1099, %v1710
      %v1712 = vpop.f32.mrb[0].mxu0
      %v1713 = vadd.f32 %v1101, %v1712
      %v1714 = vpop.f32.mrb[0].mxu0
      %v1715 = vadd.f32 %v1103, %v1714
      %1716 = vmatprep.mubr.bf16.mxu0 0
      %1717 = vmatmul.mubr.bf16.gmra.mrb[0].mxu0 %v460
      %v1718 = vpop.f32.mrb[0].mxu0
      %v1719 = vadd.f32 %v1107, %v1718
      %v1720 = vpop.f32.mrb[0].mxu0
      %v1721 = vadd.f32 %v1109, %v1720
      %v1722 = vpop.f32.mrb[0].mxu0
      %v1723 = vadd.f32 %v1111, %v1722
      %v1724 = vpop.f32.mrb[0].mxu0
      %v1725 = vadd.f32 %v1113, %v1724
      %1726 = vmatprep.mubr.bf16.mxu0 0
      %1727 = vmatmul.mubr.bf16.gmra.mrb[0].mxu0 %v461
      %v1728 = vpop.f32.mrb[0].mxu0
      %v1729 = vadd.f32 %v1117, %v1728
      %v1730 = vpop.f32.mrb[0].mxu0
      %v1731 = vadd.f32 %v1119, %v1730
      %v1732 = vpop.f32.mrb[0].mxu0
      %v1733 = vadd.f32 %v1121, %v1732
      %v1734 = vpop.f32.mrb[0].mxu0
      %v1735 = vadd.f32 %v1123, %v1734
      %1736 = vmatprep.mubr.bf16.mxu0 0
      %1737 = vmatmul.mubr.bf16.gmra.mrb[0].mxu0 %v462
      %v1738 = vpop.f32.mrb[0].mxu0
      %v1739 = vadd.f32 %v1127, %v1738
      %v1740 = vpop.f32.mrb[0].mxu0
      %v1741 = vadd.f32 %v1129, %v1740
      %v1742 = vpop.f32.mrb[0].mxu0
      %v1743 = vadd.f32 %v1131, %v1742
      %v1744 = vpop.f32.mrb[0].mxu0
      %v1745 = vadd.f32 %v1133, %v1744
      %1746 = vdwg.mxu0
      %1747 = vmatprep.subr.bf16.mxu0 %v1407
      %1748 = vmatpush1.bf16.msra.mxu0 %v1406
      %1749 = vmatprep.subr.bf16.mxu0 %v1415
      %1750 = vmatpush1.bf16.msra.mxu0 %v1414
      %1751 = vmatprep.subr.bf16.mxu0 %v1423
      %1752 = vmatpush1.bf16.msra.mxu0 %v1422
      %1753 = vmatprep.subr.bf16.mxu0 %v1431
      %1754 = vmatpush1.bf16.msra.mxu0 %v1430
      %1755 = vmatprep.subr.bf16.mxu0 %v1439
      %1756 = vmatpush1.bf16.msra.mxu0 %v1438
      %1757 = vmatprep.subr.bf16.mxu0 %v1447
      %1758 = vmatpush1.bf16.msra.mxu0 %v1446
      %1759 = vmatprep.subr.bf16.mxu0 %v1455
      %1760 = vmatpush1.bf16.msra.mxu0 %v1454
      %1761 = vmatprep.subr.bf16.mxu0 %v1463
      %1762 = vmatpush1.bf16.msra.mxu0 %v1462
      %1763 = vmatprep.subr.bf16.mxu0 0
      %1764 = vmatpush1.bf16.msra.mxu0 0
      %1765 = vmatprep.subr.bf16.mxu0 0
      %1766 = vmatpush1.bf16.msra.mxu0 0
      %1767 = vmatprep.subr.bf16.mxu0 0
      %1768 = vmatpush1.bf16.msra.mxu0 0
      %1769 = vmatprep.subr.bf16.mxu0 0
      %1770 = vmatpush1.bf16.msra.mxu0 0
      %1771 = vmatprep.subr.bf16.mxu0 0
      %1772 = vmatpush1.bf16.msra.mxu0 0
      %1773 = vmatprep.subr.bf16.mxu0 0
      %1774 = vmatpush1.bf16.msra.mxu0 0
      %1775 = vmatprep.subr.bf16.mxu0 0
      %1776 = vmatpush1.bf16.msra.mxu0 0
      %1777 = vmatprep.subr.bf16.mxu0 0
      %1778 = vmatpush1.bf16.msra.mxu0 0
      %1779 = vmatprep.mubr.bf16.mxu0 0
      %1780 = vmatmul.mubr.bf16.gmra.mrb[0].mxu0 %v459
      %v1781 = vpop.f32.mrb[0].mxu0
      %v1782 = vadd.f32 %v1170, %v1781
      %v1783 = vpop.f32.mrb[0].mxu0
      %v1784 = vadd.f32 %v1172, %v1783
      %v1785 = vpop.f32.mrb[0].mxu0
      %v1786 = vadd.f32 %v1174, %v1785
      %v1787 = vpop.f32.mrb[0].mxu0
      %v1788 = vadd.f32 %v1176, %v1787
      %1789 = vmatprep.mubr.bf16.mxu0 0
      %1790 = vmatmul.mubr.bf16.gmra.mrb[0].mxu0 %v460
      %v1791 = vpop.f32.mrb[0].mxu0
      %v1792 = vadd.f32 %v1180, %v1791
      %v1793 = vpop.f32.mrb[0].mxu0
      %v1794 = vadd.f32 %v1182, %v1793
      %v1795 = vpop.f32.mrb[0].mxu0
      %v1796 = vadd.f32 %v1184, %v1795
      %v1797 = vpop.f32.mrb[0].mxu0
      %v1798 = vadd.f32 %v1186, %v1797
      %1799 = vmatprep.mubr.bf16.mxu0 0
      %1800 = vmatmul.mubr.bf16.gmra.mrb[0].mxu0 %v461
      %v1801 = vpop.f32.mrb[0].mxu0
      %v1802 = vadd.f32 %v1190, %v1801
      %v1803 = vpop.f32.mrb[0].mxu0
      %v1804 = vadd.f32 %v1192, %v1803
      %v1805 = vpop.f32.mrb[0].mxu0
      %v1806 = vadd.f32 %v1194, %v1805
      %v1807 = vpop.f32.mrb[0].mxu0
      %v1808 = vadd.f32 %v1196, %v1807
      %1809 = vmatprep.mubr.bf16.mxu0 0
      %1810 = vmatmul.mubr.bf16.gmra.mrb[0].mxu0 %v462
      %v1811 = vpop.f32.mrb[0].mxu0
      %v1812 = vadd.f32 %v1200, %v1811
      %v1813 = vpop.f32.mrb[0].mxu0
      %v1814 = vadd.f32 %v1202, %v1813
      %v1815 = vpop.f32.mrb[0].mxu0
      %v1816 = vadd.f32 %v1204, %v1815
      %v1817 = vpop.f32.mrb[0].mxu0
      %v1818 = vadd.f32 %v1206, %v1817
      %1819 = vdwg.mxu0
      %v1820 = vld [vmem:[%s4] sm:$0xff]
      %v1822 = vlaneseq
      %v1823 = vshrl.u32 %v1822, 7
      %v1824 = vsub.s32 0, %v1823
      %v1825 = vrot.slane %v1820, %v1824
      %v1826 = vlaneseq
      %v1827 = vshrl.u32 %v1826, 7
      %v1828 = vsub.s32 1, %v1827
      %v1829 = vrot.slane %v1820, %v1828
      %v1830 = vlaneseq
      %v1831 = vshrl.u32 %v1830, 7
      %v1832 = vsub.s32 2, %v1831
      %v1833 = vrot.slane %v1820, %v1832
      %v1834 = vlaneseq
      %v1835 = vshrl.u32 %v1834, 7
      %v1836 = vsub.s32 3, %v1835
      %v1837 = vrot.slane %v1820, %v1836
      %v1838 = vlaneseq
      %v1839 = vshrl.u32 %v1838, 7
      %v1840 = vsub.s32 4, %v1839
      %v1841 = vrot.slane %v1820, %v1840
      %v1842 = vlaneseq
      %v1843 = vshrl.u32 %v1842, 7
      %v1844 = vsub.s32 5, %v1843
      %v1845 = vrot.slane %v1820, %v1844
      %v1846 = vlaneseq
      %v1847 = vshrl.u32 %v1846, 7
      %v1848 = vsub.s32 6, %v1847
      %v1849 = vrot.slane %v1820, %v1848
      %v1850 = vlaneseq
      %v1851 = vshrl.u32 %v1850, 7
      %v1852 = vsub.s32 7, %v1851
      %v1853 = vrot.slane %v1820, %v1852
      %v1862 = vadd.f32 %v1563, %v1825
      %v1863 = vadd.f32 %v1565, %v1829
      %v1864 = vadd.f32 %v1636, %v1833
      %v1865 = vadd.f32 %v1638, %v1837
      %v1866 = vadd.f32 %v1709, %v1841
      %v1867 = vadd.f32 %v1711, %v1845
      %v1868 = vadd.f32 %v1782, %v1849
      %v1869 = vadd.f32 %v1784, %v1853
      %v1870 = vadd.f32 %v1567, %v1825
      %v1871 = vadd.f32 %v1569, %v1829
      %v1872 = vadd.f32 %v1640, %v1833
      %v1873 = vadd.f32 %v1642, %v1837
      %v1874 = vadd.f32 %v1713, %v1841
      %v1875 = vadd.f32 %v1715, %v1845
      %v1876 = vadd.f32 %v1786, %v1849
      %v1877 = vadd.f32 %v1788, %v1853
      %v1878 = vadd.f32 %v1573, %v1825
      %v1879 = vadd.f32 %v1575, %v1829
      %v1880 = vadd.f32 %v1646, %v1833
      %v1881 = vadd.f32 %v1648, %v1837
      %v1882 = vadd.f32 %v1719, %v1841
      %v1883 = vadd.f32 %v1721, %v1845
      %v1884 = vadd.f32 %v1792, %v1849
      %v1885 = vadd.f32 %v1794, %v1853
      %v1886 = vadd.f32 %v1577, %v1825
      %v1887 = vadd.f32 %v1579, %v1829
      %v1888 = vadd.f32 %v1650, %v1833
      %v1889 = vadd.f32 %v1652, %v1837
      %v1890 = vadd.f32 %v1723, %v1841
      %v1891 = vadd.f32 %v1725, %v1845
      %v1892 = vadd.f32 %v1796, %v1849
      %v1893 = vadd.f32 %v1798, %v1853
      %v1894 = vadd.f32 %v1583, %v1825
      %v1895 = vadd.f32 %v1585, %v1829
      %v1896 = vadd.f32 %v1656, %v1833
      %v1897 = vadd.f32 %v1658, %v1837
      %v1898 = vadd.f32 %v1729, %v1841
      %v1899 = vadd.f32 %v1731, %v1845
      %v1900 = vadd.f32 %v1802, %v1849
      %v1901 = vadd.f32 %v1804, %v1853
      %v1902 = vadd.f32 %v1587, %v1825
      %v1903 = vadd.f32 %v1589, %v1829
      %v1904 = vadd.f32 %v1660, %v1833
      %v1905 = vadd.f32 %v1662, %v1837
      %v1906 = vadd.f32 %v1733, %v1841
      %v1907 = vadd.f32 %v1735, %v1845
      %v1908 = vadd.f32 %v1806, %v1849
      %v1909 = vadd.f32 %v1808, %v1853
      %v1910 = vadd.f32 %v1593, %v1825
      %v1911 = vadd.f32 %v1595, %v1829
      %v1912 = vadd.f32 %v1666, %v1833
      %v1913 = vadd.f32 %v1668, %v1837
      %v1914 = vadd.f32 %v1739, %v1841
      %v1915 = vadd.f32 %v1741, %v1845
      %v1916 = vadd.f32 %v1812, %v1849
      %v1917 = vadd.f32 %v1814, %v1853
      %v1918 = vadd.f32 %v1597, %v1825
      %v1919 = vadd.f32 %v1599, %v1829
      %v1920 = vadd.f32 %v1670, %v1833
      %v1921 = vadd.f32 %v1672, %v1837
      %v1922 = vadd.f32 %v1743, %v1841
      %v1923 = vadd.f32 %v1745, %v1845
      %v1924 = vadd.f32 %v1816, %v1849
      %v1925 = vadd.f32 %v1818, %v1853
      %v1926 = vadd.f32 %v1862, %v1870
      %v1927 = vadd.f32 %v1926, %v1878
      %v1928 = vadd.f32 %v1927, %v1886
      %v1929 = vadd.f32 %v1928, %v1894
      %v1930 = vadd.f32 %v1929, %v1902
      %v1931 = vadd.f32 %v1930, %v1910
      %v1932 = vadd.f32 %v1931, %v1918
      %v1933 = vrot.slane %v1932, 4
      %v1934 = vadd.f32 %v1932, %v1933
      %v1935 = vrot.slane %v1934, 2
      %v1936 = vadd.f32 %v1934, %v1935
      %v1937 = vrot.slane %v1936, 1
      %v1938 = vadd.f32 %v1936, %v1937
      %v1939 = vadd.f32 %v1863, %v1871
      %v1940 = vadd.f32 %v1939, %v1879
      %v1941 = vadd.f32 %v1940, %v1887
      %v1942 = vadd.f32 %v1941, %v1895
      %v1943 = vadd.f32 %v1942, %v1903
      %v1944 = vadd.f32 %v1943, %v1911
      %v1945 = vadd.f32 %v1944, %v1919
      %v1946 = vrot.slane %v1945, 4
      %v1947 = vadd.f32 %v1945, %v1946
      %v1948 = vrot.slane %v1947, 2
      %v1949 = vadd.f32 %v1947, %v1948
      %v1950 = vrot.slane %v1949, 1
      %v1951 = vadd.f32 %v1949, %v1950
      %v1952 = vadd.f32 %v1864, %v1872
      %v1953 = vadd.f32 %v1952, %v1880
      %v1954 = vadd.f32 %v1953, %v1888
      %v1955 = vadd.f32 %v1954, %v1896
      %v1956 = vadd.f32 %v1955, %v1904
      %v1957 = vadd.f32 %v1956, %v1912
      %v1958 = vadd.f32 %v1957, %v1920
      %v1959 = vrot.slane %v1958, 4
      %v1960 = vadd.f32 %v1958, %v1959
      %v1961 = vrot.slane %v1960, 2
      %v1962 = vadd.f32 %v1960, %v1961
      %v1963 = vrot.slane %v1962, 1
      %v1964 = vadd.f32 %v1962, %v1963
      %v1965 = vadd.f32 %v1865, %v1873
      %v1966 = vadd.f32 %v1965, %v1881
      %v1967 = vadd.f32 %v1966, %v1889
      %v1968 = vadd.f32 %v1967, %v1897
      %v1969 = vadd.f32 %v1968, %v1905
      %v1970 = vadd.f32 %v1969, %v1913
      %v1971 = vadd.f32 %v1970, %v1921
      %v1972 = vrot.slane %v1971, 4
      %v1973 = vadd.f32 %v1971, %v1972
      %v1974 = vrot.slane %v1973, 2
      %v1975 = vadd.f32 %v1973, %v1974
      %v1976 = vrot.slane %v1975, 1
      %v1977 = vadd.f32 %v1975, %v1976
      %v1978 = vadd.f32 %v1866, %v1874
      %v1979 = vadd.f32 %v1978, %v1882
      %v1980 = vadd.f32 %v1979, %v1890
      %v1981 = vadd.f32 %v1980, %v1898
      %v1982 = vadd.f32 %v1981, %v1906
      %v1983 = vadd.f32 %v1982, %v1914
      %v1984 = vadd.f32 %v1983, %v1922
      %v1985 = vrot.slane %v1984, 4
      %v1986 = vadd.f32 %v1984, %v1985
      %v1987 = vrot.slane %v1986, 2
      %v1988 = vadd.f32 %v1986, %v1987
      %v1989 = vrot.slane %v1988, 1
      %v1990 = vadd.f32 %v1988, %v1989
      %v1991 = vadd.f32 %v1867, %v1875
      %v1992 = vadd.f32 %v1991, %v1883
      %v1993 = vadd.f32 %v1992, %v1891
      %v1994 = vadd.f32 %v1993, %v1899
      %v1995 = vadd.f32 %v1994, %v1907
      %v1996 = vadd.f32 %v1995, %v1915
      %v1997 = vadd.f32 %v1996, %v1923
      %v1998 = vrot.slane %v1997, 4
      %v1999 = vadd.f32 %v1997, %v1998
      %v2000 = vrot.slane %v1999, 2
      %v2001 = vadd.f32 %v1999, %v2000
      %v2002 = vrot.slane %v2001, 1
      %v2003 = vadd.f32 %v2001, %v2002
      %v2004 = vadd.f32 %v1868, %v1876
      %v2005 = vadd.f32 %v2004, %v1884
      %v2006 = vadd.f32 %v2005, %v1892
      %v2007 = vadd.f32 %v2006, %v1900
      %v2008 = vadd.f32 %v2007, %v1908
      %v2009 = vadd.f32 %v2008, %v1916
      %v2010 = vadd.f32 %v2009, %v1924
      %v2011 = vrot.slane %v2010, 4
      %v2012 = vadd.f32 %v2010, %v2011
      %v2013 = vrot.slane %v2012, 2
      %v2014 = vadd.f32 %v2012, %v2013
      %v2015 = vrot.slane %v2014, 1
      %v2016 = vadd.f32 %v2014, %v2015
      %v2017 = vadd.f32 %v1869, %v1877
      %v2018 = vadd.f32 %v2017, %v1885
      %v2019 = vadd.f32 %v2018, %v1893
      %v2020 = vadd.f32 %v2019, %v1901
      %v2021 = vadd.f32 %v2020, %v1909
      %v2022 = vadd.f32 %v2021, %v1917
      %v2023 = vadd.f32 %v2022, %v1925
      %v2024 = vrot.slane %v2023, 4
      %v2025 = vadd.f32 %v2023, %v2024
      %v2026 = vrot.slane %v2025, 2
      %v2027 = vadd.f32 %v2025, %v2026
      %v2028 = vrot.slane %v2027, 1
      %v2029 = vadd.f32 %v2027, %v2028
      %v2038 = vcombine.low %v1938, %v1951
      %v2039 = vcombine.low %v1964, %v1977
      %v2040 = vcombine.low %v1990, %v2003
      %v2041 = vcombine.low %v2016, %v2029
      %v2043 = vunpack.c.l.s4 1966171168
      %v2044 = vunpack.c.0.s8 %v2043
      %v2045 = vlaneseq
      %v2046 = vshrl.u32 %v2045, 7
      %v2047 = vsub.s32 %v2044, %v2046
      %v2048 = vrot.slane %v2038, %v2047
      %v2050 = vunpack.c.l.s4 1966171168
      %v2051 = vunpack.c.0.s8 %v2050
      %v2052 = vlaneseq
      %v2053 = vshrl.u32 %v2052, 7
      %v2054 = vsub.s32 %v2051, %v2053
      %v2055 = vrot.slane %v2039, %v2054
      %v2057 = vunpack.c.l.s4 1966171168
      %v2058 = vunpack.c.0.s8 %v2057
      %v2059 = vlaneseq
      %v2060 = vshrl.u32 %v2059, 7
      %v2061 = vsub.s32 %v2058, %v2060
      %v2062 = vrot.slane %v2040, %v2061
      %v2064 = vunpack.c.l.s4 1966171168
      %v2065 = vunpack.c.0.s8 %v2064
      %v2066 = vlaneseq
      %v2067 = vshrl.u32 %v2066, 7
      %v2068 = vsub.s32 %v2065, %v2067
      %v2069 = vrot.slane %v2041, %v2068
      %v2070 = vcombine.low %v2048, %v2055
      %v2071 = vcombine.low %v2062, %v2069
      %v2073 = vunpack.c.l.s4 1966171168
      %v2074 = vunpack.c.0.s8 %v2073
      %v2075 = vlaneseq
      %v2076 = vshrl.u32 %v2075, 7
      %v2077 = vsub.s32 %v2074, %v2076
      %v2078 = vrot.slane %v2070, %v2077
      %v2080 = vunpack.c.l.s4 1966171168
      %v2081 = vunpack.c.0.s8 %v2080
      %v2082 = vlaneseq
      %v2083 = vshrl.u32 %v2082, 7
      %v2084 = vsub.s32 %v2081, %v2083
      %v2085 = vrot.slane %v2071, %v2084
      %v2086 = vcombine.low %v2078, %v2085
      %2088 = vst [vmem:[%s339] sm:$0xff] %v2086
      %v2089 = vmul.f32 %v1862, %v1862
      %v2090 = vmul.f32 %v1863, %v1863
      %v2091 = vmul.f32 %v1864, %v1864
      %v2092 = vmul.f32 %v1865, %v1865
      %v2093 = vmul.f32 %v1866, %v1866
      %v2094 = vmul.f32 %v1867, %v1867
      %v2095 = vmul.f32 %v1868, %v1868
      %v2096 = vmul.f32 %v1869, %v1869
      %v2097 = vmul.f32 %v1870, %v1870
      %v2098 = vmul.f32 %v1871, %v1871
      %v2099 = vmul.f32 %v1872, %v1872
      %v2100 = vmul.f32 %v1873, %v1873
      %v2101 = vmul.f32 %v1874, %v1874
      %v2102 = vmul.f32 %v1875, %v1875
      %v2103 = vmul.f32 %v1876, %v1876
      %v2104 = vmul.f32 %v1877, %v1877
      %v2105 = vmul.f32 %v1878, %v1878
      %v2106 = vmul.f32 %v1879, %v1879
      %v2107 = vmul.f32 %v1880, %v1880
      %v2108 = vmul.f32 %v1881, %v1881
      %v2109 = vmul.f32 %v1882, %v1882
      %v2110 = vmul.f32 %v1883, %v1883
      %v2111 = vmul.f32 %v1884, %v1884
      %v2112 = vmul.f32 %v1885, %v1885
      %v2113 = vmul.f32 %v1886, %v1886
      %v2114 = vmul.f32 %v1887, %v1887
      %v2115 = vmul.f32 %v1888, %v1888
      %v2116 = vmul.f32 %v1889, %v1889
      %v2117 = vmul.f32 %v1890, %v1890
      %v2118 = vmul.f32 %v1891, %v1891
      %v2119 = vmul.f32 %v1892, %v1892
      %v2120 = vmul.f32 %v1893, %v1893
      %v2121 = vmul.f32 %v1894, %v1894
      %v2122 = vmul.f32 %v1895, %v1895
      %v2123 = vmul.f32 %v1896, %v1896
      %v2124 = vmul.f32 %v1897, %v1897
      %v2125 = vmul.f32 %v1898, %v1898
      %v2126 = vmul.f32 %v1899, %v1899
      %v2127 = vmul.f32 %v1900, %v1900
      %v2128 = vmul.f32 %v1901, %v1901
      %v2129 = vmul.f32 %v1902, %v1902
      %v2130 = vmul.f32 %v1903, %v1903
      %v2131 = vmul.f32 %v1904, %v1904
      %v2132 = vmul.f32 %v1905, %v1905
      %v2133 = vmul.f32 %v1906, %v1906
      %v2134 = vmul.f32 %v1907, %v1907
      %v2135 = vmul.f32 %v1908, %v1908
      %v2136 = vmul.f32 %v1909, %v1909
      %v2137 = vmul.f32 %v1910, %v1910
      %v2138 = vmul.f32 %v1911, %v1911
      %v2139 = vmul.f32 %v1912, %v1912
      %v2140 = vmul.f32 %v1913, %v1913
      %v2141 = vmul.f32 %v1914, %v1914
      %v2142 = vmul.f32 %v1915, %v1915
      %v2143 = vmul.f32 %v1916, %v1916
      %v2144 = vmul.f32 %v1917, %v1917
      %v2145 = vmul.f32 %v1918, %v1918
      %v2146 = vmul.f32 %v1919, %v1919
      %v2147 = vmul.f32 %v1920, %v1920
      %v2148 = vmul.f32 %v1921, %v1921
      %v2149 = vmul.f32 %v1922, %v1922
      %v2150 = vmul.f32 %v1923, %v1923
      %v2151 = vmul.f32 %v1924, %v1924
      %v2152 = vmul.f32 %v1925, %v1925
      %v2153 = vadd.f32 %v2089, %v2097
      %v2154 = vadd.f32 %v2153, %v2105
      %v2155 = vadd.f32 %v2154, %v2113
      %v2156 = vadd.f32 %v2155, %v2121
      %v2157 = vadd.f32 %v2156, %v2129
      %v2158 = vadd.f32 %v2157, %v2137
      %v2159 = vadd.f32 %v2158, %v2145
      %v2160 = vrot.slane %v2159, 4
      %v2161 = vadd.f32 %v2159, %v2160
      %v2162 = vrot.slane %v2161, 2
      %v2163 = vadd.f32 %v2161, %v2162
      %v2164 = vrot.slane %v2163, 1
      %v2165 = vadd.f32 %v2163, %v2164
      %v2166 = vadd.f32 %v2090, %v2098
      %v2167 = vadd.f32 %v2166, %v2106
      %v2168 = vadd.f32 %v2167, %v2114
      %v2169 = vadd.f32 %v2168, %v2122
      %v2170 = vadd.f32 %v2169, %v2130
      %v2171 = vadd.f32 %v2170, %v2138
      %v2172 = vadd.f32 %v2171, %v2146
      %v2173 = vrot.slane %v2172, 4
      %v2174 = vadd.f32 %v2172, %v2173
      %v2175 = vrot.slane %v2174, 2
      %v2176 = vadd.f32 %v2174, %v2175
      %v2177 = vrot.slane %v2176, 1
      %v2178 = vadd.f32 %v2176, %v2177
      %v2179 = vadd.f32 %v2091, %v2099
      %v2180 = vadd.f32 %v2179, %v2107
      %v2181 = vadd.f32 %v2180, %v2115
      %v2182 = vadd.f32 %v2181, %v2123
      %v2183 = vadd.f32 %v2182, %v2131
      %v2184 = vadd.f32 %v2183, %v2139
      %v2185 = vadd.f32 %v2184, %v2147
      %v2186 = vrot.slane %v2185, 4
      %v2187 = vadd.f32 %v2185, %v2186
      %v2188 = vrot.slane %v2187, 2
      %v2189 = vadd.f32 %v2187, %v2188
      %v2190 = vrot.slane %v2189, 1
      %v2191 = vadd.f32 %v2189, %v2190
      %v2192 = vadd.f32 %v2092, %v2100
      %v2193 = vadd.f32 %v2192, %v2108
      %v2194 = vadd.f32 %v2193, %v2116
      %v2195 = vadd.f32 %v2194, %v2124
      %v2196 = vadd.f32 %v2195, %v2132
      %v2197 = vadd.f32 %v2196, %v2140
      %v2198 = vadd.f32 %v2197, %v2148
      %v2199 = vrot.slane %v2198, 4
      %v2200 = vadd.f32 %v2198, %v2199
      %v2201 = vrot.slane %v2200, 2
      %v2202 = vadd.f32 %v2200, %v2201
      %v2203 = vrot.slane %v2202, 1
      %v2204 = vadd.f32 %v2202, %v2203
      %v2205 = vadd.f32 %v2093, %v2101
      %v2206 = vadd.f32 %v2205, %v2109
      %v2207 = vadd.f32 %v2206, %v2117
      %v2208 = vadd.f32 %v2207, %v2125
      %v2209 = vadd.f32 %v2208, %v2133
      %v2210 = vadd.f32 %v2209, %v2141
      %v2211 = vadd.f32 %v2210, %v2149
      %v2212 = vrot.slane %v2211, 4
      %v2213 = vadd.f32 %v2211, %v2212
      %v2214 = vrot.slane %v2213, 2
      %v2215 = vadd.f32 %v2213, %v2214
      %v2216 = vrot.slane %v2215, 1
      %v2217 = vadd.f32 %v2215, %v2216
      %v2218 = vadd.f32 %v2094, %v2102
      %v2219 = vadd.f32 %v2218, %v2110
      %v2220 = vadd.f32 %v2219, %v2118
      %v2221 = vadd.f32 %v2220, %v2126
      %v2222 = vadd.f32 %v2221, %v2134
      %v2223 = vadd.f32 %v2222, %v2142
      %v2224 = vadd.f32 %v2223, %v2150
      %v2225 = vrot.slane %v2224, 4
      %v2226 = vadd.f32 %v2224, %v2225
      %v2227 = vrot.slane %v2226, 2
      %v2228 = vadd.f32 %v2226, %v2227
      %v2229 = vrot.slane %v2228, 1
      %v2230 = vadd.f32 %v2228, %v2229
      %v2231 = vadd.f32 %v2095, %v2103
      %v2232 = vadd.f32 %v2231, %v2111
      %v2233 = vadd.f32 %v2232, %v2119
      %v2234 = vadd.f32 %v2233, %v2127
      %v2235 = vadd.f32 %v2234, %v2135
      %v2236 = vadd.f32 %v2235, %v2143
      %v2237 = vadd.f32 %v2236, %v2151
      %v2238 = vrot.slane %v2237, 4
      %v2239 = vadd.f32 %v2237, %v2238
      %v2240 = vrot.slane %v2239, 2
      %v2241 = vadd.f32 %v2239, %v2240
      %v2242 = vrot.slane %v2241, 1
      %v2243 = vadd.f32 %v2241, %v2242
      %v2244 = vadd.f32 %v2096, %v2104
      %v2245 = vadd.f32 %v2244, %v2112
      %v2246 = vadd.f32 %v2245, %v2120
      %v2247 = vadd.f32 %v2246, %v2128
      %v2248 = vadd.f32 %v2247, %v2136
      %v2249 = vadd.f32 %v2248, %v2144
      %v2250 = vadd.f32 %v2249, %v2152
      %v2251 = vrot.slane %v2250, 4
      %v2252 = vadd.f32 %v2250, %v2251
      %v2253 = vrot.slane %v2252, 2
      %v2254 = vadd.f32 %v2252, %v2253
      %v2255 = vrot.slane %v2254, 1
      %v2256 = vadd.f32 %v2254, %v2255
      %v2265 = vcombine.low %v2165, %v2178
      %v2266 = vcombine.low %v2191, %v2204
      %v2267 = vcombine.low %v2217, %v2230
      %v2268 = vcombine.low %v2243, %v2256
      %v2270 = vunpack.c.l.s4 1966171168
      %v2271 = vunpack.c.0.s8 %v2270
      %v2272 = vlaneseq
      %v2273 = vshrl.u32 %v2272, 7
      %v2274 = vsub.s32 %v2271, %v2273
      %v2275 = vrot.slane %v2265, %v2274
      %v2277 = vunpack.c.l.s4 1966171168
      %v2278 = vunpack.c.0.s8 %v2277
      %v2279 = vlaneseq
      %v2280 = vshrl.u32 %v2279, 7
      %v2281 = vsub.s32 %v2278, %v2280
      %v2282 = vrot.slane %v2266, %v2281
      %v2284 = vunpack.c.l.s4 1966171168
      %v2285 = vunpack.c.0.s8 %v2284
      %v2286 = vlaneseq
      %v2287 = vshrl.u32 %v2286, 7
      %v2288 = vsub.s32 %v2285, %v2287
      %v2289 = vrot.slane %v2267, %v2288
      %v2291 = vunpack.c.l.s4 1966171168
      %v2292 = vunpack.c.0.s8 %v2291
      %v2293 = vlaneseq
      %v2294 = vshrl.u32 %v2293, 7
      %v2295 = vsub.s32 %v2292, %v2294
      %v2296 = vrot.slane %v2268, %v2295
      %v2297 = vcombine.low %v2275, %v2282
      %v2298 = vcombine.low %v2289, %v2296
      %v2300 = vunpack.c.l.s4 1966171168
      %v2301 = vunpack.c.0.s8 %v2300
      %v2302 = vlaneseq
      %v2303 = vshrl.u32 %v2302, 7
      %v2304 = vsub.s32 %v2301, %v2303
      %v2305 = vrot.slane %v2297, %v2304
      %v2307 = vunpack.c.l.s4 1966171168
      %v2308 = vunpack.c.0.s8 %v2307
      %v2309 = vlaneseq
      %v2310 = vshrl.u32 %v2309, 7
      %v2311 = vsub.s32 %v2308, %v2310
      %v2312 = vrot.slane %v2298, %v2311
      %v2313 = vcombine.low %v2305, %v2312
      %2315 = vst [vmem:[%s347] sm:$0xff] %v2313
      %v2316 = vmax.f32 %v1862, %v1870
      %v2317 = vmax.f32 %v2316, %v1878
      %v2318 = vmax.f32 %v2317, %v1886
      %v2319 = vmax.f32 %v2318, %v1894
      %v2320 = vmax.f32 %v2319, %v1902
      %v2321 = vmax.f32 %v2320, %v1910
      %v2322 = vmax.f32 %v2321, %v1918
      %v2323 = vrot.slane %v2322, 4
      %v2324 = vmax.f32 %v2322, %v2323
      %v2325 = vrot.slane %v2324, 2
      %v2326 = vmax.f32 %v2324, %v2325
      %v2327 = vrot.slane %v2326, 1
      %v2328 = vmax.f32 %v2326, %v2327
      %v2329 = vmax.f32 %v1863, %v1871
      %v2330 = vmax.f32 %v2329, %v1879
      %v2331 = vmax.f32 %v2330, %v1887
      %v2332 = vmax.f32 %v2331, %v1895
      %v2333 = vmax.f32 %v2332, %v1903
      %v2334 = vmax.f32 %v2333, %v1911
      %v2335 = vmax.f32 %v2334, %v1919
      %v2336 = vrot.slane %v2335, 4
      %v2337 = vmax.f32 %v2335, %v2336
      %v2338 = vrot.slane %v2337, 2
      %v2339 = vmax.f32 %v2337, %v2338
      %v2340 = vrot.slane %v2339, 1
      %v2341 = vmax.f32 %v2339, %v2340
      %v2342 = vmax.f32 %v1864, %v1872
      %v2343 = vmax.f32 %v2342, %v1880
      %v2344 = vmax.f32 %v2343, %v1888
      %v2345 = vmax.f32 %v2344, %v1896
      %v2346 = vmax.f32 %v2345, %v1904
      %v2347 = vmax.f32 %v2346, %v1912
      %v2348 = vmax.f32 %v2347, %v1920
      %v2349 = vrot.slane %v2348, 4
      %v2350 = vmax.f32 %v2348, %v2349
      %v2351 = vrot.slane %v2350, 2
      %v2352 = vmax.f32 %v2350, %v2351
      %v2353 = vrot.slane %v2352, 1
      %v2354 = vmax.f32 %v2352, %v2353
      %v2355 = vmax.f32 %v1865, %v1873
      %v2356 = vmax.f32 %v2355, %v1881
      %v2357 = vmax.f32 %v2356, %v1889
      %v2358 = vmax.f32 %v2357, %v1897
      %v2359 = vmax.f32 %v2358, %v1905
      %v2360 = vmax.f32 %v2359, %v1913
      %v2361 = vmax.f32 %v2360, %v1921
      %v2362 = vrot.slane %v2361, 4
      %v2363 = vmax.f32 %v2361, %v2362
      %v2364 = vrot.slane %v2363, 2
      %v2365 = vmax.f32 %v2363, %v2364
      %v2366 = vrot.slane %v2365, 1
      %v2367 = vmax.f32 %v2365, %v2366
      %v2368 = vmax.f32 %v1866, %v1874
      %v2369 = vmax.f32 %v2368, %v1882
      %v2370 = vmax.f32 %v2369, %v1890
      %v2371 = vmax.f32 %v2370, %v1898
      %v2372 = vmax.f32 %v2371, %v1906
      %v2373 = vmax.f32 %v2372, %v1914
      %v2374 = vmax.f32 %v2373, %v1922
      %v2375 = vrot.slane %v2374, 4
      %v2376 = vmax.f32 %v2374, %v2375
      %v2377 = vrot.slane %v2376, 2
      %v2378 = vmax.f32 %v2376, %v2377
      %v2379 = vrot.slane %v2378, 1
      %v2380 = vmax.f32 %v2378, %v2379
      %v2381 = vmax.f32 %v1867, %v1875
      %v2382 = vmax.f32 %v2381, %v1883
      %v2383 = vmax.f32 %v2382, %v1891
      %v2384 = vmax.f32 %v2383, %v1899
      %v2385 = vmax.f32 %v2384, %v1907
      %v2386 = vmax.f32 %v2385, %v1915
      %v2387 = vmax.f32 %v2386, %v1923
      %v2388 = vrot.slane %v2387, 4
      %v2389 = vmax.f32 %v2387, %v2388
      %v2390 = vrot.slane %v2389, 2
      %v2391 = vmax.f32 %v2389, %v2390
      %v2392 = vrot.slane %v2391, 1
      %v2393 = vmax.f32 %v2391, %v2392
      %v2394 = vmax.f32 %v1868, %v1876
      %v2395 = vmax.f32 %v2394, %v1884
      %v2396 = vmax.f32 %v2395, %v1892
      %v2397 = vmax.f32 %v2396, %v1900
      %v2398 = vmax.f32 %v2397, %v1908
      %v2399 = vmax.f32 %v2398, %v1916
      %v2400 = vmax.f32 %v2399, %v1924
      %v2401 = vrot.slane %v2400, 4
      %v2402 = vmax.f32 %v2400, %v2401
      %v2403 = vrot.slane %v2402, 2
      %v2404 = vmax.f32 %v2402, %v2403
      %v2405 = vrot.slane %v2404, 1
      %v2406 = vmax.f32 %v2404, %v2405
      %v2407 = vmax.f32 %v1869, %v1877
      %v2408 = vmax.f32 %v2407, %v1885
      %v2409 = vmax.f32 %v2408, %v1893
      %v2410 = vmax.f32 %v2409, %v1901
      %v2411 = vmax.f32 %v2410, %v1909
      %v2412 = vmax.f32 %v2411, %v1917
      %v2413 = vmax.f32 %v2412, %v1925
      %v2414 = vrot.slane %v2413, 4
      %v2415 = vmax.f32 %v2413, %v2414
      %v2416 = vrot.slane %v2415, 2
      %v2417 = vmax.f32 %v2415, %v2416
      %v2418 = vrot.slane %v2417, 1
      %v2419 = vmax.f32 %v2417, %v2418
      %v2428 = vcombine.low %v2328, %v2341
      %v2429 = vcombine.low %v2354, %v2367
      %v2430 = vcombine.low %v2380, %v2393
      %v2431 = vcombine.low %v2406, %v2419
      %v2433 = vunpack.c.l.s4 1966171168
      %v2434 = vunpack.c.0.s8 %v2433
      %v2435 = vlaneseq
      %v2436 = vshrl.u32 %v2435, 7
      %v2437 = vsub.s32 %v2434, %v2436
      %v2438 = vrot.slane %v2428, %v2437
      %v2440 = vunpack.c.l.s4 1966171168
      %v2441 = vunpack.c.0.s8 %v2440
      %v2442 = vlaneseq
      %v2443 = vshrl.u32 %v2442, 7
      %v2444 = vsub.s32 %v2441, %v2443
      %v2445 = vrot.slane %v2429, %v2444
      %v2447 = vunpack.c.l.s4 1966171168
      %v2448 = vunpack.c.0.s8 %v2447
      %v2449 = vlaneseq
      %v2450 = vshrl.u32 %v2449, 7
      %v2451 = vsub.s32 %v2448, %v2450
      %v2452 = vrot.slane %v2430, %v2451
      %v2454 = vunpack.c.l.s4 1966171168
      %v2455 = vunpack.c.0.s8 %v2454
      %v2456 = vlaneseq
      %v2457 = vshrl.u32 %v2456, 7
      %v2458 = vsub.s32 %v2455, %v2457
      %v2459 = vrot.slane %v2431, %v2458
      %v2460 = vcombine.low %v2438, %v2445
      %v2461 = vcombine.low %v2452, %v2459
      %v2463 = vunpack.c.l.s4 1966171168
      %v2464 = vunpack.c.0.s8 %v2463
      %v2465 = vlaneseq
      %v2466 = vshrl.u32 %v2465, 7
      %v2467 = vsub.s32 %v2464, %v2466
      %v2468 = vrot.slane %v2460, %v2467
      %v2470 = vunpack.c.l.s4 1966171168
      %v2471 = vunpack.c.0.s8 %v2470
      %v2472 = vlaneseq
      %v2473 = vshrl.u32 %v2472, 7
      %v2474 = vsub.s32 %v2471, %v2473
      %v2475 = vrot.slane %v2461, %v2474
      %v2476 = vcombine.low %v2468, %v2475
      %2478 = vst [vmem:[%s355] sm:$0xff] %v2476
      %p2479 = scmp.lt.s32.totalorder %s23, 1
      %s2480 = scalar_select %p2479, %s23, 1
      %p2481 = scmp.lt.s32.totalorder %s24, 0
      %s2482 = scalar_select %p2481, %s24, 0
      %s2483 = smul.addr %s2482, 8
      %s2484 = smul.addr %s2480, 8
      %s2485 = sadd.s32 %s2483, %s2484
      %s2486 = scalar_lea.vmem %s5, %s2485
      %p2487 = scmp.lt.s32.totalorder %s23, 1
      %s2488 = scalar_select %p2487, %s23, 1
      %p2489 = scmp.lt.s32.totalorder %s24, 0
      %s2490 = scalar_select %p2489, %s24, 0
      %s2491 = smul.addr %s2490, 8
      %s2492 = smul.addr %s2488, 8
      %s2493 = sadd.s32 %s2491, %s2492
      %s2494 = scalar_lea.vmem %s6, %s2493
      %p2495 = scmp.lt.s32.totalorder %s23, 1
      %s2496 = scalar_select %p2495, %s23, 1
      %p2497 = scmp.lt.s32.totalorder %s24, 0
      %s2498 = scalar_select %p2497, %s24, 0
      %s2499 = smul.addr %s2498, 8
      %s2500 = smul.addr %s2496, 8
      %s2501 = sadd.s32 %s2499, %s2500
      %s2502 = scalar_lea.vmem %s7, %s2501
      // Predicated region
      $region41: #{pointnet_kan_forward.5} parent=39 // pred_check
        %p2503 = pneg %p163
      $region42: #{pointnet_kan_forward.5} parent=39 // pred_check_branch
        %2505 = sbr.rel (%p2503) target = $region44
      $region43: #{pointnet_kan_forward.5} parent=39 // pred_region
        _
      $region44: #{pointnet_kan_forward.5} parent=39 // pred_fallthru
        _
      // Predicated region
      $region45: #{pointnet_kan_forward.5} parent=39 // pred_check
        %p2506 = pneg %p191
      $region46: #{pointnet_kan_forward.5} parent=39 // pred_check_branch
        %2508 = sbr.rel (%p2506) target = $region48
      $region47: #{pointnet_kan_forward.5} parent=39 // pred_region
        _
      $region48: #{pointnet_kan_forward.5} parent=39 // pred_fallthru
        _
      // Predicated region
      $region49: #{pointnet_kan_forward.5} parent=39 // pred_check
        %p2509 = pneg %p219
      $region50: #{pointnet_kan_forward.5} parent=39 // pred_check_branch
        %2511 = sbr.rel (%p2509) target = $region52
      $region51: #{pointnet_kan_forward.5} parent=39 // pred_region
        _
      $region52: #{pointnet_kan_forward.5} parent=39 // pred_fallthru
        _
    $region40: #{pointnet_kan_forward.5} parent=5 // pred_fallthru
      _
    %p2512 = scmp.le.s32.totalorder 2, %s14
    // Predicated region
    $region53: #{pointnet_kan_forward.5} parent=5 // pred_check
      %p2513 = pneg %p2512
    $region54: #{pointnet_kan_forward.5} parent=5 // pred_check_branch
      %2515 = sbr.rel (%p2513) target = $region56
    $region55: #{pointnet_kan_forward.5} parent=5 // pred_region
      %s2516 = ssub.s32 %s14, 2
      // Predicated region
      $region57: #{pointnet_kan_forward.5} parent=55 // pred_check
        %p2517 = pneg %p169
      $region58: #{pointnet_kan_forward.5} parent=55 // pred_check_branch
        %2519 = sbr.rel (%p2517) target = $region60
      $region59: #{pointnet_kan_forward.5} parent=55 // pred_region
        %p2520 = scmp.lt.s32.totalorder %s25, 1
        %s2521 = scalar_select %p2520, %s25, 1
        %p2522 = scmp.lt.s32.totalorder %s26, 0
        %s2523 = scalar_select %p2522, %s26, 0
        %s2524 = smul.addr %s2523, 8
        %s2525 = smul.addr %s2521, 8
        %s2526 = sadd.s32 %s2524, %s2525
        %s2527 = scalar_lea.vmem %s5, %s2526
      $region60: #{pointnet_kan_forward.5} parent=55 // pred_fallthru
        _
      // Predicated region
      $region61: #{pointnet_kan_forward.5} parent=55 // pred_check
        %p2528 = pneg %p197
      $region62: #{pointnet_kan_forward.5} parent=55 // pred_check_branch
        %2530 = sbr.rel (%p2528) target = $region64
      $region63: #{pointnet_kan_forward.5} parent=55 // pred_region
        %p2531 = scmp.lt.s32.totalorder %s25, 1
        %s2532 = scalar_select %p2531, %s25, 1
        %p2533 = scmp.lt.s32.totalorder %s26, 0
        %s2534 = scalar_select %p2533, %s26, 0
        %s2535 = smul.addr %s2534, 8
        %s2536 = smul.addr %s2532, 8
        %s2537 = sadd.s32 %s2535, %s2536
        %s2538 = scalar_lea.vmem %s6, %s2537
      $region64: #{pointnet_kan_forward.5} parent=55 // pred_fallthru
        _
      // Predicated region
      $region65: #{pointnet_kan_forward.5} parent=55 // pred_check
        %p2539 = pneg %p225
      $region66: #{pointnet_kan_forward.5} parent=55 // pred_check_branch
        %2541 = sbr.rel (%p2539) target = $region68
      $region67: #{pointnet_kan_forward.5} parent=55 // pred_region
        %p2542 = scmp.lt.s32.totalorder %s25, 1
        %s2543 = scalar_select %p2542, %s25, 1
        %p2544 = scmp.lt.s32.totalorder %s26, 0
        %s2545 = scalar_select %p2544, %s26, 0
        %s2546 = smul.addr %s2545, 8
        %s2547 = smul.addr %s2543, 8
        %s2548 = sadd.s32 %s2546, %s2547
        %s2549 = scalar_lea.vmem %s7, %s2548
      $region68: #{pointnet_kan_forward.5} parent=55 // pred_fallthru
        _
    $region56: #{pointnet_kan_forward.5} parent=5 // pred_fallthru
      _
  $region6: #{pointnet_kan_forward.5} parent=0 // loop_footer
    %s18 = sadd.s32 1, %s14
  $region7: #{pointnet_kan_forward.5} parent=0 // loop_footer_branch
    %13 = sbr.rel target = $region3
  $region8: #{pointnet_kan_forward.5} parent=0 // loop_exit
    _

// kernel: pointnet_kan_forward.6
$region0: #{pointnet_kan_forward.6}
  #allocation0 [shape = 'u32[]', space=smem, size = 0x4, offset = 0x4, fixed_abs, tag = 'smem constant byte address 0x4 - core index']
  #allocation1 [shape = 'u32[144,128]{1,0:T(1,128)}', space=vmem, size = 0x12000, scoped, tag = 'internal scratch']
  %s0 = inlined_call_operand.vmem [shape: bf16[2,64,128], index: 0, kind: input, shape index: {}]
  %s1 = inlined_call_operand.vmem [shape: f32[1,128], index: 1, kind: input, shape index: {}]
  %s2 = inlined_call_operand.vmem [shape: f32[1,128], index: 2, kind: input, shape index: {}]
  %s3 = inlined_call_operand.vmem [shape: bf16[2,128,128], index: 3, kind: input, shape index: {}]
  %s4 = inlined_call_operand.vmem [shape: f32[1,128], index: 4, kind: input, shape index: {}]
  %s5 = inlined_call_operand.vmem [shape: f32[2,1,128], index: 5, kind: input, shape index: {}]
  %s6 = inlined_call_operand.vmem [shape: bf16[2,64,128], index: 6, kind: output, shape index: {0}]
  %s7 = inlined_call_operand.vmem [shape: f32[2,1,1,128], index: 7, kind: output, shape index: {1}]
  %s8 = inlined_call_operand.vmem [shape: f32[2,1,1,128], index: 8, kind: output, shape index: {2}]
  %s9 = inlined_call_operand.hbm [shape: f32[2,1,1,128], index: 9, kind: output, shape index: {3}]
  %10 = xla_tuple %s6, %s7, %s8, %s9
  %s11 = sld [smem:[#allocation0]]
  $region81: #{pointnet_kan_forward.6} parent=0
    _
  %s13 = ssub.s32 1, %s11
  %s14 = scalar_select 0, %s13, %s11
  $region1: #{pointnet_kan_forward.6} parent=0
    #allocation2 [shape = 'u8[1024]{0}', space=vmem, size = 0x400, scoped, tag = 'output window, operand 3']
    #allocation3 [shape = 's32[2]{0}', space=sflag, size = 0x8, scoped, tag = 'scoped memory for pointnet_kan_forward.6']
    %15 = vsyncpa [#allocation3], 0
    %s16 = scalar_lea.sflag [#allocation3], 1
    %17 = vsyncpa %s16, 0
    loop: start=0, step=1, limit=4
    $region2: #{pointnet_kan_forward.6} parent=1 // loop_pre_header
      _
    $region3: #{pointnet_kan_forward.6} parent=1 // loop_header
      %s19 = sphi 0, %s23
      %p20 = scmp.ge.s32.totalorder %s19, 4
      %s26 = sphi 0, %s38
      %s27 = sphi 0, %s34
      %s28 = sphi 0, %s26
      %s29 = sphi 0, %s27
      %s30 = sphi 0, %s28
      %s31 = sphi 0, %s29
      %s43 = sphi 0, %s45
      %s46 = sphi 0, %s43
      %s47 = sphi 0, %s46
      %s63 = sphi 0, %s47
      %s67 = sphi 0, %s67
      %s69 = sphi 0, %s67
      %s70 = sphi 0, %s69
      %s84 = sphi 0, %s70
      %s88 = sphi 0, %s88
      %s90 = sphi 0, %s88
      %s91 = sphi 0, %s90
      %s105 = sphi 0, %s91
      %s109 = sphi 0, %s109
      %s111 = sphi 0, %s109
      %s112 = sphi 0, %s111
      %s126 = sphi 0, %s112
      %s130 = sphi 0, %s130
      %s132 = sphi 0, %s130
      %s133 = sphi 0, %s132
      %s147 = sphi 0, %s133
      %s153 = sphi 0, %s155
      %s156 = sphi 0, %s153
      %s157 = sphi 0, %s156
      %s173 = sphi 0, %s157
      %s181 = sphi 0, %s183
      %s184 = sphi 0, %s181
      %s185 = sphi 0, %s184
      %s201 = sphi 0, %s185
      %s209 = sphi 0, %s211
      %s212 = sphi 0, %s209
      %s213 = sphi 0, %s212
      %s229 = sphi 0, %s213
      %s237 = sphi 0, %s239
      %s240 = sphi 0, %s237
      %s241 = sphi 0, %s240
      %s257 = sphi 0, %s241
      %s265 = sphi 0, %s267
      %s268 = sphi 0, %s265
      %s269 = sphi 0, %s268
      %s285 = sphi 0, %s269
    $region4: #{pointnet_kan_forward.6} parent=1 // loop_header_branch
      %22 = sbr.rel (%p20) target = $region8
    $region5: #{pointnet_kan_forward.6} parent=1 // loop_body
      %s24 = ssub.s32 %s19, 1
      %s25 = ssub.s32 %s19, 2
      %s32 = sadd.s32 1, %s27
      %p33 = scmp.ge.s32.totalorder %s32, 1
      %s34 = scalar_select %p33, 0, %s32
      %s35 = sadd.s32 1, %s26
      %s36 = scalar_select %p33, %s35, %s26
      %p37 = scmp.ge.s32.totalorder %s36, 2
      %s38 = scalar_select %p37, 0, %s36
      %s39 = ssub.s32 %s26, %s38
      %s40 = ssub.s32 %s27, %s34
      %s41 = sor.u32 %s39, %s40
      %p42 = scmp.eq.s32.totalorder %s41, 0
      %s44 = sadd.s32 %s43, 1
      %s45 = scalar_select %p42, %s43, %s44
      %p48 = pneg %p42
      %p49 = scmp.eq.s32.totalorder %s19, 1
      %p50 = por %p48, %p49
      %p51 = scmp.ne.s32.totalorder %s43, %s46
      %p52 = scmp.eq.s32.totalorder %s19, 0
      %p53 = por %p51, %p52
      %p54 = scmp.ne.s32.totalorder %s43, %s46
      %p55 = scmp.eq.s32.totalorder %s24, 1
      %p56 = por %p54, %p55
      %p57 = scmp.ne.s32.totalorder %s46, %s47
      %p58 = scmp.eq.s32.totalorder %s24, 0
      %p59 = por %p57, %p58
      %p60 = scmp.ne.s32.totalorder %s46, %s47
      %p61 = scmp.eq.s32.totalorder %s25, 1
      %p62 = por %p60, %p61
      %p64 = scmp.ne.s32.totalorder %s47, %s63
      %p65 = scmp.eq.s32.totalorder %s25, 0
      %p66 = por %p64, %p65
      %s68 = sadd.s32 %s67, 1
      %p71 = scmp.eq.s32.totalorder %s19, 1
      %p72 = scmp.ne.s32.totalorder %s67, %s69
      %p73 = scmp.eq.s32.totalorder %s19, 0
      %p74 = por %p72, %p73
      %p75 = scmp.ne.s32.totalorder %s67, %s69
      %p76 = scmp.eq.s32.totalorder %s24, 1
      %p77 = por %p75, %p76
      %p78 = scmp.ne.s32.totalorder %s69, %s70
      %p79 = scmp.eq.s32.totalorder %s24, 0
      %p80 = por %p78, %p79
      %p81 = scmp.ne.s32.totalorder %s69, %s70
      %p82 = scmp.eq.s32.totalorder %s25, 1
      %p83 = por %p81, %p82
      %p85 = scmp.ne.s32.totalorder %s70, %s84
      %p86 = scmp.eq.s32.totalorder %s25, 0
      %p87 = por %p85, %p86
      %s89 = sadd.s32 %s88, 1
      %p92 = scmp.eq.s32.totalorder %s19, 1
      %p93 = scmp.ne.s32.totalorder %s88, %s90
      %p94 = scmp.eq.s32.totalorder %s19, 0
      %p95 = por %p93, %p94
      %p96 = scmp.ne.s32.totalorder %s88, %s90
      %p97 = scmp.eq.s32.totalorder %s24, 1
      %p98 = por %p96, %p97
      %p99 = scmp.ne.s32.totalorder %s90, %s91
      %p100 = scmp.eq.s32.totalorder %s24, 0
      %p101 = por %p99, %p100
      %p102 = scmp.ne.s32.totalorder %s90, %s91
      %p103 = scmp.eq.s32.totalorder %s25, 1
      %p104 = por %p102, %p103
      %p106 = scmp.ne.s32.totalorder %s91, %s105
      %p107 = scmp.eq.s32.totalorder %s25, 0
      %p108 = por %p106, %p107
      %s110 = sadd.s32 %s109, 1
      %p113 = scmp.eq.s32.totalorder %s19, 1
      %p114 = scmp.ne.s32.totalorder %s109, %s111
      %p115 = scmp.eq.s32.totalorder %s19, 0
      %p116 = por %p114, %p115
      %p117 = scmp.ne.s32.totalorder %s109, %s111
      %p118 = scmp.eq.s32.totalorder %s24, 1
      %p119 = por %p117, %p118
      %p120 = scmp.ne.s32.totalorder %s111, %s112
      %p121 = scmp.eq.s32.totalorder %s24, 0
      %p122 = por %p120, %p121
      %p123 = scmp.ne.s32.totalorder %s111, %s112
      %p124 = scmp.eq.s32.totalorder %s25, 1
      %p125 = por %p123, %p124
      %p127 = scmp.ne.s32.totalorder %s112, %s126
      %p128 = scmp.eq.s32.totalorder %s25, 0
      %p129 = por %p127, %p128
      %s131 = sadd.s32 %s130, 1
      %p134 = scmp.eq.s32.totalorder %s19, 1
      %p135 = scmp.ne.s32.totalorder %s130, %s132
      %p136 = scmp.eq.s32.totalorder %s19, 0
      %p137 = por %p135, %p136
      %p138 = scmp.ne.s32.totalorder %s130, %s132
      %p139 = scmp.eq.s32.totalorder %s24, 1
      %p140 = por %p138, %p139
      %p141 = scmp.ne.s32.totalorder %s132, %s133
      %p142 = scmp.eq.s32.totalorder %s24, 0
      %p143 = por %p141, %p142
      %p144 = scmp.ne.s32.totalorder %s132, %s133
      %p145 = scmp.eq.s32.totalorder %s25, 1
      %p146 = por %p144, %p145
      %p148 = scmp.ne.s32.totalorder %s133, %s147
      %p149 = scmp.eq.s32.totalorder %s25, 0
      %p150 = por %p148, %p149
      %s151 = ssub.s32 %s26, %s38
      %p152 = scmp.eq.s32.totalorder %s151, 0
      %s154 = sadd.s32 %s153, 1
      %s155 = scalar_select %p152, %s153, %s154
      %p158 = pneg %p152
      %p159 = scmp.eq.s32.totalorder %s19, 1
      %p160 = por %p158, %p159
      %p161 = scmp.ne.s32.totalorder %s153, %s156
      %p162 = scmp.eq.s32.totalorder %s19, 0
      %p163 = por %p161, %p162
      %p164 = scmp.ne.s32.totalorder %s153, %s156
      %p165 = scmp.eq.s32.totalorder %s24, 1
      %p166 = por %p164, %p165
      %p167 = scmp.ne.s32.totalorder %s156, %s157
      %p168 = scmp.eq.s32.totalorder %s24, 0
      %p169 = por %p167, %p168
      %p170 = scmp.ne.s32.totalorder %s156, %s157
      %p171 = scmp.eq.s32.totalorder %s25, 1
      %p172 = por %p170, %p171
      %p174 = scmp.ne.s32.totalorder %s157, %s173
      %p175 = scmp.eq.s32.totalorder %s25, 0
      %p176 = por %p174, %p175
      %s177 = ssub.s32 %s26, %s38
      %s178 = ssub.s32 %s27, %s34
      %s179 = sor.u32 %s177, %s178
      %p180 = scmp.eq.s32.totalorder %s179, 0
      %s182 = sadd.s32 %s181, 1
      %s183 = scalar_select %p180, %s181, %s182
      %p186 = pneg %p180
      %p187 = scmp.eq.s32.totalorder %s19, 1
      %p188 = por %p186, %p187
      %p189 = scmp.ne.s32.totalorder %s181, %s184
      %p190 = scmp.eq.s32.totalorder %s19, 0
      %p191 = por %p189, %p190
      %p192 = scmp.ne.s32.totalorder %s181, %s184
      %p193 = scmp.eq.s32.totalorder %s24, 1
      %p194 = por %p192, %p193
      %p195 = scmp.ne.s32.totalorder %s184, %s185
      %p196 = scmp.eq.s32.totalorder %s24, 0
      %p197 = por %p195, %p196
      %p198 = scmp.ne.s32.totalorder %s184, %s185
      %p199 = scmp.eq.s32.totalorder %s25, 1
      %p200 = por %p198, %p199
      %p202 = scmp.ne.s32.totalorder %s185, %s201
      %p203 = scmp.eq.s32.totalorder %s25, 0
      %p204 = por %p202, %p203
      %s205 = ssub.s32 %s26, %s38
      %s206 = ssub.s32 %s27, %s34
      %s207 = sor.u32 %s205, %s206
      %p208 = scmp.eq.s32.totalorder %s207, 0
      %s210 = sadd.s32 %s209, 1
      %s211 = scalar_select %p208, %s209, %s210
      %p214 = pneg %p208
      %p215 = scmp.eq.s32.totalorder %s19, 1
      %p216 = por %p214, %p215
      %p217 = scmp.ne.s32.totalorder %s209, %s212
      %p218 = scmp.eq.s32.totalorder %s19, 0
      %p219 = por %p217, %p218
      %p220 = scmp.ne.s32.totalorder %s209, %s212
      %p221 = scmp.eq.s32.totalorder %s24, 1
      %p222 = por %p220, %p221
      %p223 = scmp.ne.s32.totalorder %s212, %s213
      %p224 = scmp.eq.s32.totalorder %s24, 0
      %p225 = por %p223, %p224
      %p226 = scmp.ne.s32.totalorder %s212, %s213
      %p227 = scmp.eq.s32.totalorder %s25, 1
      %p228 = por %p226, %p227
      %p230 = scmp.ne.s32.totalorder %s213, %s229
      %p231 = scmp.eq.s32.totalorder %s25, 0
      %p232 = por %p230, %p231
      %s233 = ssub.s32 %s26, %s38
      %s234 = ssub.s32 %s27, %s34
      %s235 = sor.u32 %s233, %s234
      %p236 = scmp.eq.s32.totalorder %s235, 0
      %s238 = sadd.s32 %s237, 1
      %s239 = scalar_select %p236, %s237, %s238
      %p242 = pneg %p236
      %p243 = scmp.eq.s32.totalorder %s19, 1
      %p244 = por %p242, %p243
      %p245 = scmp.ne.s32.totalorder %s237, %s240
      %p246 = scmp.eq.s32.totalorder %s19, 0
      %p247 = por %p245, %p246
      %p248 = scmp.ne.s32.totalorder %s237, %s240
      %p249 = scmp.eq.s32.totalorder %s24, 1
      %p250 = por %p248, %p249
      %p251 = scmp.ne.s32.totalorder %s240, %s241
      %p252 = scmp.eq.s32.totalorder %s24, 0
      %p253 = por %p251, %p252
      %p254 = scmp.ne.s32.totalorder %s240, %s241
      %p255 = scmp.eq.s32.totalorder %s25, 1
      %p256 = por %p254, %p255
      %p258 = scmp.ne.s32.totalorder %s241, %s257
      %p259 = scmp.eq.s32.totalorder %s25, 0
      %p260 = por %p258, %p259
      %s261 = ssub.s32 %s26, %s38
      %s262 = ssub.s32 %s27, %s34
      %s263 = sor.u32 %s261, %s262
      %p264 = scmp.eq.s32.totalorder %s263, 0
      %s266 = sadd.s32 %s265, 1
      %s267 = scalar_select %p264, %s265, %s266
      %p270 = pneg %p264
      %p271 = scmp.eq.s32.totalorder %s19, 1
      %p272 = por %p270, %p271
      %p273 = scmp.ne.s32.totalorder %s265, %s268
      %p274 = scmp.eq.s32.totalorder %s19, 0
      %p275 = por %p273, %p274
      %p276 = scmp.ne.s32.totalorder %s265, %s268
      %p277 = scmp.eq.s32.totalorder %s24, 1
      %p278 = por %p276, %p277
      %p279 = scmp.ne.s32.totalorder %s268, %s269
      %p280 = scmp.eq.s32.totalorder %s24, 0
      %p281 = por %p279, %p280
      %p282 = scmp.ne.s32.totalorder %s268, %s269
      %p283 = scmp.eq.s32.totalorder %s25, 1
      %p284 = por %p282, %p283
      %p286 = scmp.ne.s32.totalorder %s269, %s285
      %p287 = scmp.eq.s32.totalorder %s25, 0
      %p288 = por %p286, %p287
      %p289 = scmp.le.s32.totalorder 1, %s19
      %p290 = scmp.lt.s32.totalorder %s19, 3
      %p291 = pnand %p289, %p290
      %p292 = pneg %p291
      // Predicated region
      $region9: #{pointnet_kan_forward.6} parent=5 // pred_check
        _
      $region10: #{pointnet_kan_forward.6} parent=5 // pred_check_branch
        %294 = sbr.rel (%p291) target = $region12
      $region11: #{pointnet_kan_forward.6} parent=5 // pred_region
        %s295 = ssub.s32 %s19, 1
        // Predicated region
        $region13: #{pointnet_kan_forward.6} parent=11 // pred_check
          %p296 = pneg %p80
        $region14: #{pointnet_kan_forward.6} parent=11 // pred_check_branch
          %298 = sbr.rel (%p296) target = $region16
        $region15: #{pointnet_kan_forward.6} parent=11 // pred_region
          _
        $region16: #{pointnet_kan_forward.6} parent=11 // pred_fallthru
          _
        // Predicated region
        $region17: #{pointnet_kan_forward.6} parent=11 // pred_check
          %p299 = pneg %p101
        $region18: #{pointnet_kan_forward.6} parent=11 // pred_check_branch
          %301 = sbr.rel (%p299) target = $region20
        $region19: #{pointnet_kan_forward.6} parent=11 // pred_region
          _
        $region20: #{pointnet_kan_forward.6} parent=11 // pred_fallthru
          _
        // Predicated region
        $region21: #{pointnet_kan_forward.6} parent=11 // pred_check
          %p302 = pneg %p122
        $region22: #{pointnet_kan_forward.6} parent=11 // pred_check_branch
          %304 = sbr.rel (%p302) target = $region24
        $region23: #{pointnet_kan_forward.6} parent=11 // pred_region
          _
        $region24: #{pointnet_kan_forward.6} parent=11 // pred_fallthru
          _
        // Predicated region
        $region25: #{pointnet_kan_forward.6} parent=11 // pred_check
          %p305 = pneg %p143
        $region26: #{pointnet_kan_forward.6} parent=11 // pred_check_branch
          %307 = sbr.rel (%p305) target = $region28
        $region27: #{pointnet_kan_forward.6} parent=11 // pred_region
          _
        $region28: #{pointnet_kan_forward.6} parent=11 // pred_fallthru
          _
      $region12: #{pointnet_kan_forward.6} parent=5 // pred_fallthru
        _
      %p308 = scmp.lt.s32.totalorder %s19, 2
      // Predicated region
      $region29: #{pointnet_kan_forward.6} parent=5 // pred_check
        %p309 = pneg %p308
      $region30: #{pointnet_kan_forward.6} parent=5 // pred_check_branch
        %311 = sbr.rel (%p309) target = $region32
      $region31: #{pointnet_kan_forward.6} parent=5 // pred_region
        // Predicated region
        $region33: #{pointnet_kan_forward.6} parent=31 // pred_check
          %p312 = pneg %p53
        $region34: #{pointnet_kan_forward.6} parent=31 // pred_check_branch
          %314 = sbr.rel (%p312) target = $region36
        $region35: #{pointnet_kan_forward.6} parent=31 // pred_region
          %s315 = smul.u32 8, %s27
          %p316 = scmp.lt.s32.totalorder %s26, 1
          %s317 = scalar_select %p316, %s26, 1
          %p318 = scmp.lt.s32.totalorder %s315, 7
          %s319 = scalar_select %p318, %s315, 7
          %s320 = smul.addr %s317, 8
          %s321 = sadd.s32 %s319, %s320
          %s322 = smul.addr %s321, 4
          %s323 = scalar_lea.vmem %s0, %s322
          %s324 = smul.u32 8, %s27
        $region36: #{pointnet_kan_forward.6} parent=31 // pred_fallthru
          _
        // Predicated region
        $region37: #{pointnet_kan_forward.6} parent=31 // pred_check
          %p325 = pneg %p163
        $region38: #{pointnet_kan_forward.6} parent=31 // pred_check_branch
          %327 = sbr.rel (%p325) target = $region40
        $region39: #{pointnet_kan_forward.6} parent=31 // pred_region
          %p328 = scmp.lt.s32.totalorder %s26, 1
          %s329 = scalar_select %p328, %s26, 1
          %s330 = scalar_lea.vmem %s5, %s329
        $region40: #{pointnet_kan_forward.6} parent=31 // pred_fallthru
          _
      $region32: #{pointnet_kan_forward.6} parent=5 // pred_fallthru
        _
      %p331 = scmp.le.s32.totalorder 1, %s19
      %p332 = scmp.lt.s32.totalorder %s19, 3
      %p333 = pnand %p331, %p332
      %p334 = pneg %p333
      // Predicated region
      $region41: #{pointnet_kan_forward.6} parent=5 // pred_check
        _
      $region42: #{pointnet_kan_forward.6} parent=5 // pred_check_branch
        %336 = sbr.rel (%p333) target = $region44
      $region43: #{pointnet_kan_forward.6} parent=5 // pred_region
        %s337 = ssub.s32 %s19, 1
        %s338 = smul.u32 8, %s29
        %p339 = scmp.lt.s32.totalorder %s28, 1
        %s340 = scalar_select %p339, %s28, 1
        %p341 = scmp.lt.s32.totalorder %s338, 7
        %s342 = scalar_select %p341, %s338, 7
        %s343 = smul.addr %s340, 8
        %s344 = sadd.s32 %s342, %s343
        %s345 = smul.addr %s344, 4
        %s346 = scalar_lea.vmem %s0, %s345
        %p347 = pneg %p59
        %p348 = pneg %p56
        %p349 = pneg %p80
        %p350 = pneg %p77
        %p351 = pneg %p101
        %p352 = pneg %p98
        %p353 = pneg %p122
        %p354 = pneg %p119
        %p355 = pneg %p143
        %p356 = pneg %p140
        %p357 = scmp.lt.s32.totalorder %s28, 1
        %s358 = scalar_select %p357, %s28, 1
        %s359 = scalar_lea.vmem %s5, %s358
        %p360 = pneg %p169
        %p361 = pneg %p166
        %p362 = pneg %p197
        %p363 = pneg %p194
        %s364 = smul.u32 8, %s29
        %p365 = scmp.lt.s32.totalorder %s28, 1
        %s366 = scalar_select %p365, %s28, 1
        %p367 = scmp.lt.s32.totalorder %s364, 7
        %s368 = scalar_select %p367, %s364, 7
        %s369 = smul.addr %s366, 8
        %s370 = sadd.s32 %s368, %s369
        %s371 = smul.addr %s370, 4
        %s372 = scalar_lea.vmem %s6, %s371
        %p373 = pneg %p225
        %p374 = pneg %p222
        %p375 = scmp.lt.s32.totalorder %s28, 1
        %s376 = scalar_select %p375, %s28, 1
        %p377 = scmp.lt.s32.totalorder %s29, 0
        %s378 = scalar_select %p377, %s29, 0
        %s379 = sadd.s32 %s378, %s376
        %s380 = scalar_lea.vmem %s7, %s379
        %p381 = pneg %p253
        %p382 = pneg %p250
        %p383 = scmp.lt.s32.totalorder %s28, 1
        %s384 = scalar_select %p383, %s28, 1
        %p385 = scmp.lt.s32.totalorder %s29, 0
        %s386 = scalar_select %p385, %s29, 0
        %s387 = sadd.s32 %s386, %s384
        %s388 = scalar_lea.vmem %s8, %s387
        %p389 = pneg %p281
        %p390 = pneg %p278
        %s391 = sand.u32 %s268, 1
        %s392 = scalar_lea.sflag [#allocation3], %s391
        %s393 = sand.u32 %s268, 1
        %s394 = scalar_lea.vmem [#allocation2], %s393
        %s395 = smul.u32 8, %s29
        %p396 = scmp.lt.s32.totalorder %s28, 1
        %s397 = scalar_select %p396, %s28, 1
        %p398 = scmp.lt.s32.totalorder %s395, 7
        %s399 = scalar_select %p398, %s395, 7
        %s400 = smul.addr %s397, 8
        %s401 = sadd.s32 %s399, %s400
        %s402 = smul.addr %s401, 4
        %s403 = scalar_lea.vmem %s0, %s402
        %s404 = smul.u32 8, %s29
        %p405 = scmp.lt.s32.totalorder %s28, 1
        %s406 = scalar_select %p405, %s28, 1
        %s407 = scalar_lea.vmem %s5, %s406
        %s408 = smul.u32 8, %s29
        %p409 = scmp.lt.s32.totalorder %s28, 1
        %s410 = scalar_select %p409, %s28, 1
        %p411 = scmp.lt.s32.totalorder %s408, 7
        %s412 = scalar_select %p411, %s408, 7
        %s413 = smul.addr %s410, 8
        %s414 = sadd.s32 %s412, %s413
        %s415 = smul.addr %s414, 4
        %s416 = scalar_lea.vmem %s6, %s415
        %s417 = smul.u32 8, %s29
        %p418 = scmp.lt.s32.totalorder %s28, 1
        %s419 = scalar_select %p418, %s28, 1
        %p420 = scmp.lt.s32.totalorder %s29, 0
        %s421 = scalar_select %p420, %s29, 0
        %s422 = sadd.s32 %s421, %s419
        %s423 = scalar_lea.vmem %s7, %s422
        %p424 = scmp.lt.s32.totalorder %s28, 1
        %s425 = scalar_select %p424, %s28, 1
        %p426 = scmp.lt.s32.totalorder %s29, 0
        %s427 = scalar_select %p426, %s29, 0
        %s428 = sadd.s32 %s427, %s425
        %s429 = scalar_lea.vmem %s8, %s428
        %v431 = vld [vmem:[%s403] sm:$0xf]
        %v432 = vld [vmem:[%s403 + $0x4] sm:$0xf]
        %v433 = vld [vmem:[%s403 + $0x8] sm:$0xf]
        %v434 = vld [vmem:[%s403 + $0xc] sm:$0xf]
        %v435 = vld [vmem:[%s403 + $0x10] sm:$0xf]
        %v436 = vld [vmem:[%s403 + $0x14] sm:$0xf]
        %v437 = vld [vmem:[%s403 + $0x18] sm:$0xf]
        %v438 = vld [vmem:[%s403 + $0x1c] sm:$0xf]
        %v439 = vunpack.c.l.bf16 %v431
        %v440 = vunpack.c.l.bf16 %v432
        %v441 = vunpack.c.l.bf16 %v433
        %v442 = vunpack.c.l.bf16 %v434
        %v443 = vunpack.c.l.bf16 %v435
        %v444 = vunpack.c.l.bf16 %v436
        %v445 = vunpack.c.l.bf16 %v437
        %v446 = vunpack.c.l.bf16 %v438
        %v447 = vld [vmem:[%s1] sm:$0x1]
        %v448 = vld [vmem:[%s2] sm:$0x1]
        %v450 = vlaneseq
        %v451 = vshrl.u32 %v450, 7
        %v452 = vsub.s32 0, %v451
        %v453 = vrot.slane %v447, %v452
        %v455 = vsub.f32 %v439, %v453
        %v456 = vsub.f32 %v440, %v453
        %v457 = vsub.f32 %v441, %v453
        %v458 = vsub.f32 %v442, %v453
        %v459 = vsub.f32 %v443, %v453
        %v460 = vsub.f32 %v444, %v453
        %v461 = vsub.f32 %v445, %v453
        %v462 = vsub.f32 %v446, %v453
        %v464 = vlaneseq
        %v465 = vshrl.u32 %v464, 7
        %v466 = vsub.s32 0, %v465
        %v467 = vrot.slane %v448, %v466
        %v469 = vmul.f32 %v455, %v467
        %v470 = vmul.f32 %v456, %v467
        %v471 = vmul.f32 %v457, %v467
        %v472 = vmul.f32 %v458, %v467
        %v473 = vmul.f32 %v459, %v467
        %v474 = vmul.f32 %v460, %v467
        %v475 = vmul.f32 %v461, %v467
        %v476 = vmul.f32 %v462, %v467
        %v477 = vtanh.pop %v469
        %v478 = vtanh.pop %v470
        %v479 = vtanh.pop %v471
        %v480 = vtanh.pop %v472
        %v481 = vtanh.pop %v473
        %v482 = vtanh.pop %v474
        %v483 = vtanh.pop %v475
        %v484 = vtanh.pop %v476
        %v485 = vadd.f32 %v477, 0.0
        %v486 = vadd.f32 %v478, 0.0
        %v487 = vadd.f32 %v479, 0.0
        %v488 = vadd.f32 %v480, 0.0
        %v489 = vadd.f32 %v481, 0.0
        %v490 = vadd.f32 %v482, 0.0
        %v491 = vadd.f32 %v483, 0.0
        %v492 = vadd.f32 %v484, 0.0
        %v493 = vmul.f32 %v485, 0.5
        %v494 = vmul.f32 %v486, 0.5
        %v495 = vmul.f32 %v487, 0.5
        %v496 = vmul.f32 %v488, 0.5
        %v497 = vmul.f32 %v489, 0.5
        %v498 = vmul.f32 %v490, 0.5
        %v499 = vmul.f32 %v491, 0.5
        %v500 = vmul.f32 %v492, 0.5
        %v501 = vmul.f32 %v477, 1.5
        %v502 = vmul.f32 %v478, 1.5
        %v503 = vmul.f32 %v479, 1.5
        %v504 = vmul.f32 %v480, 1.5
        %v505 = vmul.f32 %v481, 1.5
        %v506 = vmul.f32 %v482, 1.5
        %v507 = vmul.f32 %v483, 1.5
        %v508 = vmul.f32 %v484, 1.5
        %v509 = vadd.f32 %v501, 0.0
        %v510 = vadd.f32 %v502, 0.0
        %v511 = vadd.f32 %v503, 0.0
        %v512 = vadd.f32 %v504, 0.0
        %v513 = vadd.f32 %v505, 0.0
        %v514 = vadd.f32 %v506, 0.0
        %v515 = vadd.f32 %v507, 0.0
        %v516 = vadd.f32 %v508, 0.0
        %v517 = vmul.f32 %v509, %v493
        %v518 = vmul.f32 %v510, %v494
        %v519 = vmul.f32 %v511, %v495
        %v520 = vmul.f32 %v512, %v496
        %v521 = vmul.f32 %v513, %v497
        %v522 = vmul.f32 %v514, %v498
        %v523 = vmul.f32 %v515, %v499
        %v524 = vmul.f32 %v516, %v500
        %v525 = vadd.f32 %v517, -0.375
        %v526 = vadd.f32 %v518, -0.375
        %v527 = vadd.f32 %v519, -0.375
        %v528 = vadd.f32 %v520, -0.375
        %v529 = vadd.f32 %v521, -0.375
        %v530 = vadd.f32 %v522, -0.375
        %v531 = vadd.f32 %v523, -0.375
        %v532 = vadd.f32 %v524, -0.375
        %v533 = vpack.c.bf16 %v494, %v493
        %v534 = vpack.c.bf16 %v496, %v495
        %v535 = vpack.c.bf16 %v498, %v497
        %v536 = vpack.c.bf16 %v500, %v499
        %v537 = vld [vmem:[%s3] sm:$0xf]
        %v538 = vld [vmem:[%s3 + $0x4] sm:$0xf]
        %v539 = vld [vmem:[%s3 + $0x8] sm:$0xf]
        %v540 = vld [vmem:[%s3 + $0xc] sm:$0xf]
        %v541 = vld [vmem:[%s3 + $0x10] sm:$0xf]
        %v542 = vld [vmem:[%s3 + $0x14] sm:$0xf]
        %v543 = vld [vmem:[%s3 + $0x18] sm:$0xf]
        %v544 = vld [vmem:[%s3 + $0x1c] sm:$0xf]
        %v545 = vld [vmem:[%s3 + $0x20] sm:$0xf]
        %v546 = vld [vmem:[%s3 + $0x24] sm:$0xf]
        %v547 = vld [vmem:[%s3 + $0x28] sm:$0xf]
        %v548 = vld [vmem:[%s3 + $0x2c] sm:$0xf]
        %v549 = vld [vmem:[%s3 + $0x30] sm:$0xf]
        %v550 = vld [vmem:[%s3 + $0x34] sm:$0xf]
        %v551 = vld [vmem:[%s3 + $0x38] sm:$0xf]
        %v552 = vld [vmem:[%s3 + $0x3c] sm:$0xf]
        %v553 = vpack.c.bf16 %v526, %v525
        %v554 = vpack.c.bf16 %v528, %v527
        %v555 = vpack.c.bf16 %v530, %v529
        %v556 = vpack.c.bf16 %v532, %v531
        %s557 = scalar_lea.vmem %s3, 64
        %v558 = vld [vmem:[%s557] sm:$0xf]
        %v559 = vld [vmem:[%s557 + $0x4] sm:$0xf]
        %v560 = vld [vmem:[%s557 + $0x8] sm:$0xf]
        %v561 = vld [vmem:[%s557 + $0xc] sm:$0xf]
        %v562 = vld [vmem:[%s557 + $0x10] sm:$0xf]
        %v563 = vld [vmem:[%s557 + $0x14] sm:$0xf]
        %v564 = vld [vmem:[%s557 + $0x18] sm:$0xf]
        %v565 = vld [vmem:[%s557 + $0x1c] sm:$0xf]
        %v566 = vld [vmem:[%s557 + $0x20] sm:$0xf]
        %v567 = vld [vmem:[%s557 + $0x24] sm:$0xf]
        %v568 = vld [vmem:[%s557 + $0x28] sm:$0xf]
        %v569 = vld [vmem:[%s557 + $0x2c] sm:$0xf]
        %v570 = vld [vmem:[%s557 + $0x30] sm:$0xf]
        %v571 = vld [vmem:[%s557 + $0x34] sm:$0xf]
        %v572 = vld [vmem:[%s557 + $0x38] sm:$0xf]
        %v573 = vld [vmem:[%s557 + $0x3c] sm:$0xf]
        %v590 = vunpack.c.l.b16 %v558
        %v591 = vunpack.c.l.b16 %v559
        %v592 = vunpack.c.l.b16 %v560
        %v593 = vunpack.c.l.b16 %v561
        %v594 = vunpack.c.l.b16 %v562
        %v595 = vunpack.c.l.b16 %v563
        %v596 = vunpack.c.l.b16 %v564
        %v597 = vunpack.c.l.b16 %v565
        %v598 = vunpack.c.l.b16 %v566
        %v599 = vunpack.c.l.b16 %v567
        %v600 = vunpack.c.l.b16 %v568
        %v601 = vunpack.c.l.b16 %v569
        %v602 = vunpack.c.l.b16 %v570
        %v603 = vunpack.c.l.b16 %v571
        %v604 = vunpack.c.l.b16 %v572
        %v605 = vunpack.c.l.b16 %v573
        %v606 = vpack.c.b16 %v591, %v590
        %v607 = vpack.c.b16 %v593, %v592
        %v608 = vpack.c.b16 %v595, %v594
        %v609 = vpack.c.b16 %v597, %v596
        %v610 = vpack.c.b16 %v599, %v598
        %v611 = vpack.c.b16 %v601, %v600
        %v612 = vpack.c.b16 %v603, %v602
        %v613 = vpack.c.b16 %v605, %v604
        %622 = vmatprep.subr.bf16.mxu0 0
        %623 = vmatpush1.bf16.msra.mxu0 %v606
        %624 = vmatprep.subr.bf16.mxu0 0
        %625 = vmatpush1.bf16.msra.mxu0 %v607
        %626 = vmatprep.subr.bf16.mxu0 0
        %627 = vmatpush1.bf16.msra.mxu0 %v608
        %628 = vmatprep.subr.bf16.mxu0 0
        %629 = vmatpush1.bf16.msra.mxu0 %v609
        %630 = vmatprep.subr.bf16.mxu0 0
        %631 = vmatpush1.bf16.msra.mxu0 %v610
        %632 = vmatprep.subr.bf16.mxu0 0
        %633 = vmatpush1.bf16.msra.mxu0 %v611
        %634 = vmatprep.subr.bf16.mxu0 0
        %635 = vmatpush1.bf16.msra.mxu0 %v612
        %636 = vmatprep.subr.bf16.mxu0 0
        %637 = vmatpush1.bf16.msra.mxu0 %v613
        %638 = vmatprep.subr.bf16.mxu0 0
        %639 = vmatpush1.bf16.msra.mxu0 0
        %640 = vmatprep.subr.bf16.mxu0 0
        %641 = vmatpush1.bf16.msra.mxu0 0
        %642 = vmatprep.subr.bf16.mxu0 0
        %643 = vmatpush1.bf16.msra.mxu0 0
        %644 = vmatprep.subr.bf16.mxu0 0
        %645 = vmatpush1.bf16.msra.mxu0 0
        %646 = vmatprep.subr.bf16.mxu0 0
        %647 = vmatpush1.bf16.msra.mxu0 0
        %648 = vmatprep.subr.bf16.mxu0 0
        %649 = vmatpush1.bf16.msra.mxu0 0
        %650 = vmatprep.subr.bf16.mxu0 0
        %651 = vmatpush1.bf16.msra.mxu0 0
        %652 = vmatprep.subr.bf16.mxu0 0
        %653 = vmatpush1.bf16.msra.mxu0 0
        %654 = vmatprep.mubr.bf16.mxu0 0
        %655 = vmatmul.mubr.bf16.gmra.mrb[0].mxu0 %v553
        %v656 = vpop.f32.mrb[0].mxu0
        %v657 = vadd.f32 0.0, %v656
        %v658 = vpop.f32.mrb[0].mxu0
        %v659 = vpop.f32.mrb[0].mxu0
        %v660 = vadd.f32 0.0, %v659
        %v661 = vpop.f32.mrb[0].mxu0
        %662 = vmatprep.mubr.bf16.mxu0 0
        %663 = vmatmul.mubr.bf16.gmra.mrb[0].mxu0 %v554
        %v664 = vpop.f32.mrb[0].mxu0
        %v665 = vadd.f32 0.0, %v664
        %v666 = vpop.f32.mrb[0].mxu0
        %v667 = vpop.f32.mrb[0].mxu0
        %v668 = vadd.f32 0.0, %v667
        %v669 = vpop.f32.mrb[0].mxu0
        %670 = vmatprep.mubr.bf16.mxu0 0
        %671 = vmatmul.mubr.bf16.gmra.mrb[0].mxu0 %v555
        %v672 = vpop.f32.mrb[0].mxu0
        %v673 = vadd.f32 0.0, %v672
        %v674 = vpop.f32.mrb[0].mxu0
        %v675 = vpop.f32.mrb[0].mxu0
        %v676 = vadd.f32 0.0, %v675
        %v677 = vpop.f32.mrb[0].mxu0
        %678 = vmatprep.mubr.bf16.mxu0 0
        %679 = vmatmul.mubr.bf16.gmra.mrb[0].mxu0 %v556
        %v680 = vpop.f32.mrb[0].mxu0
        %v681 = vadd.f32 0.0, %v680
        %v682 = vpop.f32.mrb[0].mxu0
        %v683 = vpop.f32.mrb[0].mxu0
        %v684 = vadd.f32 0.0, %v683
        %v685 = vpop.f32.mrb[0].mxu0
        %686 = vdwg.mxu0
        %v703 = vunpack.c.l.b16 %v537
        %v704 = vunpack.c.l.b16 %v538
        %v705 = vunpack.c.l.b16 %v539
        %v706 = vunpack.c.l.b16 %v540
        %v707 = vunpack.c.l.b16 %v541
        %v708 = vunpack.c.l.b16 %v542
        %v709 = vunpack.c.l.b16 %v543
        %v710 = vunpack.c.l.b16 %v544
        %v711 = vunpack.c.l.b16 %v545
        %v712 = vunpack.c.l.b16 %v546
        %v713 = vunpack.c.l.b16 %v547
        %v714 = vunpack.c.l.b16 %v548
        %v715 = vunpack.c.l.b16 %v549
        %v716 = vunpack.c.l.b16 %v550
        %v717 = vunpack.c.l.b16 %v551
        %v718 = vunpack.c.l.b16 %v552
        %v719 = vpack.c.b16 %v704, %v703
        %v720 = vpack.c.b16 %v706, %v705
        %v721 = vpack.c.b16 %v708, %v707
        %v722 = vpack.c.b16 %v710, %v709
        %v723 = vpack.c.b16 %v712, %v711
        %v724 = vpack.c.b16 %v714, %v713
        %v725 = vpack.c.b16 %v716, %v715
        %v726 = vpack.c.b16 %v718, %v717
        %735 = vmatprep.subr.bf16.mxu0 0
        %736 = vmatpush1.bf16.msra.mxu0 %v719
        %737 = vmatprep.subr.bf16.mxu0 0
        %738 = vmatpush1.bf16.msra.mxu0 %v720
        %739 = vmatprep.subr.bf16.mxu0 0
        %740 = vmatpush1.bf16.msra.mxu0 %v721
        %741 = vmatprep.subr.bf16.mxu0 0
        %742 = vmatpush1.bf16.msra.mxu0 %v722
        %743 = vmatprep.subr.bf16.mxu0 0
        %744 = vmatpush1.bf16.msra.mxu0 %v723
        %745 = vmatprep.subr.bf16.mxu0 0
        %746 = vmatpush1.bf16.msra.mxu0 %v724
        %747 = vmatprep.subr.bf16.mxu0 0
        %748 = vmatpush1.bf16.msra.mxu0 %v725
        %749 = vmatprep.subr.bf16.mxu0 0
        %750 = vmatpush1.bf16.msra.mxu0 %v726
        %751 = vmatprep.subr.bf16.mxu0 0
        %752 = vmatpush1.bf16.msra.mxu0 0
        %753 = vmatprep.subr.bf16.mxu0 0
        %754 = vmatpush1.bf16.msra.mxu0 0
        %755 = vmatprep.subr.bf16.mxu0 0
        %756 = vmatpush1.bf16.msra.mxu0 0
        %757 = vmatprep.subr.bf16.mxu0 0
        %758 = vmatpush1.bf16.msra.mxu0 0
        %759 = vmatprep.subr.bf16.mxu0 0
        %760 = vmatpush1.bf16.msra.mxu0 0
        %761 = vmatprep.subr.bf16.mxu0 0
        %762 = vmatpush1.bf16.msra.mxu0 0
        %763 = vmatprep.subr.bf16.mxu0 0
        %764 = vmatpush1.bf16.msra.mxu0 0
        %765 = vmatprep.subr.bf16.mxu0 0
        %766 = vmatpush1.bf16.msra.mxu0 0
        %767 = vmatprep.mubr.bf16.mxu0 0
        %768 = vmatmul.mubr.bf16.gmra.mrb[0].mxu0 %v533
        %v769 = vpop.f32.mrb[0].mxu0
        %v770 = vadd.f32 %v657, %v769
        %v771 = vpop.f32.mrb[0].mxu0
        %v772 = vpop.f32.mrb[0].mxu0
        %v773 = vadd.f32 %v660, %v772
        %v774 = vpop.f32.mrb[0].mxu0
        %775 = vmatprep.mubr.bf16.mxu0 0
        %776 = vmatmul.mubr.bf16.gmra.mrb[0].mxu0 %v534
        %v777 = vpop.f32.mrb[0].mxu0
        %v778 = vadd.f32 %v665, %v777
        %v779 = vpop.f32.mrb[0].mxu0
        %v780 = vpop.f32.mrb[0].mxu0
        %v781 = vadd.f32 %v668, %v780
        %v782 = vpop.f32.mrb[0].mxu0
        %783 = vmatprep.mubr.bf16.mxu0 0
        %784 = vmatmul.mubr.bf16.gmra.mrb[0].mxu0 %v535
        %v785 = vpop.f32.mrb[0].mxu0
        %v786 = vadd.f32 %v673, %v785
        %v787 = vpop.f32.mrb[0].mxu0
        %v788 = vpop.f32.mrb[0].mxu0
        %v789 = vadd.f32 %v676, %v788
        %v790 = vpop.f32.mrb[0].mxu0
        %791 = vmatprep.mubr.bf16.mxu0 0
        %792 = vmatmul.mubr.bf16.gmra.mrb[0].mxu0 %v536
        %v793 = vpop.f32.mrb[0].mxu0
        %v794 = vadd.f32 %v681, %v793
        %v795 = vpop.f32.mrb[0].mxu0
        %v796 = vpop.f32.mrb[0].mxu0
        %v797 = vadd.f32 %v684, %v796
        %v798 = vpop.f32.mrb[0].mxu0
        %799 = vdwg.mxu0
        %v800 = vld [vmem:[%s4] sm:$0x1]
        %v802 = vlaneseq
        %v803 = vshrl.u32 %v802, 7
        %v804 = vsub.s32 0, %v803
        %v805 = vrot.slane %v800, %v804
        %v807 = vadd.f32 %v770, %v805
        %v808 = vadd.f32 %v773, %v805
        %v809 = vadd.f32 %v778, %v805
        %v810 = vadd.f32 %v781, %v805
        %v811 = vadd.f32 %v786, %v805
        %v812 = vadd.f32 %v789, %v805
        %v813 = vadd.f32 %v794, %v805
        %v814 = vadd.f32 %v797, %v805
        %v815 = vld [vmem:[%s407] sm:$0x1]
        %v817 = vlaneseq
        %v818 = vshrl.u32 %v817, 7
        %v819 = vsub.s32 0, %v818
        %v820 = vrot.slane %v815, %v819
        %v822 = vadd.f32 %v807, %v820
        %v823 = vadd.f32 %v808, %v820
        %v824 = vadd.f32 %v809, %v820
        %v825 = vadd.f32 %v810, %v820
        %v826 = vadd.f32 %v811, %v820
        %v827 = vadd.f32 %v812, %v820
        %v828 = vadd.f32 %v813, %v820
        %v829 = vadd.f32 %v814, %v820
        %v830 = vpack.c.bf16 %v823, %v822
        %v831 = vpack.c.bf16 %v825, %v824
        %v832 = vpack.c.bf16 %v827, %v826
        %v833 = vpack.c.bf16 %v829, %v828
        %v838 = vunpack.c.l.b16 %v830
        %v839 = vunpack.c.h.b16 %v830
        %v840 = vunpack.c.l.b16 %v831
        %v841 = vunpack.c.h.b16 %v831
        %v842 = vunpack.c.l.b16 %v832
        %v843 = vunpack.c.h.b16 %v832
        %v844 = vunpack.c.l.b16 %v833
        %v845 = vunpack.c.h.b16 %v833
        %v846 = vpack.c.b16 %v838, %v838
        %v847 = vpack.c.b16 %v839, %v839
        %v848 = vpack.c.b16 %v840, %v840
        %v849 = vpack.c.b16 %v841, %v841
        %v850 = vpack.c.b16 %v842, %v842
        %v851 = vpack.c.b16 %v843, %v843
        %v852 = vpack.c.b16 %v844, %v844
        %v853 = vpack.c.b16 %v845, %v845
        %862 = vst [vmem:[%s416] sm:$0xf] %v846
        %863 = vst [vmem:[%s416 + $0x4] sm:$0xf] %v847
        %864 = vst [vmem:[%s416 + $0x8] sm:$0xf] %v848
        %865 = vst [vmem:[%s416 + $0xc] sm:$0xf] %v849
        %866 = vst [vmem:[%s416 + $0x10] sm:$0xf] %v850
        %867 = vst [vmem:[%s416 + $0x14] sm:$0xf] %v851
        %868 = vst [vmem:[%s416 + $0x18] sm:$0xf] %v852
        %869 = vst [vmem:[%s416 + $0x1c] sm:$0xf] %v853
        %v870 = vadd.f32 %v822, %v823
        %v871 = vadd.f32 %v870, %v824
        %v872 = vadd.f32 %v871, %v825
        %v873 = vadd.f32 %v872, %v826
        %v874 = vadd.f32 %v873, %v827
        %v875 = vadd.f32 %v874, %v828
        %v876 = vadd.f32 %v875, %v829
        %v877 = vrot.slane %v876, 4
        %v878 = vadd.f32 %v876, %v877
        %v879 = vrot.slane %v878, 2
        %v880 = vadd.f32 %v878, %v879
        %v881 = vrot.slane %v880, 1
        %v882 = vadd.f32 %v880, %v881
        %883 = vst [vmem:[%s423] sm:$0x1] %v882
        %v884 = vmul.f32 %v822, %v822
        %v885 = vmul.f32 %v823, %v823
        %v886 = vmul.f32 %v824, %v824
        %v887 = vmul.f32 %v825, %v825
        %v888 = vmul.f32 %v826, %v826
        %v889 = vmul.f32 %v827, %v827
        %v890 = vmul.f32 %v828, %v828
        %v891 = vmul.f32 %v829, %v829
        %v892 = vadd.f32 %v884, %v885
        %v893 = vadd.f32 %v892, %v886
        %v894 = vadd.f32 %v893, %v887
        %v895 = vadd.f32 %v894, %v888
        %v896 = vadd.f32 %v895, %v889
        %v897 = vadd.f32 %v896, %v890
        %v898 = vadd.f32 %v897, %v891
        %v899 = vrot.slane %v898, 4
        %v900 = vadd.f32 %v898, %v899
        %v901 = vrot.slane %v900, 2
        %v902 = vadd.f32 %v900, %v901
        %v903 = vrot.slane %v902, 1
        %v904 = vadd.f32 %v902, %v903
        %905 = vst [vmem:[%s429] sm:$0x1] %v904
        %v906 = vmax.f32 %v822, %v826
        %v907 = vmax.f32 %v823, %v827
        %v908 = vmax.f32 %v824, %v828
        %v909 = vmax.f32 %v825, %v829
        %v910 = vmax.f32 %v906, %v907
        %v911 = vmax.f32 %v908, %v909
        %v912 = vmax.f32 %v910, %v911
        %v913 = vrot.slane %v912, 4
        %v914 = vmax.f32 %v912, %v913
        %v915 = vrot.slane %v914, 2
        %v916 = vmax.f32 %v914, %v915
        %v917 = vrot.slane %v916, 1
        %v918 = vmax.f32 %v916, %v917
        %919 = vst [vmem:[%s394] sm:$0x1] %v918
        %s920 = smul.u32 8, %s29
        %p921 = scmp.lt.s32.totalorder %s28, 1
        %s922 = scalar_select %p921, %s28, 1
        %p923 = scmp.lt.s32.totalorder %s920, 7
        %s924 = scalar_select %p923, %s920, 7
        %s925 = smul.addr %s922, 8
        %s926 = sadd.s32 %s924, %s925
        %s927 = smul.addr %s926, 4
        %s928 = scalar_lea.vmem %s6, %s927
        %p929 = scmp.lt.s32.totalorder %s28, 1
        %s930 = scalar_select %p929, %s28, 1
        %p931 = scmp.lt.s32.totalorder %s29, 0
        %s932 = scalar_select %p931, %s29, 0
        %s933 = sadd.s32 %s932, %s930
        %s934 = scalar_lea.vmem %s7, %s933
        %p935 = scmp.lt.s32.totalorder %s28, 1
        %s936 = scalar_select %p935, %s28, 1
        %p937 = scmp.lt.s32.totalorder %s29, 0
        %s938 = scalar_select %p937, %s29, 0
        %s939 = sadd.s32 %s938, %s936
        %s940 = scalar_lea.vmem %s8, %s939
        %s941 = sand.u32 %s268, 1
        %s942 = scalar_lea.sflag [#allocation3], %s941
        %s943 = sand.u32 %s268, 1
        %s944 = scalar_lea.vmem [#allocation2], %s943
        // Predicated region
        $region45: #{pointnet_kan_forward.6} parent=43 // pred_check
          %p945 = pneg %p194
        $region46: #{pointnet_kan_forward.6} parent=43 // pred_check_branch
          %947 = sbr.rel (%p945) target = $region48
        $region47: #{pointnet_kan_forward.6} parent=43 // pred_region
          %s948 = smul.u32 8, %s29
        $region48: #{pointnet_kan_forward.6} parent=43 // pred_fallthru
          _
        // Predicated region
        $region49: #{pointnet_kan_forward.6} parent=43 // pred_check
          %p949 = pneg %p222
        $region50: #{pointnet_kan_forward.6} parent=43 // pred_check_branch
          %951 = sbr.rel (%p949) target = $region52
        $region51: #{pointnet_kan_forward.6} parent=43 // pred_region
          _
        $region52: #{pointnet_kan_forward.6} parent=43 // pred_fallthru
          _
        // Predicated region
        $region53: #{pointnet_kan_forward.6} parent=43 // pred_check
          %p952 = pneg %p250
        $region54: #{pointnet_kan_forward.6} parent=43 // pred_check_branch
          %954 = sbr.rel (%p952) target = $region56
        $region55: #{pointnet_kan_forward.6} parent=43 // pred_region
          _
        $region56: #{pointnet_kan_forward.6} parent=43 // pred_fallthru
          _
        // Predicated region
        $region57: #{pointnet_kan_forward.6} parent=43 // pred_check
          %p955 = pneg %p278
        $region58: #{pointnet_kan_forward.6} parent=43 // pred_check_branch
          %957 = sbr.rel (%p955) target = $region60
        $region59: #{pointnet_kan_forward.6} parent=43 // pred_region
          %s959 = ssub.s32 16, 16
          %960 = vsyncadd %s942, %s959
          %s961 = sadd.s32 %s29, %s28
          %s962 = smul.addr %s961, 16
          %s963 = scalar_lea.hbm %s9, %s962
          %s965 = sshll.u32 %s944, 4
          %s966 = int_to_ptr.vmem [resolvable:$true] %s965
          %968 = dma.vmem_to_hbm [thread:$0]  %s966, 16, %s963, %s942
        $region60: #{pointnet_kan_forward.6} parent=43 // pred_fallthru
          _
      $region44: #{pointnet_kan_forward.6} parent=5 // pred_fallthru
        _
      %p969 = scmp.le.s32.totalorder 2, %s19
      // Predicated region
      $region61: #{pointnet_kan_forward.6} parent=5 // pred_check
        %p970 = pneg %p969
      $region62: #{pointnet_kan_forward.6} parent=5 // pred_check_branch
        %972 = sbr.rel (%p970) target = $region64
      $region63: #{pointnet_kan_forward.6} parent=5 // pred_region
        %s973 = ssub.s32 %s19, 2
        // Predicated region
        $region65: #{pointnet_kan_forward.6} parent=63 // pred_check
          %p974 = pneg %p200
        $region66: #{pointnet_kan_forward.6} parent=63 // pred_check_branch
          %976 = sbr.rel (%p974) target = $region68
        $region67: #{pointnet_kan_forward.6} parent=63 // pred_region
          %s977 = smul.u32 8, %s31
          %p978 = scmp.lt.s32.totalorder %s30, 1
          %s979 = scalar_select %p978, %s30, 1
          %p980 = scmp.lt.s32.totalorder %s977, 7
          %s981 = scalar_select %p980, %s977, 7
          %s982 = smul.addr %s979, 8
          %s983 = sadd.s32 %s981, %s982
          %s984 = smul.addr %s983, 4
          %s985 = scalar_lea.vmem %s6, %s984
        $region68: #{pointnet_kan_forward.6} parent=63 // pred_fallthru
          _
        // Predicated region
        $region69: #{pointnet_kan_forward.6} parent=63 // pred_check
          %p986 = pneg %p228
        $region70: #{pointnet_kan_forward.6} parent=63 // pred_check_branch
          %988 = sbr.rel (%p986) target = $region72
        $region71: #{pointnet_kan_forward.6} parent=63 // pred_region
          %p989 = scmp.lt.s32.totalorder %s30, 1
          %s990 = scalar_select %p989, %s30, 1
          %p991 = scmp.lt.s32.totalorder %s31, 0
          %s992 = scalar_select %p991, %s31, 0
          %s993 = sadd.s32 %s992, %s990
          %s994 = scalar_lea.vmem %s7, %s993
        $region72: #{pointnet_kan_forward.6} parent=63 // pred_fallthru
          _
        // Predicated region
        $region73: #{pointnet_kan_forward.6} parent=63 // pred_check
          %p995 = pneg %p256
        $region74: #{pointnet_kan_forward.6} parent=63 // pred_check_branch
          %997 = sbr.rel (%p995) target = $region76
        $region75: #{pointnet_kan_forward.6} parent=63 // pred_region
          %p998 = scmp.lt.s32.totalorder %s30, 1
          %s999 = scalar_select %p998, %s30, 1
          %p1000 = scmp.lt.s32.totalorder %s31, 0
          %s1001 = scalar_select %p1000, %s31, 0
          %s1002 = sadd.s32 %s1001, %s999
          %s1003 = scalar_lea.vmem %s8, %s1002
        $region76: #{pointnet_kan_forward.6} parent=63 // pred_fallthru
          _
        // Predicated region
        $region77: #{pointnet_kan_forward.6} parent=63 // pred_check
          %p1004 = pneg %p284
        $region78: #{pointnet_kan_forward.6} parent=63 // pred_check_branch
          %1006 = sbr.rel (%p1004) target = $region80
        $region79: #{pointnet_kan_forward.6} parent=63 // pred_region
          %s1007 = sand.u32 %s269, 1
          %s1008 = scalar_lea.sflag [#allocation3], %s1007
          %s1009 = sand.u32 %s269, 1
          %s1010 = scalar_lea.vmem [#allocation2], %s1009
          %1011 = dma.done %s1008, 16
        $region80: #{pointnet_kan_forward.6} parent=63 // pred_fallthru
          _
      $region64: #{pointnet_kan_forward.6} parent=5 // pred_fallthru
        _
    $region6: #{pointnet_kan_forward.6} parent=1 // loop_footer
      %s23 = sadd.s32 1, %s19
    $region7: #{pointnet_kan_forward.6} parent=1 // loop_footer_branch
      %18 = sbr.rel target = $region3
    $region8: #{pointnet_kan_forward.6} parent=1 // loop_exit
      _
    %1012 = vsyncpa [#allocation3], 1
    %s1013 = scalar_lea.sflag [#allocation3], 1
    %1014 = vsyncpa %s1013, 1

// kernel: pointnet_kan_forward.7
$region0: #{pointnet_kan_forward.7}
  #allocation0 [shape = 'u32[]', space=smem, size = 0x4, offset = 0x4, fixed_abs, tag = 'smem constant byte address 0x4 - core index']
  #allocation1 [shape = 'u32[144,128]{1,0:T(1,128)}', space=vmem, size = 0x12000, scoped, tag = 'internal scratch']
  %s0 = inlined_call_operand.vmem [shape: bf16[2,64,128], index: 0, kind: input, shape index: {}]
  %s1 = inlined_call_operand.vmem [shape: f32[1,128], index: 1, kind: input, shape index: {}]
  %s2 = inlined_call_operand.vmem [shape: f32[1,128], index: 2, kind: input, shape index: {}]
  %s3 = inlined_call_operand.vmem [shape: bf16[2,128,128], index: 3, kind: input, shape index: {}]
  %s4 = inlined_call_operand.vmem [shape: f32[1,128], index: 4, kind: input, shape index: {}]
  %s5 = inlined_call_operand.vmem [shape: f32[2,50,64], index: 5, kind: output, shape index: {}]
  %s6 = sld [smem:[#allocation0]]
  $region53: #{pointnet_kan_forward.7} parent=0
    _
  %s8 = ssub.s32 1, %s6
  %s9 = scalar_select 0, %s8, %s6
  loop: start=0, step=1, limit=4
  $region2: #{pointnet_kan_forward.7} parent=0 // loop_pre_header
    _
  $region3: #{pointnet_kan_forward.7} parent=0 // loop_header
    %s11 = sphi 0, %s15
    %p12 = scmp.ge.s32.totalorder %s11, 4
    %s18 = sphi 0, %s30
    %s19 = sphi 0, %s26
    %s20 = sphi 0, %s18
    %s21 = sphi 0, %s19
    %s22 = sphi 0, %s20
    %s23 = sphi 0, %s21
    %s35 = sphi 0, %s37
    %s38 = sphi 0, %s35
    %s39 = sphi 0, %s38
    %s55 = sphi 0, %s39
    %s59 = sphi 0, %s59
    %s61 = sphi 0, %s59
    %s62 = sphi 0, %s61
    %s76 = sphi 0, %s62
    %s80 = sphi 0, %s80
    %s82 = sphi 0, %s80
    %s83 = sphi 0, %s82
    %s97 = sphi 0, %s83
    %s101 = sphi 0, %s101
    %s103 = sphi 0, %s101
    %s104 = sphi 0, %s103
    %s118 = sphi 0, %s104
    %s122 = sphi 0, %s122
    %s124 = sphi 0, %s122
    %s125 = sphi 0, %s124
    %s139 = sphi 0, %s125
    %s147 = sphi 0, %s149
    %s150 = sphi 0, %s147
    %s151 = sphi 0, %s150
    %s167 = sphi 0, %s151
  $region4: #{pointnet_kan_forward.7} parent=0 // loop_header_branch
    %14 = sbr.rel (%p12) target = $region8
  $region5: #{pointnet_kan_forward.7} parent=0 // loop_body
    %s16 = ssub.s32 %s11, 1
    %s17 = ssub.s32 %s11, 2
    %s24 = sadd.s32 1, %s19
    %p25 = scmp.ge.s32.totalorder %s24, 1
    %s26 = scalar_select %p25, 0, %s24
    %s27 = sadd.s32 1, %s18
    %s28 = scalar_select %p25, %s27, %s18
    %p29 = scmp.ge.s32.totalorder %s28, 2
    %s30 = scalar_select %p29, 0, %s28
    %s31 = ssub.s32 %s18, %s30
    %s32 = ssub.s32 %s19, %s26
    %s33 = sor.u32 %s31, %s32
    %p34 = scmp.eq.s32.totalorder %s33, 0
    %s36 = sadd.s32 %s35, 1
    %s37 = scalar_select %p34, %s35, %s36
    %p40 = pneg %p34
    %p41 = scmp.eq.s32.totalorder %s11, 1
    %p42 = por %p40, %p41
    %p43 = scmp.ne.s32.totalorder %s35, %s38
    %p44 = scmp.eq.s32.totalorder %s11, 0
    %p45 = por %p43, %p44
    %p46 = scmp.ne.s32.totalorder %s35, %s38
    %p47 = scmp.eq.s32.totalorder %s16, 1
    %p48 = por %p46, %p47
    %p49 = scmp.ne.s32.totalorder %s38, %s39
    %p50 = scmp.eq.s32.totalorder %s16, 0
    %p51 = por %p49, %p50
    %p52 = scmp.ne.s32.totalorder %s38, %s39
    %p53 = scmp.eq.s32.totalorder %s17, 1
    %p54 = por %p52, %p53
    %p56 = scmp.ne.s32.totalorder %s39, %s55
    %p57 = scmp.eq.s32.totalorder %s17, 0
    %p58 = por %p56, %p57
    %s60 = sadd.s32 %s59, 1
    %p63 = scmp.eq.s32.totalorder %s11, 1
    %p64 = scmp.ne.s32.totalorder %s59, %s61
    %p65 = scmp.eq.s32.totalorder %s11, 0
    %p66 = por %p64, %p65
    %p67 = scmp.ne.s32.totalorder %s59, %s61
    %p68 = scmp.eq.s32.totalorder %s16, 1
    %p69 = por %p67, %p68
    %p70 = scmp.ne.s32.totalorder %s61, %s62
    %p71 = scmp.eq.s32.totalorder %s16, 0
    %p72 = por %p70, %p71
    %p73 = scmp.ne.s32.totalorder %s61, %s62
    %p74 = scmp.eq.s32.totalorder %s17, 1
    %p75 = por %p73, %p74
    %p77 = scmp.ne.s32.totalorder %s62, %s76
    %p78 = scmp.eq.s32.totalorder %s17, 0
    %p79 = por %p77, %p78
    %s81 = sadd.s32 %s80, 1
    %p84 = scmp.eq.s32.totalorder %s11, 1
    %p85 = scmp.ne.s32.totalorder %s80, %s82
    %p86 = scmp.eq.s32.totalorder %s11, 0
    %p87 = por %p85, %p86
    %p88 = scmp.ne.s32.totalorder %s80, %s82
    %p89 = scmp.eq.s32.totalorder %s16, 1
    %p90 = por %p88, %p89
    %p91 = scmp.ne.s32.totalorder %s82, %s83
    %p92 = scmp.eq.s32.totalorder %s16, 0
    %p93 = por %p91, %p92
    %p94 = scmp.ne.s32.totalorder %s82, %s83
    %p95 = scmp.eq.s32.totalorder %s17, 1
    %p96 = por %p94, %p95
    %p98 = scmp.ne.s32.totalorder %s83, %s97
    %p99 = scmp.eq.s32.totalorder %s17, 0
    %p100 = por %p98, %p99
    %s102 = sadd.s32 %s101, 1
    %p105 = scmp.eq.s32.totalorder %s11, 1
    %p106 = scmp.ne.s32.totalorder %s101, %s103
    %p107 = scmp.eq.s32.totalorder %s11, 0
    %p108 = por %p106, %p107
    %p109 = scmp.ne.s32.totalorder %s101, %s103
    %p110 = scmp.eq.s32.totalorder %s16, 1
    %p111 = por %p109, %p110
    %p112 = scmp.ne.s32.totalorder %s103, %s104
    %p113 = scmp.eq.s32.totalorder %s16, 0
    %p114 = por %p112, %p113
    %p115 = scmp.ne.s32.totalorder %s103, %s104
    %p116 = scmp.eq.s32.totalorder %s17, 1
    %p117 = por %p115, %p116
    %p119 = scmp.ne.s32.totalorder %s104, %s118
    %p120 = scmp.eq.s32.totalorder %s17, 0
    %p121 = por %p119, %p120
    %s123 = sadd.s32 %s122, 1
    %p126 = scmp.eq.s32.totalorder %s11, 1
    %p127 = scmp.ne.s32.totalorder %s122, %s124
    %p128 = scmp.eq.s32.totalorder %s11, 0
    %p129 = por %p127, %p128
    %p130 = scmp.ne.s32.totalorder %s122, %s124
    %p131 = scmp.eq.s32.totalorder %s16, 1
    %p132 = por %p130, %p131
    %p133 = scmp.ne.s32.totalorder %s124, %s125
    %p134 = scmp.eq.s32.totalorder %s16, 0
    %p135 = por %p133, %p134
    %p136 = scmp.ne.s32.totalorder %s124, %s125
    %p137 = scmp.eq.s32.totalorder %s17, 1
    %p138 = por %p136, %p137
    %p140 = scmp.ne.s32.totalorder %s125, %s139
    %p141 = scmp.eq.s32.totalorder %s17, 0
    %p142 = por %p140, %p141
    %s143 = ssub.s32 %s18, %s30
    %s144 = ssub.s32 %s19, %s26
    %s145 = sor.u32 %s143, %s144
    %p146 = scmp.eq.s32.totalorder %s145, 0
    %s148 = sadd.s32 %s147, 1
    %s149 = scalar_select %p146, %s147, %s148
    %p152 = pneg %p146
    %p153 = scmp.eq.s32.totalorder %s11, 1
    %p154 = por %p152, %p153
    %p155 = scmp.ne.s32.totalorder %s147, %s150
    %p156 = scmp.eq.s32.totalorder %s11, 0
    %p157 = por %p155, %p156
    %p158 = scmp.ne.s32.totalorder %s147, %s150
    %p159 = scmp.eq.s32.totalorder %s16, 1
    %p160 = por %p158, %p159
    %p161 = scmp.ne.s32.totalorder %s150, %s151
    %p162 = scmp.eq.s32.totalorder %s16, 0
    %p163 = por %p161, %p162
    %p164 = scmp.ne.s32.totalorder %s150, %s151
    %p165 = scmp.eq.s32.totalorder %s17, 1
    %p166 = por %p164, %p165
    %p168 = scmp.ne.s32.totalorder %s151, %s167
    %p169 = scmp.eq.s32.totalorder %s17, 0
    %p170 = por %p168, %p169
    %p171 = scmp.le.s32.totalorder 1, %s11
    %p172 = scmp.lt.s32.totalorder %s11, 3
    %p173 = pnand %p171, %p172
    %p174 = pneg %p173
    // Predicated region
    $region9: #{pointnet_kan_forward.7} parent=5 // pred_check
      _
    $region10: #{pointnet_kan_forward.7} parent=5 // pred_check_branch
      %176 = sbr.rel (%p173) target = $region12
    $region11: #{pointnet_kan_forward.7} parent=5 // pred_region
      %s177 = ssub.s32 %s11, 1
      // Predicated region
      $region13: #{pointnet_kan_forward.7} parent=11 // pred_check
        %p178 = pneg %p72
      $region14: #{pointnet_kan_forward.7} parent=11 // pred_check_branch
        %180 = sbr.rel (%p178) target = $region16
      $region15: #{pointnet_kan_forward.7} parent=11 // pred_region
        _
      $region16: #{pointnet_kan_forward.7} parent=11 // pred_fallthru
        _
      // Predicated region
      $region17: #{pointnet_kan_forward.7} parent=11 // pred_check
        %p181 = pneg %p93
      $region18: #{pointnet_kan_forward.7} parent=11 // pred_check_branch
        %183 = sbr.rel (%p181) target = $region20
      $region19: #{pointnet_kan_forward.7} parent=11 // pred_region
        _
      $region20: #{pointnet_kan_forward.7} parent=11 // pred_fallthru
        _
      // Predicated region
      $region21: #{pointnet_kan_forward.7} parent=11 // pred_check
        %p184 = pneg %p114
      $region22: #{pointnet_kan_forward.7} parent=11 // pred_check_branch
        %186 = sbr.rel (%p184) target = $region24
      $region23: #{pointnet_kan_forward.7} parent=11 // pred_region
        _
      $region24: #{pointnet_kan_forward.7} parent=11 // pred_fallthru
        _
      // Predicated region
      $region25: #{pointnet_kan_forward.7} parent=11 // pred_check
        %p187 = pneg %p135
      $region26: #{pointnet_kan_forward.7} parent=11 // pred_check_branch
        %189 = sbr.rel (%p187) target = $region28
      $region27: #{pointnet_kan_forward.7} parent=11 // pred_region
        _
      $region28: #{pointnet_kan_forward.7} parent=11 // pred_fallthru
        _
    $region12: #{pointnet_kan_forward.7} parent=5 // pred_fallthru
      _
    %p190 = scmp.lt.s32.totalorder %s11, 2
    // Predicated region
    $region29: #{pointnet_kan_forward.7} parent=5 // pred_check
      %p191 = pneg %p190
    $region30: #{pointnet_kan_forward.7} parent=5 // pred_check_branch
      %193 = sbr.rel (%p191) target = $region32
    $region31: #{pointnet_kan_forward.7} parent=5 // pred_region
      // Predicated region
      $region33: #{pointnet_kan_forward.7} parent=31 // pred_check
        %p194 = pneg %p45
      $region34: #{pointnet_kan_forward.7} parent=31 // pred_check_branch
        %196 = sbr.rel (%p194) target = $region36
      $region35: #{pointnet_kan_forward.7} parent=31 // pred_region
        %s197 = smul.u32 8, %s19
        %p198 = scmp.lt.s32.totalorder %s18, 1
        %s199 = scalar_select %p198, %s18, 1
        %p200 = scmp.lt.s32.totalorder %s197, 7
        %s201 = scalar_select %p200, %s197, 7
        %s202 = smul.addr %s199, 8
        %s203 = sadd.s32 %s201, %s202
        %s204 = smul.addr %s203, 4
        %s205 = scalar_lea.vmem %s0, %s204
        %s206 = smul.u32 8, %s19
      $region36: #{pointnet_kan_forward.7} parent=31 // pred_fallthru
        _
    $region32: #{pointnet_kan_forward.7} parent=5 // pred_fallthru
      _
    %p207 = scmp.le.s32.totalorder 1, %s11
    %p208 = scmp.lt.s32.totalorder %s11, 3
    %p209 = pnand %p207, %p208
    %p210 = pneg %p209
    // Predicated region
    $region37: #{pointnet_kan_forward.7} parent=5 // pred_check
      _
    $region38: #{pointnet_kan_forward.7} parent=5 // pred_check_branch
      %212 = sbr.rel (%p209) target = $region40
    $region39: #{pointnet_kan_forward.7} parent=5 // pred_region
      %s213 = ssub.s32 %s11, 1
      %s214 = smul.u32 8, %s21
      %p215 = scmp.lt.s32.totalorder %s20, 1
      %s216 = scalar_select %p215, %s20, 1
      %p217 = scmp.lt.s32.totalorder %s214, 7
      %s218 = scalar_select %p217, %s214, 7
      %s219 = smul.addr %s216, 8
      %s220 = sadd.s32 %s218, %s219
      %s221 = smul.addr %s220, 4
      %s222 = scalar_lea.vmem %s0, %s221
      %p223 = pneg %p51
      %p224 = pneg %p48
      %p225 = pneg %p72
      %p226 = pneg %p69
      %p227 = pneg %p93
      %p228 = pneg %p90
      %p229 = pneg %p114
      %p230 = pneg %p111
      %p231 = pneg %p135
      %p232 = pneg %p132
      %p233 = pneg %p163
      %p234 = pneg %p160
      %p235 = scmp.lt.s32.totalorder %s20, 1
      %s236 = scalar_select %p235, %s20, 1
      %p237 = scmp.lt.s32.totalorder %s21, 0
      %s238 = scalar_select %p237, %s21, 0
      %s239 = smul.addr %s236, 7
      %s240 = sadd.s32 %s238, %s239
      %s241 = smul.addr %s240, 8
      %s242 = scalar_lea.vmem %s5, %s241
      %s243 = smul.u32 8, %s21
      %p244 = scmp.lt.s32.totalorder %s20, 1
      %s245 = scalar_select %p244, %s20, 1
      %p246 = scmp.lt.s32.totalorder %s243, 7
      %s247 = scalar_select %p246, %s243, 7
      %s248 = smul.addr %s245, 8
      %s249 = sadd.s32 %s247, %s248
      %s250 = smul.addr %s249, 4
      %s251 = scalar_lea.vmem %s0, %s250
      %s252 = smul.u32 8, %s21
      %p253 = scmp.lt.s32.totalorder %s20, 1
      %s254 = scalar_select %p253, %s20, 1
      %p255 = scmp.lt.s32.totalorder %s21, 0
      %s256 = scalar_select %p255, %s21, 0
      %s257 = smul.addr %s254, 7
      %s258 = sadd.s32 %s256, %s257
      %s259 = smul.addr %s258, 8
      %s260 = scalar_lea.vmem %s5, %s259
      %v262 = vld [vmem:[%s251] sm:$0xf]
      %v263 = vld [vmem:[%s251 + $0x4] sm:$0xf]
      %v264 = vld [vmem:[%s251 + $0x8] sm:$0xf]
      %v265 = vld [vmem:[%s251 + $0xc] sm:$0xf]
      %v266 = vld [vmem:[%s251 + $0x10] sm:$0xf]
      %v267 = vld [vmem:[%s251 + $0x14] sm:$0xf]
      %v268 = vld [vmem:[%s251 + $0x18] sm:$0xf]
      %v269 = vld [vmem:[%s251 + $0x1c] sm:$0xf]
      %v270 = vunpack.c.l.bf16 %v262
      %v271 = vunpack.c.l.bf16 %v263
      %v272 = vunpack.c.l.bf16 %v264
      %v273 = vunpack.c.l.bf16 %v265
      %v274 = vunpack.c.l.bf16 %v266
      %v275 = vunpack.c.l.bf16 %v267
      %v276 = vunpack.c.l.bf16 %v268
      %v277 = vunpack.c.l.bf16 %v269
      %v278 = vld [vmem:[%s1] sm:$0x1]
      %v279 = vld [vmem:[%s2] sm:$0x1]
      %v281 = vlaneseq
      %v282 = vshrl.u32 %v281, 7
      %v283 = vsub.s32 0, %v282
      %v284 = vrot.slane %v278, %v283
      %v286 = vsub.f32 %v270, %v284
      %v287 = vsub.f32 %v271, %v284
      %v288 = vsub.f32 %v272, %v284
      %v289 = vsub.f32 %v273, %v284
      %v290 = vsub.f32 %v274, %v284
      %v291 = vsub.f32 %v275, %v284
      %v292 = vsub.f32 %v276, %v284
      %v293 = vsub.f32 %v277, %v284
      %v295 = vlaneseq
      %v296 = vshrl.u32 %v295, 7
      %v297 = vsub.s32 0, %v296
      %v298 = vrot.slane %v279, %v297
      %v300 = vmul.f32 %v286, %v298
      %v301 = vmul.f32 %v287, %v298
      %v302 = vmul.f32 %v288, %v298
      %v303 = vmul.f32 %v289, %v298
      %v304 = vmul.f32 %v290, %v298
      %v305 = vmul.f32 %v291, %v298
      %v306 = vmul.f32 %v292, %v298
      %v307 = vmul.f32 %v293, %v298
      %v308 = vtanh.pop %v300
      %v309 = vtanh.pop %v301
      %v310 = vtanh.pop %v302
      %v311 = vtanh.pop %v303
      %v312 = vtanh.pop %v304
      %v313 = vtanh.pop %v305
      %v314 = vtanh.pop %v306
      %v315 = vtanh.pop %v307
      %v316 = vadd.f32 %v308, 0.0
      %v317 = vadd.f32 %v309, 0.0
      %v318 = vadd.f32 %v310, 0.0
      %v319 = vadd.f32 %v311, 0.0
      %v320 = vadd.f32 %v312, 0.0
      %v321 = vadd.f32 %v313, 0.0
      %v322 = vadd.f32 %v314, 0.0
      %v323 = vadd.f32 %v315, 0.0
      %v324 = vmul.f32 %v316, 0.5
      %v325 = vmul.f32 %v317, 0.5
      %v326 = vmul.f32 %v318, 0.5
      %v327 = vmul.f32 %v319, 0.5
      %v328 = vmul.f32 %v320, 0.5
      %v329 = vmul.f32 %v321, 0.5
      %v330 = vmul.f32 %v322, 0.5
      %v331 = vmul.f32 %v323, 0.5
      %v332 = vmul.f32 %v308, 1.5
      %v333 = vmul.f32 %v309, 1.5
      %v334 = vmul.f32 %v310, 1.5
      %v335 = vmul.f32 %v311, 1.5
      %v336 = vmul.f32 %v312, 1.5
      %v337 = vmul.f32 %v313, 1.5
      %v338 = vmul.f32 %v314, 1.5
      %v339 = vmul.f32 %v315, 1.5
      %v340 = vadd.f32 %v332, 0.0
      %v341 = vadd.f32 %v333, 0.0
      %v342 = vadd.f32 %v334, 0.0
      %v343 = vadd.f32 %v335, 0.0
      %v344 = vadd.f32 %v336, 0.0
      %v345 = vadd.f32 %v337, 0.0
      %v346 = vadd.f32 %v338, 0.0
      %v347 = vadd.f32 %v339, 0.0
      %v348 = vmul.f32 %v340, %v324
      %v349 = vmul.f32 %v341, %v325
      %v350 = vmul.f32 %v342, %v326
      %v351 = vmul.f32 %v343, %v327
      %v352 = vmul.f32 %v344, %v328
      %v353 = vmul.f32 %v345, %v329
      %v354 = vmul.f32 %v346, %v330
      %v355 = vmul.f32 %v347, %v331
      %v356 = vadd.f32 %v348, -0.375
      %v357 = vadd.f32 %v349, -0.375
      %v358 = vadd.f32 %v350, -0.375
      %v359 = vadd.f32 %v351, -0.375
      %v360 = vadd.f32 %v352, -0.375
      %v361 = vadd.f32 %v353, -0.375
      %v362 = vadd.f32 %v354, -0.375
      %v363 = vadd.f32 %v355, -0.375
      %v364 = vpack.c.bf16 %v325, %v324
      %v365 = vpack.c.bf16 %v327, %v326
      %v366 = vpack.c.bf16 %v329, %v328
      %v367 = vpack.c.bf16 %v331, %v330
      %v368 = vld [vmem:[%s3] sm:$0xf]
      %v369 = vld [vmem:[%s3 + $0x4] sm:$0xf]
      %v370 = vld [vmem:[%s3 + $0x8] sm:$0xf]
      %v371 = vld [vmem:[%s3 + $0xc] sm:$0xf]
      %v372 = vld [vmem:[%s3 + $0x10] sm:$0xf]
      %v373 = vld [vmem:[%s3 + $0x14] sm:$0xf]
      %v374 = vld [vmem:[%s3 + $0x18] sm:$0xf]
      %v375 = vld [vmem:[%s3 + $0x1c] sm:$0xf]
      %v376 = vld [vmem:[%s3 + $0x20] sm:$0xf]
      %v377 = vld [vmem:[%s3 + $0x24] sm:$0xf]
      %v378 = vld [vmem:[%s3 + $0x28] sm:$0xf]
      %v379 = vld [vmem:[%s3 + $0x2c] sm:$0xf]
      %v380 = vld [vmem:[%s3 + $0x30] sm:$0xf]
      %v381 = vld [vmem:[%s3 + $0x34] sm:$0xf]
      %v382 = vld [vmem:[%s3 + $0x38] sm:$0xf]
      %v383 = vld [vmem:[%s3 + $0x3c] sm:$0xf]
      %v384 = vpack.c.bf16 %v357, %v356
      %v385 = vpack.c.bf16 %v359, %v358
      %v386 = vpack.c.bf16 %v361, %v360
      %v387 = vpack.c.bf16 %v363, %v362
      %s388 = scalar_lea.vmem %s3, 64
      %v389 = vld [vmem:[%s388] sm:$0xf]
      %v390 = vld [vmem:[%s388 + $0x4] sm:$0xf]
      %v391 = vld [vmem:[%s388 + $0x8] sm:$0xf]
      %v392 = vld [vmem:[%s388 + $0xc] sm:$0xf]
      %v393 = vld [vmem:[%s388 + $0x10] sm:$0xf]
      %v394 = vld [vmem:[%s388 + $0x14] sm:$0xf]
      %v395 = vld [vmem:[%s388 + $0x18] sm:$0xf]
      %v396 = vld [vmem:[%s388 + $0x1c] sm:$0xf]
      %v397 = vld [vmem:[%s388 + $0x20] sm:$0xf]
      %v398 = vld [vmem:[%s388 + $0x24] sm:$0xf]
      %v399 = vld [vmem:[%s388 + $0x28] sm:$0xf]
      %v400 = vld [vmem:[%s388 + $0x2c] sm:$0xf]
      %v401 = vld [vmem:[%s388 + $0x30] sm:$0xf]
      %v402 = vld [vmem:[%s388 + $0x34] sm:$0xf]
      %v403 = vld [vmem:[%s388 + $0x38] sm:$0xf]
      %v404 = vld [vmem:[%s388 + $0x3c] sm:$0xf]
      %v421 = vunpack.c.l.b16 %v389
      %v422 = vunpack.c.l.b16 %v390
      %v423 = vunpack.c.l.b16 %v391
      %v424 = vunpack.c.l.b16 %v392
      %v425 = vunpack.c.l.b16 %v393
      %v426 = vunpack.c.l.b16 %v394
      %v427 = vunpack.c.l.b16 %v395
      %v428 = vunpack.c.l.b16 %v396
      %v429 = vunpack.c.l.b16 %v397
      %v430 = vunpack.c.l.b16 %v398
      %v431 = vunpack.c.l.b16 %v399
      %v432 = vunpack.c.l.b16 %v400
      %v433 = vunpack.c.l.b16 %v401
      %v434 = vunpack.c.l.b16 %v402
      %v435 = vunpack.c.l.b16 %v403
      %v436 = vunpack.c.l.b16 %v404
      %v437 = vpack.c.b16 %v422, %v421
      %v438 = vpack.c.b16 %v424, %v423
      %v439 = vpack.c.b16 %v426, %v425
      %v440 = vpack.c.b16 %v428, %v427
      %v441 = vpack.c.b16 %v430, %v429
      %v442 = vpack.c.b16 %v432, %v431
      %v443 = vpack.c.b16 %v434, %v433
      %v444 = vpack.c.b16 %v436, %v435
      %453 = vmatprep.subr.bf16.mxu0 0
      %454 = vmatpush1.bf16.msra.mxu0 %v437
      %455 = vmatprep.subr.bf16.mxu0 0
      %456 = vmatpush1.bf16.msra.mxu0 %v438
      %457 = vmatprep.subr.bf16.mxu0 0
      %458 = vmatpush1.bf16.msra.mxu0 %v439
      %459 = vmatprep.subr.bf16.mxu0 0
      %460 = vmatpush1.bf16.msra.mxu0 %v440
      %461 = vmatprep.subr.bf16.mxu0 0
      %462 = vmatpush1.bf16.msra.mxu0 %v441
      %463 = vmatprep.subr.bf16.mxu0 0
      %464 = vmatpush1.bf16.msra.mxu0 %v442
      %465 = vmatprep.subr.bf16.mxu0 0
      %466 = vmatpush1.bf16.msra.mxu0 %v443
      %467 = vmatprep.subr.bf16.mxu0 0
      %468 = vmatpush1.bf16.msra.mxu0 %v444
      %469 = vmatprep.subr.bf16.mxu0 0
      %470 = vmatpush1.bf16.msra.mxu0 0
      %471 = vmatprep.subr.bf16.mxu0 0
      %472 = vmatpush1.bf16.msra.mxu0 0
      %473 = vmatprep.subr.bf16.mxu0 0
      %474 = vmatpush1.bf16.msra.mxu0 0
      %475 = vmatprep.subr.bf16.mxu0 0
      %476 = vmatpush1.bf16.msra.mxu0 0
      %477 = vmatprep.subr.bf16.mxu0 0
      %478 = vmatpush1.bf16.msra.mxu0 0
      %479 = vmatprep.subr.bf16.mxu0 0
      %480 = vmatpush1.bf16.msra.mxu0 0
      %481 = vmatprep.subr.bf16.mxu0 0
      %482 = vmatpush1.bf16.msra.mxu0 0
      %483 = vmatprep.subr.bf16.mxu0 0
      %484 = vmatpush1.bf16.msra.mxu0 0
      %485 = vmatprep.mubr.bf16.mxu0 0
      %486 = vmatmul.mubr.bf16.gmra.mrb[0].mxu0 %v384
      %v487 = vpop.f32.mrb[0].mxu0
      %v488 = vadd.f32 0.0, %v487
      %v489 = vpop.f32.mrb[0].mxu0
      %v490 = vpop.f32.mrb[0].mxu0
      %v491 = vadd.f32 0.0, %v490
      %v492 = vpop.f32.mrb[0].mxu0
      %493 = vmatprep.mubr.bf16.mxu0 0
      %494 = vmatmul.mubr.bf16.gmra.mrb[0].mxu0 %v385
      %v495 = vpop.f32.mrb[0].mxu0
      %v496 = vadd.f32 0.0, %v495
      %v497 = vpop.f32.mrb[0].mxu0
      %v498 = vpop.f32.mrb[0].mxu0
      %v499 = vadd.f32 0.0, %v498
      %v500 = vpop.f32.mrb[0].mxu0
      %501 = vmatprep.mubr.bf16.mxu0 0
      %502 = vmatmul.mubr.bf16.gmra.mrb[0].mxu0 %v386
      %v503 = vpop.f32.mrb[0].mxu0
      %v504 = vadd.f32 0.0, %v503
      %v505 = vpop.f32.mrb[0].mxu0
      %v506 = vpop.f32.mrb[0].mxu0
      %v507 = vadd.f32 0.0, %v506
      %v508 = vpop.f32.mrb[0].mxu0
      %509 = vmatprep.mubr.bf16.mxu0 0
      %510 = vmatmul.mubr.bf16.gmra.mrb[0].mxu0 %v387
      %v511 = vpop.f32.mrb[0].mxu0
      %v512 = vadd.f32 0.0, %v511
      %v513 = vpop.f32.mrb[0].mxu0
      %v514 = vpop.f32.mrb[0].mxu0
      %v515 = vadd.f32 0.0, %v514
      %v516 = vpop.f32.mrb[0].mxu0
      %517 = vdwg.mxu0
      %v534 = vunpack.c.l.b16 %v368
      %v535 = vunpack.c.l.b16 %v369
      %v536 = vunpack.c.l.b16 %v370
      %v537 = vunpack.c.l.b16 %v371
      %v538 = vunpack.c.l.b16 %v372
      %v539 = vunpack.c.l.b16 %v373
      %v540 = vunpack.c.l.b16 %v374
      %v541 = vunpack.c.l.b16 %v375
      %v542 = vunpack.c.l.b16 %v376
      %v543 = vunpack.c.l.b16 %v377
      %v544 = vunpack.c.l.b16 %v378
      %v545 = vunpack.c.l.b16 %v379
      %v546 = vunpack.c.l.b16 %v380
      %v547 = vunpack.c.l.b16 %v381
      %v548 = vunpack.c.l.b16 %v382
      %v549 = vunpack.c.l.b16 %v383
      %v550 = vpack.c.b16 %v535, %v534
      %v551 = vpack.c.b16 %v537, %v536
      %v552 = vpack.c.b16 %v539, %v538
      %v553 = vpack.c.b16 %v541, %v540
      %v554 = vpack.c.b16 %v543, %v542
      %v555 = vpack.c.b16 %v545, %v544
      %v556 = vpack.c.b16 %v547, %v546
      %v557 = vpack.c.b16 %v549, %v548
      %566 = vmatprep.subr.bf16.mxu0 0
      %567 = vmatpush1.bf16.msra.mxu0 %v550
      %568 = vmatprep.subr.bf16.mxu0 0
      %569 = vmatpush1.bf16.msra.mxu0 %v551
      %570 = vmatprep.subr.bf16.mxu0 0
      %571 = vmatpush1.bf16.msra.mxu0 %v552
      %572 = vmatprep.subr.bf16.mxu0 0
      %573 = vmatpush1.bf16.msra.mxu0 %v553
      %574 = vmatprep.subr.bf16.mxu0 0
      %575 = vmatpush1.bf16.msra.mxu0 %v554
      %576 = vmatprep.subr.bf16.mxu0 0
      %577 = vmatpush1.bf16.msra.mxu0 %v555
      %578 = vmatprep.subr.bf16.mxu0 0
      %579 = vmatpush1.bf16.msra.mxu0 %v556
      %580 = vmatprep.subr.bf16.mxu0 0
      %581 = vmatpush1.bf16.msra.mxu0 %v557
      %582 = vmatprep.subr.bf16.mxu0 0
      %583 = vmatpush1.bf16.msra.mxu0 0
      %584 = vmatprep.subr.bf16.mxu0 0
      %585 = vmatpush1.bf16.msra.mxu0 0
      %586 = vmatprep.subr.bf16.mxu0 0
      %587 = vmatpush1.bf16.msra.mxu0 0
      %588 = vmatprep.subr.bf16.mxu0 0
      %589 = vmatpush1.bf16.msra.mxu0 0
      %590 = vmatprep.subr.bf16.mxu0 0
      %591 = vmatpush1.bf16.msra.mxu0 0
      %592 = vmatprep.subr.bf16.mxu0 0
      %593 = vmatpush1.bf16.msra.mxu0 0
      %594 = vmatprep.subr.bf16.mxu0 0
      %595 = vmatpush1.bf16.msra.mxu0 0
      %596 = vmatprep.subr.bf16.mxu0 0
      %597 = vmatpush1.bf16.msra.mxu0 0
      %598 = vmatprep.mubr.bf16.mxu0 0
      %599 = vmatmul.mubr.bf16.gmra.mrb[0].mxu0 %v364
      %v600 = vpop.f32.mrb[0].mxu0
      %v601 = vadd.f32 %v488, %v600
      %v602 = vpop.f32.mrb[0].mxu0
      %v603 = vpop.f32.mrb[0].mxu0
      %v604 = vadd.f32 %v491, %v603
      %v605 = vpop.f32.mrb[0].mxu0
      %606 = vmatprep.mubr.bf16.mxu0 0
      %607 = vmatmul.mubr.bf16.gmra.mrb[0].mxu0 %v365
      %v608 = vpop.f32.mrb[0].mxu0
      %v609 = vadd.f32 %v496, %v608
      %v610 = vpop.f32.mrb[0].mxu0
      %v611 = vpop.f32.mrb[0].mxu0
      %v612 = vadd.f32 %v499, %v611
      %v613 = vpop.f32.mrb[0].mxu0
      %614 = vmatprep.mubr.bf16.mxu0 0
      %615 = vmatmul.mubr.bf16.gmra.mrb[0].mxu0 %v366
      %v616 = vpop.f32.mrb[0].mxu0
      %v617 = vadd.f32 %v504, %v616
      %v618 = vpop.f32.mrb[0].mxu0
      %v619 = vpop.f32.mrb[0].mxu0
      %v620 = vadd.f32 %v507, %v619
      %v621 = vpop.f32.mrb[0].mxu0
      %622 = vmatprep.mubr.bf16.mxu0 0
      %623 = vmatmul.mubr.bf16.gmra.mrb[0].mxu0 %v367
      %v624 = vpop.f32.mrb[0].mxu0
      %v625 = vadd.f32 %v512, %v624
      %v626 = vpop.f32.mrb[0].mxu0
      %v627 = vpop.f32.mrb[0].mxu0
      %v628 = vadd.f32 %v515, %v627
      %v629 = vpop.f32.mrb[0].mxu0
      %630 = vdwg.mxu0
      %v631 = vld [vmem:[%s4] sm:$0x1]
      %v633 = vlaneseq
      %v634 = vshrl.u32 %v633, 7
      %v635 = vsub.s32 0, %v634
      %v636 = vrot.slane %v631, %v635
      %v638 = vadd.f32 %v601, %v636
      %v639 = vadd.f32 %v604, %v636
      %v640 = vadd.f32 %v609, %v636
      %v641 = vadd.f32 %v612, %v636
      %v642 = vadd.f32 %v617, %v636
      %v643 = vadd.f32 %v620, %v636
      %v644 = vadd.f32 %v625, %v636
      %v645 = vadd.f32 %v628, %v636
      %646 = vxpose.xlu0.b32.start [1/16] %v638, 128
      %647 = vxpose.xlu0.b32.cont [2/16] %v639, 128
      %648 = vxpose.xlu0.b32.cont [3/16] %v640, 128
      %649 = vxpose.xlu0.b32.cont [4/16] %v641, 128
      %650 = vxpose.xlu0.b32.cont [5/16] %v642, 128
      %651 = vxpose.xlu0.b32.cont [6/16] %v643, 128
      %652 = vxpose.xlu0.b32.cont [7/16] %v644, 128
      %653 = vxpose.xlu0.b32.cont [8/16] %v645, 128
      %654 = vxpose.xlu0.b32.cont [9/16] 0.0, 128
      %655 = vxpose.xlu0.b32.cont [10/16] 0.0, 128
      %656 = vxpose.xlu0.b32.cont [11/16] 0.0, 128
      %657 = vxpose.xlu0.b32.cont [12/16] 0.0, 128
      %658 = vxpose.xlu0.b32.cont [13/16] 0.0, 128
      %659 = vxpose.xlu0.b32.cont [14/16] 0.0, 128
      %660 = vxpose.xlu0.b32.cont [15/16] 0.0, 128
      %661 = vxpose.xlu0.b32.end [16/16] 0.0, 128
      %v662 = vpop.trf.xlu0
      %v663 = vpop.trf.xlu0
      %v664 = vpop.trf.xlu0
      %v665 = vpop.trf.xlu0
      %v666 = vpop.trf.xlu0
      %v667 = vpop.trf.xlu0
      %v668 = vpop.trf.xlu0
      %v669 = vpop.trf.xlu0
      %v670 = vpop.trf.xlu0
      %v671 = vpop.trf.xlu0
      %v672 = vpop.trf.xlu0
      %v673 = vpop.trf.xlu0
      %v674 = vpop.trf.xlu0
      %v675 = vpop.trf.xlu0
      %v676 = vpop.trf.xlu0
      %v677 = vpop.trf.xlu0
      %vm678 = vcmask 523264
      %679 = vst.msk [vmem:[%s260] sm:$0xff] %vm678, %v662
      %680 = vst.msk [vmem:[%s260 + $0x8] sm:$0xff] %vm678, %v663
      %681 = vst.msk [vmem:[%s260 + $0x10] sm:$0xff] %vm678, %v664
      %682 = vst.msk [vmem:[%s260 + $0x18] sm:$0xff] %vm678, %v665
      %683 = vst.msk [vmem:[%s260 + $0x20] sm:$0xff] %vm678, %v666
      %684 = vst.msk [vmem:[%s260 + $0x28] sm:$0xff] %vm678, %v667
      %vm685 = vcmask 517120
      %686 = vst.msk [vmem:[%s260 + $0x30] sm:$0x3] %vm685, %v668
      %p687 = scmp.lt.s32.totalorder %s20, 1
      %s688 = scalar_select %p687, %s20, 1
      %p689 = scmp.lt.s32.totalorder %s21, 0
      %s690 = scalar_select %p689, %s21, 0
      %s691 = smul.addr %s688, 7
      %s692 = sadd.s32 %s690, %s691
      %s693 = smul.addr %s692, 8
      %s694 = scalar_lea.vmem %s5, %s693
      // Predicated region
      $region41: #{pointnet_kan_forward.7} parent=39 // pred_check
        %p695 = pneg %p160
      $region42: #{pointnet_kan_forward.7} parent=39 // pred_check_branch
        %697 = sbr.rel (%p695) target = $region44
      $region43: #{pointnet_kan_forward.7} parent=39 // pred_region
        _
      $region44: #{pointnet_kan_forward.7} parent=39 // pred_fallthru
        _
    $region40: #{pointnet_kan_forward.7} parent=5 // pred_fallthru
      _
    %p698 = scmp.le.s32.totalorder 2, %s11
    // Predicated region
    $region45: #{pointnet_kan_forward.7} parent=5 // pred_check
      %p699 = pneg %p698
    $region46: #{pointnet_kan_forward.7} parent=5 // pred_check_branch
      %701 = sbr.rel (%p699) target = $region48
    $region47: #{pointnet_kan_forward.7} parent=5 // pred_region
      %s702 = ssub.s32 %s11, 2
      // Predicated region
      $region49: #{pointnet_kan_forward.7} parent=47 // pred_check
        %p703 = pneg %p166
      $region50: #{pointnet_kan_forward.7} parent=47 // pred_check_branch
        %705 = sbr.rel (%p703) target = $region52
      $region51: #{pointnet_kan_forward.7} parent=47 // pred_region
        %p706 = scmp.lt.s32.totalorder %s22, 1
        %s707 = scalar_select %p706, %s22, 1
        %p708 = scmp.lt.s32.totalorder %s23, 0
        %s709 = scalar_select %p708, %s23, 0
        %s710 = smul.addr %s707, 7
        %s711 = sadd.s32 %s709, %s710
        %s712 = smul.addr %s711, 8
        %s713 = scalar_lea.vmem %s5, %s712
      $region52: #{pointnet_kan_forward.7} parent=47 // pred_fallthru
        _
    $region48: #{pointnet_kan_forward.7} parent=5 // pred_fallthru
      _
  $region6: #{pointnet_kan_forward.7} parent=0 // loop_footer
    %s15 = sadd.s32 1, %s11
  $region7: #{pointnet_kan_forward.7} parent=0 // loop_footer_branch
    %10 = sbr.rel target = $region3
  $region8: #{pointnet_kan_forward.7} parent=0 // loop_exit
    _

</llo_original>
